<compile_context>
chip_gen: v7x
topology: tpu7x:2x2x1
jax: 0.10.0
libtpu: 0.0.40
codegen_flags: <defaults>
</compile_context>

<pallas_src>
import functools
import math

import jax
import jax.numpy as jnp
from jax.experimental import pallas as pl
from jax.experimental.pallas import tpu as pltpu


# ----------------------------------------------------------------------------
# In-kernel helpers (traced inside the Pallas kernel body).
# ----------------------------------------------------------------------------
def _add_layernorm(x, y, gamma, beta, eps=1e-5):
    """Residual add + LayerNorm over the last dim (f32, biased variance)."""
    z = x + y
    mean = jnp.mean(z, axis=-1, keepdims=True)
    c = z - mean
    var = jnp.mean(c * c, axis=-1, keepdims=True)
    return (c * jax.lax.rsqrt(var + eps)) * gamma + beta


# ----------------------------------------------------------------------------
# Fused decoder-layer kernel: self-attn -> add+LN -> cross-attn -> add+LN
#                             -> FFN -> add+LN, one batch element per grid step.
# ----------------------------------------------------------------------------
def decoder_layer_kernel(
    # data
    x_ref, enc_ref, tgt_mask_ref, src_mask_ref,
    # self-attention (fused QKV, head-major W_o)
    wqkv_s_ref, bqkv_s_ref, wo_s_ref,
    # cross-attention (separate Q, fused KV, head-major W_o)
    wq_c_ref, wkv_c_ref, bkv_c_ref, wo_c_ref,
    # feed-forward
    w1_ref, b1_ref, w2_ref,
    # packed (10, D) f32 vectors: bo_s, bq_c, bo_c, b2, g1, be1, g2, be2, g3, be3
    vec_ref,
    out_ref, *, num_heads, d_k):
    d_model = num_heads * d_k
    inv_sqrt_dk = 1.0 / math.sqrt(d_k)

    x = x_ref[0]        # (Sq, D)  f32
    enc = enc_ref[0]    # (Skv, D) f32

    vecs = vec_ref[...]                                   # (10, D) f32
    bo_s, bq_c, bo_c, fb2 = vecs[0:1], vecs[1:2], vecs[2:3], vecs[3:4]
    g1, be1 = vecs[4:5], vecs[5:6]
    g2, be2 = vecs[6:7], vecs[7:8]
    g3, be3 = vecs[8:9], vecs[9:10]

    # Additive mask biases, computed ONCE per batch element, shared by all heads.
    tgt_bias = jnp.where(tgt_mask_ref[0] == 0, -1.0e9, 0.0).astype(jnp.float32)
    src_bias = jnp.where(src_mask_ref[0] == 0, -1.0e9, 0.0).astype(jnp.float32)

    def attention(q, k, v, mask_bias, wo_h, bo):
        """q:(Sq,D) k/v:(Skv,D) f32; wo_h:(H,d_k,D) bf16; bo:(1,D) f32."""
        def to_heads(t):                                   # (S, D) -> (H, S, d_k) bf16
            r = t.reshape(t.shape[0], num_heads, d_k)
            return pltpu.einshape("shd->hsd", r).astype(jnp.bfloat16)

        qh = to_heads(q * inv_sqrt_dk)                     # scale folded into Q
        kh = to_heads(k)
        vh = to_heads(v)

        # One batched contraction over all heads (MXU), f32 accumulate.
        scores = jnp.einsum("hqd,hkd->hqk", qh, kh,
                            preferred_element_type=jnp.float32)
        scores = scores + mask_bias[None, :, :]

        # Numerically-stable softmax; normalization via EUP reciprocal.
        m = jnp.max(scores, axis=-1, keepdims=True)
        e = jnp.exp(scores - m)
        denom = jnp.sum(e, axis=-1, keepdims=True)
        probs = e * pl.reciprocal(denom, approx=True)

        ctx = jnp.einsum("hqk,hkd->hqd", probs.astype(jnp.bfloat16), vh,
                         preferred_element_type=jnp.float32)       # (H, Sq, d_k)

        # Combine heads directly into the output projection: batched MXU matmul
        # per head + VPU sum over heads (no XLU transpose, no reshape copy).
        out_h = jnp.einsum("hqd,hdo->hqo", ctx.astype(jnp.bfloat16), wo_h,
                           preferred_element_type=jnp.float32)     # (H, Sq, D)
        return jnp.sum(out_h, axis=0) + bo

    # ---- self-attention sub-layer (fused QKV projection: one (D,3D) matmul) ----
    qkv = jnp.dot(x.astype(jnp.bfloat16), wqkv_s_ref[...],
                  preferred_element_type=jnp.float32) + bqkv_s_ref[...]
    attn = attention(qkv[:, :d_model], qkv[:, d_model:2 * d_model],
                     qkv[:, 2 * d_model:], tgt_bias, wo_s_ref[...], bo_s)
    x = _add_layernorm(x, attn, g1, be1)

    # ---- cross-attention sub-layer (Q from x, fused KV from encoder output) ----
    q = jnp.dot(x.astype(jnp.bfloat16), wq_c_ref[...],
                preferred_element_type=jnp.float32) + bq_c
    kv = jnp.dot(enc.astype(jnp.bfloat16), wkv_c_ref[...],
                 preferred_element_type=jnp.float32) + bkv_c_ref[...]
    attn = attention(q, kv[:, :d_model], kv[:, d_model:], src_bias,
                     wo_c_ref[...], bo_c)
    x = _add_layernorm(x, attn, g2, be2)

    # ---- position-wise feed-forward sub-layer (bf16 intermediate after ReLU) ----
    h = jnp.maximum(
        jnp.dot(x.astype(jnp.bfloat16), w1_ref[...],
                preferred_element_type=jnp.float32) + b1_ref[...],
        0.0).astype(jnp.bfloat16)
    ff = jnp.dot(h, w2_ref[...], preferred_element_type=jnp.float32) + fb2
    x = _add_layernorm(x, ff, g3, be3)

    out_ref[0] = x.astype(out_ref.dtype)


def decoder_layer_forward(params, x, enc_output, src_mask, tgt_mask, *, num_heads):
    """Fused DecoderLayer forward (dropout = identity, eval mode)."""
    B, Sq, D = x.shape
    Skv = enc_output.shape[1]
    d_k = D // num_heads
    d_ff = params["ff"]["w1"].shape[1]

    sa, ca, ff = params["self_attn"], params["cross_attn"], params["ff"]

    # Pack all (1, D) biases / LayerNorm params into one (10, D) array.
    vecs = jnp.concatenate(
        [sa["bo"], ca["bq"], ca["bo"], ff["b2"],
         params["norm1"][0], params["norm1"][1],
         params["norm2"][0], params["norm2"][1],
         params["norm3"][0], params["norm3"][1]], axis=0).astype(jnp.float32)

    weights = [
        sa["w_qkv"], sa["b_qkv"], sa["wo_h"],
        ca["wq"], ca["w_kv"], ca["b_kv"], ca["wo_h"],
        ff["w1"], ff["b1"], ff["w2"], vecs,
    ]

    def const_spec(shape):
        zeros = (0,) * len(shape)
        # Constant index_map -> single-buffer: halves weight VMEM footprint.
        return pl.BlockSpec(shape, lambda b, z=zeros: z,
                            pipeline_mode=pl.Buffered(1))

    weight_specs = [const_spec(w.shape) for w in weights]

    # ---- advisory cost estimate + VMEM budget sized to the resident set ----
    flops = 2 * B * (
        Sq * D * (3 * D)            # fused QKV (self)
        + 2 * Sq * Sq * D           # self QK^T + PV
        + Sq * D * D                # self head-combine / out proj
        + Sq * D * D                # cross Q
        + Skv * D * (2 * D)         # cross fused KV
        + 2 * Sq * Skv * D          # cross QK^T + PV
        + Sq * D * D                # cross head-combine / out proj
        + 2 * Sq * D * d_ff         # FFN
    )
    transcendentals = B * num_heads * (Sq * Sq + Sq * Skv)          # exp in softmax
    weight_bytes = sum(int(w.size) * w.dtype.itemsize for w in weights)
    io_bytes = sum(int(a.size) * a.dtype.itemsize
                   for a in (x, enc_output, src_mask, tgt_mask)) + B * Sq * D * 4
    cost = pl.CostEstimate(flops=int(flops),
                           transcendentals=int(transcendentals),
                           bytes_accessed=int(weight_bytes + io_bytes))

    per_block_act = 4 * (2 * Sq * D + Skv * D + Sq * Sq + Sq * Skv)
    work_bytes = 4 * (2 * num_heads * Sq * max(Sq, Skv)   # scores + probs
                      + 2 * Sq * d_ff                     # FFN intermediate
                      + 2 * Sq * 3 * D)                   # qkv / ctx temporaries
    vmem_limit = int(min(128 * 1024 * 1024,
                         max(32 * 1024 * 1024,
                             weight_bytes + 2 * per_block_act + work_bytes
                             + (8 << 20))))

    kernel = functools.partial(decoder_layer_kernel, num_heads=num_heads, d_k=d_k)
    return pl.pallas_call(
        kernel,
        out_shape=jax.ShapeDtypeStruct((B, Sq, D), jnp.float32),
        grid=(B,),
        in_specs=[
            pl.BlockSpec((1, Sq, D), lambda b: (b, 0, 0)),      # x
            pl.BlockSpec((1, Skv, D), lambda b: (b, 0, 0)),     # enc_output
            pl.BlockSpec((1, Sq, Sq), lambda b: (b, 0, 0)),     # tgt_mask
            pl.BlockSpec((1, Sq, Skv), lambda b: (b, 0, 0)),    # src_mask
        ] + weight_specs,
        out_specs=pl.BlockSpec((1, Sq, D), lambda b: (b, 0, 0)),
        compiler_params=pltpu.CompilerParams(
            dimension_semantics=("parallel",),                  # batch across TCs
            vmem_limit_bytes=vmem_limit),
        cost_estimate=cost,
    )(x, enc_output, tgt_mask, src_mask, *weights)


# ----------------------------------------------------------------------------
# Parameter construction (deterministic, synthetic). Matmul weights bf16,
# biases / LN params f32.  W_o is pre-reshaped head-major (H, d_k, D).
# ----------------------------------------------------------------------------
def init_linear(key, d_in, d_out, scale=0.1):
    kw, kb = jax.random.split(key)
    w = jax.random.normal(kw, (d_in, d_out), jnp.float32) * scale   # (in, out)
    b = jax.random.normal(kb, (1, d_out), jnp.float32) * scale
    return w, b


def init_decoder_layer(key, d_model, d_ff, num_heads):
    d_k = d_model // num_heads
    ks = jax.random.split(key, 10)

    # self-attention: fused (D, 3D) QKV weight, head-major W_o
    wq, bq = init_linear(ks[0], d_model, d_model)
    wk, bk = init_linear(ks[1], d_model, d_model)
    wv, bv = init_linear(ks[2], d_model, d_model)
    wo_s, bo_s = init_linear(ks[3], d_model, d_model)
    self_attn = dict(
        w_qkv=jnp.concatenate([wq, wk, wv], axis=1).astype(jnp.bfloat16),
        b_qkv=jnp.concatenate([bq, bk, bv], axis=1),
        wo_h=wo_s.reshape(num_heads, d_k, d_model).astype(jnp.bfloat16),
        bo=bo_s)

    # cross-attention: separate Q weight, fused (D, 2D) KV weight, head-major W_o
    wq2, bq2 = init_linear(ks[4], d_model, d_model)
    wk2, bk2 = init_linear(ks[5], d_model, d_model)
    wv2, bv2 = init_linear(ks[6], d_model, d_model)
    wo_c, bo_c = init_linear(ks[7], d_model, d_model)
    cross_attn = dict(
        wq=wq2.astype(jnp.bfloat16), bq=bq2,
        w_kv=jnp.concatenate([wk2, wv2], axis=1).astype(jnp.bfloat16),
        b_kv=jnp.concatenate([bk2, bv2], axis=1),
        wo_h=wo_c.reshape(num_heads, d_k, d_model).astype(jnp.bfloat16),
        bo=bo_c)

    w1, b1 = init_linear(ks[8], d_model, d_ff)
    w2, b2 = init_linear(ks[9], d_ff, d_model)
    ffn = dict(w1=w1.astype(jnp.bfloat16), b1=b1,
               w2=w2.astype(jnp.bfloat16), b2=b2)

    ones = jnp.ones((1, d_model), jnp.float32)
    zeros = jnp.zeros((1, d_model), jnp.float32)
    return dict(self_attn=self_attn, cross_attn=cross_attn, ff=ffn,
                norm1=(ones, zeros), norm2=(ones, zeros), norm3=(ones, zeros))


if __name__ == "__main__":
    B, S, D, H, D_FF = 2, 8, 32, 4, 64

    key = jax.random.PRNGKey(0)
    k_params, k_x, k_enc = jax.random.split(key, 3)

    params = init_decoder_layer(k_params, D, D_FF, H)
    x = jax.random.normal(k_x, (B, S, D), jnp.float32)
    enc_output = jax.random.normal(k_enc, (B, S, D), jnp.float32)

    # tgt_mask: causal; src_mask: all ones — per-batch (B, S, S) masks.
    tgt_mask = jnp.broadcast_to(jnp.tril(jnp.ones((S, S), jnp.float32)), (B, S, S))
    src_mask = jnp.ones((B, S, S), jnp.float32)

    fwd = jax.jit(functools.partial(decoder_layer_forward, num_heads=H))
    out = fwd(params, x, enc_output, src_mask, tgt_mask)
    jax.block_until_ready(out)
    assert out.shape == (B, S, D)
    print("KERNEL_OK")
</pallas_src>

<mosaic_0001>
module attributes {stable_mosaic.version = 11 : i64} {
  func.func @decoder_layer_kernel(%arg0: i32, %arg1: memref<1x8x32xf32, #tpu.memory_space<vmem>>, %arg2: memref<1x8x32xf32, #tpu.memory_space<vmem>>, %arg3: memref<1x8x8xf32, #tpu.memory_space<vmem>>, %arg4: memref<1x8x8xf32, #tpu.memory_space<vmem>>, %arg5: memref<32x96xbf16, #tpu.memory_space<vmem>>, %arg6: memref<1x96xf32, #tpu.memory_space<vmem>>, %arg7: memref<4x8x32xbf16, #tpu.memory_space<vmem>>, %arg8: memref<32x32xbf16, #tpu.memory_space<vmem>>, %arg9: memref<32x64xbf16, #tpu.memory_space<vmem>>, %arg10: memref<1x64xf32, #tpu.memory_space<vmem>>, %arg11: memref<4x8x32xbf16, #tpu.memory_space<vmem>>, %arg12: memref<32x64xbf16, #tpu.memory_space<vmem>>, %arg13: memref<1x64xf32, #tpu.memory_space<vmem>>, %arg14: memref<64x32xbf16, #tpu.memory_space<vmem>>, %arg15: memref<10x32xf32, #tpu.memory_space<vmem>>, %arg16: memref<1x8x32xf32, #tpu.memory_space<vmem>>) attributes {dimension_semantics = [#tpu.dimension_semantics<parallel>], iteration_bounds = array<i64: 2>, scalar_prefetch = 0 : i64, scratch_operands = 0 : i64, tpu.core_type = #tpu.core_type<tc>, window_params = [{transform_indices = @transform_0, window_bounds = array<i64: 1, 8, 32>}, {transform_indices = @transform_1, window_bounds = array<i64: 1, 8, 32>}, {transform_indices = @transform_2, window_bounds = array<i64: 1, 8, 8>}, {transform_indices = @transform_3, window_bounds = array<i64: 1, 8, 8>}, {pipeline_mode = #tpu.pipeline_mode<synchronous>, transform_indices = @transform_4, window_bounds = array<i64: 32, 96>}, {pipeline_mode = #tpu.pipeline_mode<synchronous>, transform_indices = @transform_5, window_bounds = array<i64: 1, 96>}, {pipeline_mode = #tpu.pipeline_mode<synchronous>, transform_indices = @transform_6, window_bounds = array<i64: 4, 8, 32>}, {pipeline_mode = #tpu.pipeline_mode<synchronous>, transform_indices = @transform_7, window_bounds = array<i64: 32, 32>}, {pipeline_mode = #tpu.pipeline_mode<synchronous>, transform_indices = @transform_8, window_bounds = array<i64: 32, 64>}, {pipeline_mode = #tpu.pipeline_mode<synchronous>, transform_indices = @transform_9, window_bounds = array<i64: 1, 64>}, {pipeline_mode = #tpu.pipeline_mode<synchronous>, transform_indices = @transform_10, window_bounds = array<i64: 4, 8, 32>}, {pipeline_mode = #tpu.pipeline_mode<synchronous>, transform_indices = @transform_11, window_bounds = array<i64: 32, 64>}, {pipeline_mode = #tpu.pipeline_mode<synchronous>, transform_indices = @transform_12, window_bounds = array<i64: 1, 64>}, {pipeline_mode = #tpu.pipeline_mode<synchronous>, transform_indices = @transform_13, window_bounds = array<i64: 64, 32>}, {pipeline_mode = #tpu.pipeline_mode<synchronous>, transform_indices = @transform_14, window_bounds = array<i64: 10, 32>}, {transform_indices = @transform_15, window_bounds = array<i64: 1, 8, 32>}]} {
    %c0 = arith.constant 0 : index
    %c0_0 = arith.constant 0 : index
    %c0_1 = arith.constant 0 : index
    %0 = vector.load %arg1[%c0, %c0_0, %c0_1] : memref<1x8x32xf32, #tpu.memory_space<vmem>>, vector<1x8x32xf32>
    %1 = vector.shape_cast %0 : vector<1x8x32xf32> to vector<8x32xf32>
    %c0_2 = arith.constant 0 : index
    %c0_3 = arith.constant 0 : index
    %c0_4 = arith.constant 0 : index
    %2 = vector.load %arg2[%c0_2, %c0_3, %c0_4] : memref<1x8x32xf32, #tpu.memory_space<vmem>>, vector<1x8x32xf32>
    %3 = vector.shape_cast %2 : vector<1x8x32xf32> to vector<8x32xf32>
    %c0_5 = arith.constant 0 : index
    %c0_6 = arith.constant 0 : index
    %4 = vector.load %arg15[%c0_5, %c0_6] : memref<10x32xf32, #tpu.memory_space<vmem>>, vector<10x32xf32>
    %5 = vector.extract_strided_slice %4 {offsets = [0, 0], sizes = [1, 32], strides = [1, 1]} : vector<10x32xf32> to vector<1x32xf32>
    %6 = vector.extract_strided_slice %4 {offsets = [1, 0], sizes = [1, 32], strides = [1, 1]} : vector<10x32xf32> to vector<1x32xf32>
    %7 = vector.extract_strided_slice %4 {offsets = [2, 0], sizes = [1, 32], strides = [1, 1]} : vector<10x32xf32> to vector<1x32xf32>
    %8 = vector.extract_strided_slice %4 {offsets = [3, 0], sizes = [1, 32], strides = [1, 1]} : vector<10x32xf32> to vector<1x32xf32>
    %9 = vector.extract_strided_slice %4 {offsets = [4, 0], sizes = [1, 32], strides = [1, 1]} : vector<10x32xf32> to vector<1x32xf32>
    %10 = vector.extract_strided_slice %4 {offsets = [5, 0], sizes = [1, 32], strides = [1, 1]} : vector<10x32xf32> to vector<1x32xf32>
    %11 = vector.extract_strided_slice %4 {offsets = [6, 0], sizes = [1, 32], strides = [1, 1]} : vector<10x32xf32> to vector<1x32xf32>
    %12 = vector.extract_strided_slice %4 {offsets = [7, 0], sizes = [1, 32], strides = [1, 1]} : vector<10x32xf32> to vector<1x32xf32>
    %13 = vector.extract_strided_slice %4 {offsets = [8, 0], sizes = [1, 32], strides = [1, 1]} : vector<10x32xf32> to vector<1x32xf32>
    %14 = vector.extract_strided_slice %4 {offsets = [9, 0], sizes = [1, 32], strides = [1, 1]} : vector<10x32xf32> to vector<1x32xf32>
    %c0_7 = arith.constant 0 : index
    %c0_8 = arith.constant 0 : index
    %c0_9 = arith.constant 0 : index
    %15 = vector.load %arg3[%c0_7, %c0_8, %c0_9] : memref<1x8x8xf32, #tpu.memory_space<vmem>>, vector<1x8x8xf32>
    %16 = vector.shape_cast %15 : vector<1x8x8xf32> to vector<8x8xf32>
    %cst = arith.constant 0.000000e+00 : f32
    %17 = vector.broadcast %cst : f32 to vector<8x8xf32>
    %18 = arith.cmpf oeq, %16, %17 : vector<8x8xf32>
    %cst_10 = arith.constant -1.000000e+09 : f32
    %cst_11 = arith.constant 0.000000e+00 : f32
    %19 = vector.broadcast %cst_10 : f32 to vector<8x8xf32>
    %20 = vector.broadcast %cst_11 : f32 to vector<8x8xf32>
    %21 = arith.select %18, %19, %20 : vector<8x8xi1>, vector<8x8xf32>
    %c0_12 = arith.constant 0 : index
    %c0_13 = arith.constant 0 : index
    %c0_14 = arith.constant 0 : index
    %22 = vector.load %arg4[%c0_12, %c0_13, %c0_14] : memref<1x8x8xf32, #tpu.memory_space<vmem>>, vector<1x8x8xf32>
    %23 = vector.shape_cast %22 : vector<1x8x8xf32> to vector<8x8xf32>
    %cst_15 = arith.constant 0.000000e+00 : f32
    %24 = vector.broadcast %cst_15 : f32 to vector<8x8xf32>
    %25 = arith.cmpf oeq, %23, %24 : vector<8x8xf32>
    %cst_16 = arith.constant -1.000000e+09 : f32
    %cst_17 = arith.constant 0.000000e+00 : f32
    %26 = vector.broadcast %cst_16 : f32 to vector<8x8xf32>
    %27 = vector.broadcast %cst_17 : f32 to vector<8x8xf32>
    %28 = arith.select %25, %26, %27 : vector<8x8xi1>, vector<8x8xf32>
    %29 = arith.truncf %1 : vector<8x32xf32> to vector<8x32xbf16>
    %c0_18 = arith.constant 0 : index
    %c0_19 = arith.constant 0 : index
    %30 = vector.load %arg5[%c0_18, %c0_19] : memref<32x96xbf16, #tpu.memory_space<vmem>>, vector<32x96xbf16>
    %cst_20 = arith.constant dense<0.000000e+00> : vector<8x96xf32>
    %31 = tpu.matmul %29, %30, %cst_20 {dimension_numbers = #tpu.dot_dimension_numbers<[1], [0], [0], [1], [0, 0, 1, 1], [], []>} : vector<8x32xbf16>, vector<32x96xbf16>, vector<8x96xf32> -> vector<8x96xf32>
    %c0_21 = arith.constant 0 : index
    %c0_22 = arith.constant 0 : index
    %32 = vector.load %arg6[%c0_21, %c0_22] : memref<1x96xf32, #tpu.memory_space<vmem>>, vector<1x96xf32>
    %33 = vector.broadcast %32 : vector<1x96xf32> to vector<8x96xf32>
    %34 = arith.addf %31, %33 : vector<8x96xf32>
    %35 = vector.extract_strided_slice %34 {offsets = [0, 0], sizes = [8, 32], strides = [1, 1]} : vector<8x96xf32> to vector<8x32xf32>
    %36 = vector.extract_strided_slice %34 {offsets = [0, 32], sizes = [8, 32], strides = [1, 1]} : vector<8x96xf32> to vector<8x32xf32>
    %37 = vector.extract_strided_slice %34 {offsets = [0, 64], sizes = [8, 32], strides = [1, 1]} : vector<8x96xf32> to vector<8x32xf32>
    %c0_23 = arith.constant 0 : index
    %c0_24 = arith.constant 0 : index
    %c0_25 = arith.constant 0 : index
    %38 = vector.load %arg7[%c0_23, %c0_24, %c0_25] : memref<4x8x32xbf16, #tpu.memory_space<vmem>>, vector<4x8x32xbf16>
    %cst_26 = arith.constant 0.353553385 : f32
    %39 = vector.broadcast %cst_26 : f32 to vector<8x32xf32>
    %40 = arith.mulf %35, %39 : vector<8x32xf32>
    %41 = vector.shape_cast %40 : vector<8x32xf32> to vector<8x4x8xf32>
    %42 = tpu.transpose %41, [1, 0, 2] : vector<8x4x8xf32> -> vector<4x8x8xf32>
    %43 = arith.truncf %42 : vector<4x8x8xf32> to vector<4x8x8xbf16>
    %44 = vector.shape_cast %36 : vector<8x32xf32> to vector<8x4x8xf32>
    %45 = tpu.transpose %44, [1, 0, 2] : vector<8x4x8xf32> -> vector<4x8x8xf32>
    %46 = arith.truncf %45 : vector<4x8x8xf32> to vector<4x8x8xbf16>
    %47 = vector.shape_cast %37 : vector<8x32xf32> to vector<8x4x8xf32>
    %48 = tpu.transpose %47, [1, 0, 2] : vector<8x4x8xf32> -> vector<4x8x8xf32>
    %49 = arith.truncf %48 : vector<4x8x8xf32> to vector<4x8x8xbf16>
    "tpu.trace_start"() <{level = 10 : i32, message = "hqd,hkd->hqk"}> : () -> ()
    %cst_27 = arith.constant dense<0.000000e+00> : vector<4x8x8xf32>
    %50 = tpu.matmul %43, %46, %cst_27 {dimension_numbers = #tpu.dot_dimension_numbers<[2], [2], [1], [1], [0, 0, 0, 1, 1, 1], [0], [0]>} : vector<4x8x8xbf16>, vector<4x8x8xbf16>, vector<4x8x8xf32> -> vector<4x8x8xf32>
    "tpu.trace_stop"() : () -> ()
    %51 = vector.shape_cast %21 : vector<8x8xf32> to vector<1x8x8xf32>
    %52 = vector.broadcast %51 : vector<1x8x8xf32> to vector<4x8x8xf32>
    %53 = arith.addf %50, %52 : vector<4x8x8xf32>
    %cst_28 = arith.constant dense<0xFF800000> : vector<4x8xf32>
    %54 = vector.multi_reduction <maximumf>, %53, %cst_28 [2] : vector<4x8x8xf32> to vector<4x8xf32>
    %55 = vector.shape_cast %54 : vector<4x8xf32> to vector<4x8x1xf32>
    %56 = vector.broadcast %55 : vector<4x8x1xf32> to vector<4x8x8xf32>
    %57 = arith.subf %53, %56 : vector<4x8x8xf32>
    %58 = math.exp %57 : vector<4x8x8xf32>
    %cst_29 = arith.constant dense<0.000000e+00> : vector<4x8xf32>
    %59 = vector.multi_reduction <add>, %58, %cst_29 [2] : vector<4x8x8xf32> to vector<4x8xf32>
    %60 = vector.shape_cast %59 : vector<4x8xf32> to vector<4x8x1xf32>
    %61 = tpu.reciprocal %60 {approx = true} : vector<4x8x1xf32> -> vector<4x8x1xf32>
    %62 = vector.broadcast %61 : vector<4x8x1xf32> to vector<4x8x8xf32>
    %63 = arith.mulf %58, %62 : vector<4x8x8xf32>
    %64 = arith.truncf %63 : vector<4x8x8xf32> to vector<4x8x8xbf16>
    "tpu.trace_start"() <{level = 10 : i32, message = "hqk,hkd->hqd"}> : () -> ()
    %cst_30 = arith.constant dense<0.000000e+00> : vector<4x8x8xf32>
    %65 = tpu.matmul %64, %49, %cst_30 {dimension_numbers = #tpu.dot_dimension_numbers<[2], [1], [1], [2], [0, 0, 0, 1, 1, 2], [0], [0]>} : vector<4x8x8xbf16>, vector<4x8x8xbf16>, vector<4x8x8xf32> -> vector<4x8x8xf32>
    "tpu.trace_stop"() : () -> ()
    %66 = arith.truncf %65 : vector<4x8x8xf32> to vector<4x8x8xbf16>
    "tpu.trace_start"() <{level = 10 : i32, message = "hqd,hdo->hqo"}> : () -> ()
    %cst_31 = arith.constant dense<0.000000e+00> : vector<4x8x32xf32>
    %67 = tpu.matmul %66, %38, %cst_31 {dimension_numbers = #tpu.dot_dimension_numbers<[2], [1], [1], [2], [0, 0, 0, 1, 1, 2], [0], [0]>} : vector<4x8x8xbf16>, vector<4x8x32xbf16>, vector<4x8x32xf32> -> vector<4x8x32xf32>
    "tpu.trace_stop"() : () -> ()
    %cst_32 = arith.constant dense<0.000000e+00> : vector<8x32xf32>
    %68 = vector.multi_reduction <add>, %67, %cst_32 [0] : vector<4x8x32xf32> to vector<8x32xf32>
    %69 = vector.broadcast %5 : vector<1x32xf32> to vector<8x32xf32>
    %70 = arith.addf %68, %69 : vector<8x32xf32>
    %71 = arith.addf %1, %70 : vector<8x32xf32>
    %cst_33 = arith.constant dense<0.000000e+00> : vector<8xf32>
    %72 = vector.multi_reduction <add>, %71, %cst_33 [1] : vector<8x32xf32> to vector<8xf32>
    %73 = vector.shape_cast %72 : vector<8xf32> to vector<8x1xf32>
    %cst_34 = arith.constant 3.200000e+01 : f32
    %74 = vector.broadcast %cst_34 : f32 to vector<8x1xf32>
    %75 = arith.divf %73, %74 : vector<8x1xf32>
    %76 = vector.broadcast %75 : vector<8x1xf32> to vector<8x32xf32>
    %77 = arith.subf %71, %76 : vector<8x32xf32>
    %78 = arith.mulf %77, %77 : vector<8x32xf32>
    %cst_35 = arith.constant dense<0.000000e+00> : vector<8xf32>
    %79 = vector.multi_reduction <add>, %78, %cst_35 [1] : vector<8x32xf32> to vector<8xf32>
    %80 = vector.shape_cast %79 : vector<8xf32> to vector<8x1xf32>
    %cst_36 = arith.constant 3.200000e+01 : f32
    %81 = vector.broadcast %cst_36 : f32 to vector<8x1xf32>
    %82 = arith.divf %80, %81 : vector<8x1xf32>
    %cst_37 = arith.constant 9.99999974E-6 : f32
    %83 = vector.broadcast %cst_37 : f32 to vector<8x1xf32>
    %84 = arith.addf %82, %83 : vector<8x1xf32>
    %85 = math.rsqrt %84 : vector<8x1xf32>
    %86 = vector.broadcast %85 : vector<8x1xf32> to vector<8x32xf32>
    %87 = arith.mulf %77, %86 : vector<8x32xf32>
    %88 = vector.broadcast %9 : vector<1x32xf32> to vector<8x32xf32>
    %89 = arith.mulf %87, %88 : vector<8x32xf32>
    %90 = vector.broadcast %10 : vector<1x32xf32> to vector<8x32xf32>
    %91 = arith.addf %89, %90 : vector<8x32xf32>
    %92 = arith.truncf %91 : vector<8x32xf32> to vector<8x32xbf16>
    %c0_38 = arith.constant 0 : index
    %c0_39 = arith.constant 0 : index
    %93 = vector.load %arg8[%c0_38, %c0_39] : memref<32x32xbf16, #tpu.memory_space<vmem>>, vector<32x32xbf16>
    %cst_40 = arith.constant dense<0.000000e+00> : vector<8x32xf32>
    %94 = tpu.matmul %92, %93, %cst_40 {dimension_numbers = #tpu.dot_dimension_numbers<[1], [0], [0], [1], [0, 0, 1, 1], [], []>} : vector<8x32xbf16>, vector<32x32xbf16>, vector<8x32xf32> -> vector<8x32xf32>
    %95 = vector.broadcast %6 : vector<1x32xf32> to vector<8x32xf32>
    %96 = arith.addf %94, %95 : vector<8x32xf32>
    %97 = arith.truncf %3 : vector<8x32xf32> to vector<8x32xbf16>
    %c0_41 = arith.constant 0 : index
    %c0_42 = arith.constant 0 : index
    %98 = vector.load %arg9[%c0_41, %c0_42] : memref<32x64xbf16, #tpu.memory_space<vmem>>, vector<32x64xbf16>
    %cst_43 = arith.constant dense<0.000000e+00> : vector<8x64xf32>
    %99 = tpu.matmul %97, %98, %cst_43 {dimension_numbers = #tpu.dot_dimension_numbers<[1], [0], [0], [1], [0, 0, 1, 1], [], []>} : vector<8x32xbf16>, vector<32x64xbf16>, vector<8x64xf32> -> vector<8x64xf32>
    %c0_44 = arith.constant 0 : index
    %c0_45 = arith.constant 0 : index
    %100 = vector.load %arg10[%c0_44, %c0_45] : memref<1x64xf32, #tpu.memory_space<vmem>>, vector<1x64xf32>
    %101 = vector.broadcast %100 : vector<1x64xf32> to vector<8x64xf32>
    %102 = arith.addf %99, %101 : vector<8x64xf32>
    %103 = vector.extract_strided_slice %102 {offsets = [0, 0], sizes = [8, 32], strides = [1, 1]} : vector<8x64xf32> to vector<8x32xf32>
    %104 = vector.extract_strided_slice %102 {offsets = [0, 32], sizes = [8, 32], strides = [1, 1]} : vector<8x64xf32> to vector<8x32xf32>
    %c0_46 = arith.constant 0 : index
    %c0_47 = arith.constant 0 : index
    %c0_48 = arith.constant 0 : index
    %105 = vector.load %arg11[%c0_46, %c0_47, %c0_48] : memref<4x8x32xbf16, #tpu.memory_space<vmem>>, vector<4x8x32xbf16>
    %cst_49 = arith.constant 0.353553385 : f32
    %106 = vector.broadcast %cst_49 : f32 to vector<8x32xf32>
    %107 = arith.mulf %96, %106 : vector<8x32xf32>
    %108 = vector.shape_cast %107 : vector<8x32xf32> to vector<8x4x8xf32>
    %109 = tpu.transpose %108, [1, 0, 2] : vector<8x4x8xf32> -> vector<4x8x8xf32>
    %110 = arith.truncf %109 : vector<4x8x8xf32> to vector<4x8x8xbf16>
    %111 = vector.shape_cast %103 : vector<8x32xf32> to vector<8x4x8xf32>
    %112 = tpu.transpose %111, [1, 0, 2] : vector<8x4x8xf32> -> vector<4x8x8xf32>
    %113 = arith.truncf %112 : vector<4x8x8xf32> to vector<4x8x8xbf16>
    %114 = vector.shape_cast %104 : vector<8x32xf32> to vector<8x4x8xf32>
    %115 = tpu.transpose %114, [1, 0, 2] : vector<8x4x8xf32> -> vector<4x8x8xf32>
    %116 = arith.truncf %115 : vector<4x8x8xf32> to vector<4x8x8xbf16>
    "tpu.trace_start"() <{level = 10 : i32, message = "hqd,hkd->hqk"}> : () -> ()
    %cst_50 = arith.constant dense<0.000000e+00> : vector<4x8x8xf32>
    %117 = tpu.matmul %110, %113, %cst_50 {dimension_numbers = #tpu.dot_dimension_numbers<[2], [2], [1], [1], [0, 0, 0, 1, 1, 1], [0], [0]>} : vector<4x8x8xbf16>, vector<4x8x8xbf16>, vector<4x8x8xf32> -> vector<4x8x8xf32>
    "tpu.trace_stop"() : () -> ()
    %118 = vector.shape_cast %28 : vector<8x8xf32> to vector<1x8x8xf32>
    %119 = vector.broadcast %118 : vector<1x8x8xf32> to vector<4x8x8xf32>
    %120 = arith.addf %117, %119 : vector<4x8x8xf32>
    %cst_51 = arith.constant dense<0xFF800000> : vector<4x8xf32>
    %121 = vector.multi_reduction <maximumf>, %120, %cst_51 [2] : vector<4x8x8xf32> to vector<4x8xf32>
    %122 = vector.shape_cast %121 : vector<4x8xf32> to vector<4x8x1xf32>
    %123 = vector.broadcast %122 : vector<4x8x1xf32> to vector<4x8x8xf32>
    %124 = arith.subf %120, %123 : vector<4x8x8xf32>
    %125 = math.exp %124 : vector<4x8x8xf32>
    %cst_52 = arith.constant dense<0.000000e+00> : vector<4x8xf32>
    %126 = vector.multi_reduction <add>, %125, %cst_52 [2] : vector<4x8x8xf32> to vector<4x8xf32>
    %127 = vector.shape_cast %126 : vector<4x8xf32> to vector<4x8x1xf32>
    %128 = tpu.reciprocal %127 {approx = true} : vector<4x8x1xf32> -> vector<4x8x1xf32>
    %129 = vector.broadcast %128 : vector<4x8x1xf32> to vector<4x8x8xf32>
    %130 = arith.mulf %125, %129 : vector<4x8x8xf32>
    %131 = arith.truncf %130 : vector<4x8x8xf32> to vector<4x8x8xbf16>
    "tpu.trace_start"() <{level = 10 : i32, message = "hqk,hkd->hqd"}> : () -> ()
    %cst_53 = arith.constant dense<0.000000e+00> : vector<4x8x8xf32>
    %132 = tpu.matmul %131, %116, %cst_53 {dimension_numbers = #tpu.dot_dimension_numbers<[2], [1], [1], [2], [0, 0, 0, 1, 1, 2], [0], [0]>} : vector<4x8x8xbf16>, vector<4x8x8xbf16>, vector<4x8x8xf32> -> vector<4x8x8xf32>
    "tpu.trace_stop"() : () -> ()
    %133 = arith.truncf %132 : vector<4x8x8xf32> to vector<4x8x8xbf16>
    "tpu.trace_start"() <{level = 10 : i32, message = "hqd,hdo->hqo"}> : () -> ()
    %cst_54 = arith.constant dense<0.000000e+00> : vector<4x8x32xf32>
    %134 = tpu.matmul %133, %105, %cst_54 {dimension_numbers = #tpu.dot_dimension_numbers<[2], [1], [1], [2], [0, 0, 0, 1, 1, 2], [0], [0]>} : vector<4x8x8xbf16>, vector<4x8x32xbf16>, vector<4x8x32xf32> -> vector<4x8x32xf32>
    "tpu.trace_stop"() : () -> ()
    %cst_55 = arith.constant dense<0.000000e+00> : vector<8x32xf32>
    %135 = vector.multi_reduction <add>, %134, %cst_55 [0] : vector<4x8x32xf32> to vector<8x32xf32>
    %136 = vector.broadcast %7 : vector<1x32xf32> to vector<8x32xf32>
    %137 = arith.addf %135, %136 : vector<8x32xf32>
    %138 = arith.addf %91, %137 : vector<8x32xf32>
    %cst_56 = arith.constant dense<0.000000e+00> : vector<8xf32>
    %139 = vector.multi_reduction <add>, %138, %cst_56 [1] : vector<8x32xf32> to vector<8xf32>
    %140 = vector.shape_cast %139 : vector<8xf32> to vector<8x1xf32>
    %cst_57 = arith.constant 3.200000e+01 : f32
    %141 = vector.broadcast %cst_57 : f32 to vector<8x1xf32>
    %142 = arith.divf %140, %141 : vector<8x1xf32>
    %143 = vector.broadcast %142 : vector<8x1xf32> to vector<8x32xf32>
    %144 = arith.subf %138, %143 : vector<8x32xf32>
    %145 = arith.mulf %144, %144 : vector<8x32xf32>
    %cst_58 = arith.constant dense<0.000000e+00> : vector<8xf32>
    %146 = vector.multi_reduction <add>, %145, %cst_58 [1] : vector<8x32xf32> to vector<8xf32>
    %147 = vector.shape_cast %146 : vector<8xf32> to vector<8x1xf32>
    %cst_59 = arith.constant 3.200000e+01 : f32
    %148 = vector.broadcast %cst_59 : f32 to vector<8x1xf32>
    %149 = arith.divf %147, %148 : vector<8x1xf32>
    %cst_60 = arith.constant 9.99999974E-6 : f32
    %150 = vector.broadcast %cst_60 : f32 to vector<8x1xf32>
    %151 = arith.addf %149, %150 : vector<8x1xf32>
    %152 = math.rsqrt %151 : vector<8x1xf32>
    %153 = vector.broadcast %152 : vector<8x1xf32> to vector<8x32xf32>
    %154 = arith.mulf %144, %153 : vector<8x32xf32>
    %155 = vector.broadcast %11 : vector<1x32xf32> to vector<8x32xf32>
    %156 = arith.mulf %154, %155 : vector<8x32xf32>
    %157 = vector.broadcast %12 : vector<1x32xf32> to vector<8x32xf32>
    %158 = arith.addf %156, %157 : vector<8x32xf32>
    %159 = arith.truncf %158 : vector<8x32xf32> to vector<8x32xbf16>
    %c0_61 = arith.constant 0 : index
    %c0_62 = arith.constant 0 : index
    %160 = vector.load %arg12[%c0_61, %c0_62] : memref<32x64xbf16, #tpu.memory_space<vmem>>, vector<32x64xbf16>
    %cst_63 = arith.constant dense<0.000000e+00> : vector<8x64xf32>
    %161 = tpu.matmul %159, %160, %cst_63 {dimension_numbers = #tpu.dot_dimension_numbers<[1], [0], [0], [1], [0, 0, 1, 1], [], []>} : vector<8x32xbf16>, vector<32x64xbf16>, vector<8x64xf32> -> vector<8x64xf32>
    %c0_64 = arith.constant 0 : index
    %c0_65 = arith.constant 0 : index
    %162 = vector.load %arg13[%c0_64, %c0_65] : memref<1x64xf32, #tpu.memory_space<vmem>>, vector<1x64xf32>
    %163 = vector.broadcast %162 : vector<1x64xf32> to vector<8x64xf32>
    %164 = arith.addf %161, %163 : vector<8x64xf32>
    %cst_66 = arith.constant 0.000000e+00 : f32
    %165 = vector.broadcast %cst_66 : f32 to vector<8x64xf32>
    %166 = arith.maximumf %164, %165 : vector<8x64xf32>
    %167 = arith.truncf %166 : vector<8x64xf32> to vector<8x64xbf16>
    %c0_67 = arith.constant 0 : index
    %c0_68 = arith.constant 0 : index
    %168 = vector.load %arg14[%c0_67, %c0_68] : memref<64x32xbf16, #tpu.memory_space<vmem>>, vector<64x32xbf16>
    %cst_69 = arith.constant dense<0.000000e+00> : vector<8x32xf32>
    %169 = tpu.matmul %167, %168, %cst_69 {dimension_numbers = #tpu.dot_dimension_numbers<[1], [0], [0], [1], [0, 0, 1, 1], [], []>} : vector<8x64xbf16>, vector<64x32xbf16>, vector<8x32xf32> -> vector<8x32xf32>
    %170 = vector.broadcast %8 : vector<1x32xf32> to vector<8x32xf32>
    %171 = arith.addf %169, %170 : vector<8x32xf32>
    %172 = arith.addf %158, %171 : vector<8x32xf32>
    %cst_70 = arith.constant dense<0.000000e+00> : vector<8xf32>
    %173 = vector.multi_reduction <add>, %172, %cst_70 [1] : vector<8x32xf32> to vector<8xf32>
    %174 = vector.shape_cast %173 : vector<8xf32> to vector<8x1xf32>
    %cst_71 = arith.constant 3.200000e+01 : f32
    %175 = vector.broadcast %cst_71 : f32 to vector<8x1xf32>
    %176 = arith.divf %174, %175 : vector<8x1xf32>
    %177 = vector.broadcast %176 : vector<8x1xf32> to vector<8x32xf32>
    %178 = arith.subf %172, %177 : vector<8x32xf32>
    %179 = arith.mulf %178, %178 : vector<8x32xf32>
    %cst_72 = arith.constant dense<0.000000e+00> : vector<8xf32>
    %180 = vector.multi_reduction <add>, %179, %cst_72 [1] : vector<8x32xf32> to vector<8xf32>
    %181 = vector.shape_cast %180 : vector<8xf32> to vector<8x1xf32>
    %cst_73 = arith.constant 3.200000e+01 : f32
    %182 = vector.broadcast %cst_73 : f32 to vector<8x1xf32>
    %183 = arith.divf %181, %182 : vector<8x1xf32>
    %cst_74 = arith.constant 9.99999974E-6 : f32
    %184 = vector.broadcast %cst_74 : f32 to vector<8x1xf32>
    %185 = arith.addf %183, %184 : vector<8x1xf32>
    %186 = math.rsqrt %185 : vector<8x1xf32>
    %187 = vector.broadcast %186 : vector<8x1xf32> to vector<8x32xf32>
    %188 = arith.mulf %178, %187 : vector<8x32xf32>
    %189 = vector.broadcast %13 : vector<1x32xf32> to vector<8x32xf32>
    %190 = arith.mulf %188, %189 : vector<8x32xf32>
    %191 = vector.broadcast %14 : vector<1x32xf32> to vector<8x32xf32>
    %192 = arith.addf %190, %191 : vector<8x32xf32>
    %c0_75 = arith.constant 0 : index
    %c0_76 = arith.constant 0 : index
    %c0_77 = arith.constant 0 : index
    %193 = vector.load %arg16[%c0_75, %c0_76, %c0_77] : memref<1x8x32xf32, #tpu.memory_space<vmem>>, vector<1x8x32xf32>
    %194 = vector.shape_cast %193 : vector<1x8x32xf32> to vector<8x32xf32>
    %195 = vector.shape_cast %192 : vector<8x32xf32> to vector<1x8x32xf32>
    tpu.vector_store %arg16[%c0_75, %c0_76, %c0_77], %195 {strides = array<i32>} : memref<1x8x32xf32, #tpu.memory_space<vmem>>, vector<1x8x32xf32>,
    return
  }
  func.func @transform_0(%arg0: i32) -> (i32, i32, i32) {
    %c0_i32 = arith.constant 0 : i32
    %c0_i32_0 = arith.constant 0 : i32
    %c0_i32_1 = arith.constant 0 : i32
    return %arg0, %c0_i32, %c0_i32_0 : i32, i32, i32
  }
  func.func @transform_1(%arg0: i32) -> (i32, i32, i32) {
    %c0_i32 = arith.constant 0 : i32
    %c0_i32_0 = arith.constant 0 : i32
    %c0_i32_1 = arith.constant 0 : i32
    return %arg0, %c0_i32, %c0_i32_0 : i32, i32, i32
  }
  func.func @transform_2(%arg0: i32) -> (i32, i32, i32) {
    %c0_i32 = arith.constant 0 : i32
    %c0_i32_0 = arith.constant 0 : i32
    %c0_i32_1 = arith.constant 0 : i32
    return %arg0, %c0_i32, %c0_i32_0 : i32, i32, i32
  }
  func.func @transform_3(%arg0: i32) -> (i32, i32, i32) {
    %c0_i32 = arith.constant 0 : i32
    %c0_i32_0 = arith.constant 0 : i32
    %c0_i32_1 = arith.constant 0 : i32
    return %arg0, %c0_i32, %c0_i32_0 : i32, i32, i32
  }
  func.func @transform_4(%arg0: i32) -> (i32, i32) {
    %c0_i32 = arith.constant 0 : i32
    %c0_i32_0 = arith.constant 0 : i32
    %c0_i32_1 = arith.constant 0 : i32
    return %c0_i32, %c0_i32_0 : i32, i32
  }
  func.func @transform_5(%arg0: i32) -> (i32, i32) {
    %c0_i32 = arith.constant 0 : i32
    %c0_i32_0 = arith.constant 0 : i32
    %c0_i32_1 = arith.constant 0 : i32
    return %c0_i32, %c0_i32_0 : i32, i32
  }
  func.func @transform_6(%arg0: i32) -> (i32, i32, i32) {
    %c0_i32 = arith.constant 0 : i32
    %c0_i32_0 = arith.constant 0 : i32
    %c0_i32_1 = arith.constant 0 : i32
    %c0_i32_2 = arith.constant 0 : i32
    return %c0_i32, %c0_i32_0, %c0_i32_1 : i32, i32, i32
  }
  func.func @transform_7(%arg0: i32) -> (i32, i32) {
    %c0_i32 = arith.constant 0 : i32
    %c0_i32_0 = arith.constant 0 : i32
    %c0_i32_1 = arith.constant 0 : i32
    return %c0_i32, %c0_i32_0 : i32, i32
  }
  func.func @transform_8(%arg0: i32) -> (i32, i32) {
    %c0_i32 = arith.constant 0 : i32
    %c0_i32_0 = arith.constant 0 : i32
    %c0_i32_1 = arith.constant 0 : i32
    return %c0_i32, %c0_i32_0 : i32, i32
  }
  func.func @transform_9(%arg0: i32) -> (i32, i32) {
    %c0_i32 = arith.constant 0 : i32
    %c0_i32_0 = arith.constant 0 : i32
    %c0_i32_1 = arith.constant 0 : i32
    return %c0_i32, %c0_i32_0 : i32, i32
  }
  func.func @transform_10(%arg0: i32) -> (i32, i32, i32) {
    %c0_i32 = arith.constant 0 : i32
    %c0_i32_0 = arith.constant 0 : i32
    %c0_i32_1 = arith.constant 0 : i32
    %c0_i32_2 = arith.constant 0 : i32
    return %c0_i32, %c0_i32_0, %c0_i32_1 : i32, i32, i32
  }
  func.func @transform_11(%arg0: i32) -> (i32, i32) {
    %c0_i32 = arith.constant 0 : i32
    %c0_i32_0 = arith.constant 0 : i32
    %c0_i32_1 = arith.constant 0 : i32
    return %c0_i32, %c0_i32_0 : i32, i32
  }
  func.func @transform_12(%arg0: i32) -> (i32, i32) {
    %c0_i32 = arith.constant 0 : i32
    %c0_i32_0 = arith.constant 0 : i32
    %c0_i32_1 = arith.constant 0 : i32
    return %c0_i32, %c0_i32_0 : i32, i32
  }
  func.func @transform_13(%arg0: i32) -> (i32, i32) {
    %c0_i32 = arith.constant 0 : i32
    %c0_i32_0 = arith.constant 0 : i32
    %c0_i32_1 = arith.constant 0 : i32
    return %c0_i32, %c0_i32_0 : i32, i32
  }
  func.func @transform_14(%arg0: i32) -> (i32, i32) {
    %c0_i32 = arith.constant 0 : i32
    %c0_i32_0 = arith.constant 0 : i32
    %c0_i32_1 = arith.constant 0 : i32
    return %c0_i32, %c0_i32_0 : i32, i32
  }
  func.func @transform_15(%arg0: i32) -> (i32, i32, i32) {
    %c0_i32 = arith.constant 0 : i32
    %c0_i32_0 = arith.constant 0 : i32
    %c0_i32_1 = arith.constant 0 : i32
    return %arg0, %c0_i32, %c0_i32_0 : i32, i32, i32
  }
}

</mosaic_0001>

<llo_original>
// kernel: decoder_layer_forward.1
$region0: #{decoder_layer_forward.1}
  #allocation0 [shape = 'u32[]', space=smem, size = 0x4, offset = 0x4, fixed_abs, tag = 'smem constant byte address 0x4 - core index']
  #allocation1 [shape = 'u32[144,128]{1,0:T(1,128)}', space=vmem, size = 0x12000, scoped, tag = 'internal scratch']
  %s0 = inlined_call_operand.vmem [shape: f32[2,8,32], index: 0, kind: input, shape index: {}]
  %s1 = inlined_call_operand.vmem [shape: f32[2,8,32], index: 1, kind: input, shape index: {}]
  %s2 = inlined_call_operand.vmem [shape: f32[2,8,8], index: 2, kind: input, shape index: {}]
  %s3 = inlined_call_operand.vmem [shape: f32[2,8,8], index: 3, kind: input, shape index: {}]
  %s4 = inlined_call_operand.vmem [shape: bf16[32,96], index: 4, kind: input, shape index: {}]
  %s5 = inlined_call_operand.vmem [shape: f32[1,96], index: 5, kind: input, shape index: {}]
  %s6 = inlined_call_operand.vmem [shape: bf16[4,8,32], index: 6, kind: input, shape index: {}]
  %s7 = inlined_call_operand.hbm [shape: bf16[32,32], index: 7, kind: input, shape index: {}]
  %s8 = inlined_call_operand.hbm [shape: bf16[32,64], index: 8, kind: input, shape index: {}]
  %s9 = inlined_call_operand.hbm [shape: f32[1,64], index: 9, kind: input, shape index: {}]
  %s10 = inlined_call_operand.hbm [shape: bf16[4,8,32], index: 10, kind: input, shape index: {}]
  %s11 = inlined_call_operand.hbm [shape: bf16[32,64], index: 11, kind: input, shape index: {}]
  %s12 = inlined_call_operand.hbm [shape: f32[1,64], index: 12, kind: input, shape index: {}]
  %s13 = inlined_call_operand.vmem [shape: bf16[64,32], index: 13, kind: input, shape index: {}]
  %s14 = inlined_call_operand.vmem [shape: f32[10,32], index: 14, kind: input, shape index: {}]
  %s15 = inlined_call_operand.hbm [shape: f32[2,8,32], index: 15, kind: output, shape index: {}]
  %s16 = sld [smem:[#allocation0]]
  $region117: #{decoder_layer_forward.1} parent=0
    _
  %s18 = ssub.s32 1, %s16
  %s19 = scalar_select 0, %s18, %s16
  $region1: #{decoder_layer_forward.1} parent=0
    #allocation2 [shape = 'u8[8192]{0}', space=vmem, size = 0x2000, scoped, tag = 'input window, operand 7, single buffered']
    #allocation3 [shape = 's32[2]{0}', space=sflag, size = 0x8, scoped, tag = 'scoped memory for decoder_layer_forward.1']
    #allocation4 [shape = 's32[2]{0}', space=sflag, size = 0x8, scoped, tag = 'scoped memory for decoder_layer_forward.1']
    #allocation5 [shape = 'u8[8192]{0}', space=vmem, size = 0x2000, scoped, tag = 'input window, operand 8, single buffered']
    #allocation6 [shape = 's32[1]{0}', space=sflag, size = 0x4, scoped, tag = 'scoped memory for decoder_layer_forward.1']
    #allocation7 [shape = 'u8[512]{0}', space=vmem, size = 0x400, scoped, tag = 'input window, operand 9, single buffered']
    #allocation8 [shape = 'u8[8192]{0}', space=vmem, size = 0x2000, scoped, tag = 'input window, operand 10, single buffered']
    #allocation9 [shape = 's32[1]{0}', space=sflag, size = 0x4, scoped, tag = 'scoped memory for decoder_layer_forward.1']
    #allocation10 [shape = 'u8[8192]{0}', space=vmem, size = 0x2000, scoped, tag = 'input window, operand 11, single buffered']
    #allocation11 [shape = 'u8[512]{0}', space=vmem, size = 0x400, scoped, tag = 'input window, operand 12, single buffered']
    #allocation12 [shape = 's32[1]{0}', space=sflag, size = 0x4, scoped, tag = 'scoped memory for decoder_layer_forward.1']
    #allocation13 [shape = 'u8[8192]{0}', space=vmem, size = 0x2000, scoped, tag = 'output window, operand 0']
    %20 = vsyncpa [#allocation3], 0
    %21 = vsyncpa [#allocation6], 0
    %22 = vsyncpa [#allocation9], 0
    %23 = vsyncpa [#allocation12], 0
    %24 = vsyncpa [#allocation4], 0
    %s25 = scalar_lea.sflag [#allocation4], 1
    %26 = vsyncpa %s25, 0
    loop: start=0, step=1, limit=4
    $region2: #{decoder_layer_forward.1} parent=1 // loop_pre_header
      _
    $region3: #{decoder_layer_forward.1} parent=1 // loop_header
      %s28 = sphi 0, %s32
      %p29 = scmp.ge.s32.totalorder %s28, 4
      %s38 = sphi 0, %s40
      %s41 = sphi 0, %s38
      %s42 = sphi 0, %s41
      %s58 = sphi 0, %s42
      %s64 = sphi 0, %s66
      %s67 = sphi 0, %s64
      %s68 = sphi 0, %s67
      %s84 = sphi 0, %s68
      %s90 = sphi 0, %s92
      %s93 = sphi 0, %s90
      %s94 = sphi 0, %s93
      %s110 = sphi 0, %s94
      %s116 = sphi 0, %s118
      %s119 = sphi 0, %s116
      %s120 = sphi 0, %s119
      %s136 = sphi 0, %s120
      %s140 = sphi 0, %s140
      %s142 = sphi 0, %s140
      %s143 = sphi 0, %s142
      %s157 = sphi 0, %s143
      %s161 = sphi 0, %s161
      %s163 = sphi 0, %s161
      %s164 = sphi 0, %s163
      %s178 = sphi 0, %s164
      %s182 = sphi 0, %s182
      %s184 = sphi 0, %s182
      %s185 = sphi 0, %s184
      %s199 = sphi 0, %s185
      %s203 = sphi 0, %s203
      %s205 = sphi 0, %s203
      %s206 = sphi 0, %s205
      %s220 = sphi 0, %s206
      %s224 = sphi 0, %s224
      %s226 = sphi 0, %s224
      %s227 = sphi 0, %s226
      %s241 = sphi 0, %s227
      %s245 = sphi 0, %s245
      %s247 = sphi 0, %s245
      %s248 = sphi 0, %s247
      %s262 = sphi 0, %s248
      %s266 = sphi 0, %s266
      %s268 = sphi 0, %s266
      %s269 = sphi 0, %s268
      %s283 = sphi 0, %s269
      %s287 = sphi 0, %s287
      %s289 = sphi 0, %s287
      %s290 = sphi 0, %s289
      %s304 = sphi 0, %s290
      %s308 = sphi 0, %s308
      %s310 = sphi 0, %s308
      %s311 = sphi 0, %s310
      %s325 = sphi 0, %s311
      %s329 = sphi 0, %s329
      %s331 = sphi 0, %s329
      %s332 = sphi 0, %s331
      %s346 = sphi 0, %s332
      %s350 = sphi 0, %s350
      %s352 = sphi 0, %s350
      %s353 = sphi 0, %s352
      %s367 = sphi 0, %s353
      %s373 = sphi 0, %s375
      %s376 = sphi 0, %s373
      %s377 = sphi 0, %s376
      %s393 = sphi 0, %s377
    $region4: #{decoder_layer_forward.1} parent=1 // loop_header_branch
      %31 = sbr.rel (%p29) target = $region8
    $region5: #{decoder_layer_forward.1} parent=1 // loop_body
      %s33 = ssub.s32 %s28, 1
      %s34 = ssub.s32 %s28, 2
      %s35 = sadd.s32 %s28, 1
      %s36 = ssub.s32 %s28, %s35
      %p37 = scmp.eq.s32.totalorder %s36, 0
      %s39 = sadd.s32 %s38, 1
      %s40 = scalar_select %p37, %s38, %s39
      %p43 = pneg %p37
      %p44 = scmp.eq.s32.totalorder %s28, 1
      %p45 = por %p43, %p44
      %p46 = scmp.ne.s32.totalorder %s38, %s41
      %p47 = scmp.eq.s32.totalorder %s28, 0
      %p48 = por %p46, %p47
      %p49 = scmp.ne.s32.totalorder %s38, %s41
      %p50 = scmp.eq.s32.totalorder %s33, 1
      %p51 = por %p49, %p50
      %p52 = scmp.ne.s32.totalorder %s41, %s42
      %p53 = scmp.eq.s32.totalorder %s33, 0
      %p54 = por %p52, %p53
      %p55 = scmp.ne.s32.totalorder %s41, %s42
      %p56 = scmp.eq.s32.totalorder %s34, 1
      %p57 = por %p55, %p56
      %p59 = scmp.ne.s32.totalorder %s42, %s58
      %p60 = scmp.eq.s32.totalorder %s34, 0
      %p61 = por %p59, %p60
      %s62 = ssub.s32 %s28, %s35
      %p63 = scmp.eq.s32.totalorder %s62, 0
      %s65 = sadd.s32 %s64, 1
      %s66 = scalar_select %p63, %s64, %s65
      %p69 = pneg %p63
      %p70 = scmp.eq.s32.totalorder %s28, 1
      %p71 = por %p69, %p70
      %p72 = scmp.ne.s32.totalorder %s64, %s67
      %p73 = scmp.eq.s32.totalorder %s28, 0
      %p74 = por %p72, %p73
      %p75 = scmp.ne.s32.totalorder %s64, %s67
      %p76 = scmp.eq.s32.totalorder %s33, 1
      %p77 = por %p75, %p76
      %p78 = scmp.ne.s32.totalorder %s67, %s68
      %p79 = scmp.eq.s32.totalorder %s33, 0
      %p80 = por %p78, %p79
      %p81 = scmp.ne.s32.totalorder %s67, %s68
      %p82 = scmp.eq.s32.totalorder %s34, 1
      %p83 = por %p81, %p82
      %p85 = scmp.ne.s32.totalorder %s68, %s84
      %p86 = scmp.eq.s32.totalorder %s34, 0
      %p87 = por %p85, %p86
      %s88 = ssub.s32 %s28, %s35
      %p89 = scmp.eq.s32.totalorder %s88, 0
      %s91 = sadd.s32 %s90, 1
      %s92 = scalar_select %p89, %s90, %s91
      %p95 = pneg %p89
      %p96 = scmp.eq.s32.totalorder %s28, 1
      %p97 = por %p95, %p96
      %p98 = scmp.ne.s32.totalorder %s90, %s93
      %p99 = scmp.eq.s32.totalorder %s28, 0
      %p100 = por %p98, %p99
      %p101 = scmp.ne.s32.totalorder %s90, %s93
      %p102 = scmp.eq.s32.totalorder %s33, 1
      %p103 = por %p101, %p102
      %p104 = scmp.ne.s32.totalorder %s93, %s94
      %p105 = scmp.eq.s32.totalorder %s33, 0
      %p106 = por %p104, %p105
      %p107 = scmp.ne.s32.totalorder %s93, %s94
      %p108 = scmp.eq.s32.totalorder %s34, 1
      %p109 = por %p107, %p108
      %p111 = scmp.ne.s32.totalorder %s94, %s110
      %p112 = scmp.eq.s32.totalorder %s34, 0
      %p113 = por %p111, %p112
      %s114 = ssub.s32 %s28, %s35
      %p115 = scmp.eq.s32.totalorder %s114, 0
      %s117 = sadd.s32 %s116, 1
      %s118 = scalar_select %p115, %s116, %s117
      %p121 = pneg %p115
      %p122 = scmp.eq.s32.totalorder %s28, 1
      %p123 = por %p121, %p122
      %p124 = scmp.ne.s32.totalorder %s116, %s119
      %p125 = scmp.eq.s32.totalorder %s28, 0
      %p126 = por %p124, %p125
      %p127 = scmp.ne.s32.totalorder %s116, %s119
      %p128 = scmp.eq.s32.totalorder %s33, 1
      %p129 = por %p127, %p128
      %p130 = scmp.ne.s32.totalorder %s119, %s120
      %p131 = scmp.eq.s32.totalorder %s33, 0
      %p132 = por %p130, %p131
      %p133 = scmp.ne.s32.totalorder %s119, %s120
      %p134 = scmp.eq.s32.totalorder %s34, 1
      %p135 = por %p133, %p134
      %p137 = scmp.ne.s32.totalorder %s120, %s136
      %p138 = scmp.eq.s32.totalorder %s34, 0
      %p139 = por %p137, %p138
      %s141 = sadd.s32 %s140, 1
      %p144 = scmp.eq.s32.totalorder %s28, 1
      %p145 = scmp.ne.s32.totalorder %s140, %s142
      %p146 = scmp.eq.s32.totalorder %s28, 0
      %p147 = por %p145, %p146
      %p148 = scmp.ne.s32.totalorder %s140, %s142
      %p149 = scmp.eq.s32.totalorder %s33, 1
      %p150 = por %p148, %p149
      %p151 = scmp.ne.s32.totalorder %s142, %s143
      %p152 = scmp.eq.s32.totalorder %s33, 0
      %p153 = por %p151, %p152
      %p154 = scmp.ne.s32.totalorder %s142, %s143
      %p155 = scmp.eq.s32.totalorder %s34, 1
      %p156 = por %p154, %p155
      %p158 = scmp.ne.s32.totalorder %s143, %s157
      %p159 = scmp.eq.s32.totalorder %s34, 0
      %p160 = por %p158, %p159
      %s162 = sadd.s32 %s161, 1
      %p165 = scmp.eq.s32.totalorder %s28, 1
      %p166 = scmp.ne.s32.totalorder %s161, %s163
      %p167 = scmp.eq.s32.totalorder %s28, 0
      %p168 = por %p166, %p167
      %p169 = scmp.ne.s32.totalorder %s161, %s163
      %p170 = scmp.eq.s32.totalorder %s33, 1
      %p171 = por %p169, %p170
      %p172 = scmp.ne.s32.totalorder %s163, %s164
      %p173 = scmp.eq.s32.totalorder %s33, 0
      %p174 = por %p172, %p173
      %p175 = scmp.ne.s32.totalorder %s163, %s164
      %p176 = scmp.eq.s32.totalorder %s34, 1
      %p177 = por %p175, %p176
      %p179 = scmp.ne.s32.totalorder %s164, %s178
      %p180 = scmp.eq.s32.totalorder %s34, 0
      %p181 = por %p179, %p180
      %s183 = sadd.s32 %s182, 1
      %p186 = scmp.eq.s32.totalorder %s28, 1
      %p187 = scmp.ne.s32.totalorder %s182, %s184
      %p188 = scmp.eq.s32.totalorder %s28, 0
      %p189 = por %p187, %p188
      %p190 = scmp.ne.s32.totalorder %s182, %s184
      %p191 = scmp.eq.s32.totalorder %s33, 1
      %p192 = por %p190, %p191
      %p193 = scmp.ne.s32.totalorder %s184, %s185
      %p194 = scmp.eq.s32.totalorder %s33, 0
      %p195 = por %p193, %p194
      %p196 = scmp.ne.s32.totalorder %s184, %s185
      %p197 = scmp.eq.s32.totalorder %s34, 1
      %p198 = por %p196, %p197
      %p200 = scmp.ne.s32.totalorder %s185, %s199
      %p201 = scmp.eq.s32.totalorder %s34, 0
      %p202 = por %p200, %p201
      %s204 = sadd.s32 %s203, 1
      %p207 = scmp.eq.s32.totalorder %s28, 1
      %p208 = scmp.ne.s32.totalorder %s203, %s205
      %p209 = scmp.eq.s32.totalorder %s28, 0
      %p210 = por %p208, %p209
      %p211 = scmp.ne.s32.totalorder %s203, %s205
      %p212 = scmp.eq.s32.totalorder %s33, 1
      %p213 = por %p211, %p212
      %p214 = scmp.ne.s32.totalorder %s205, %s206
      %p215 = scmp.eq.s32.totalorder %s33, 0
      %p216 = por %p214, %p215
      %p217 = scmp.ne.s32.totalorder %s205, %s206
      %p218 = scmp.eq.s32.totalorder %s34, 1
      %p219 = por %p217, %p218
      %p221 = scmp.ne.s32.totalorder %s206, %s220
      %p222 = scmp.eq.s32.totalorder %s34, 0
      %p223 = por %p221, %p222
      %s225 = sadd.s32 %s224, 1
      %p228 = scmp.eq.s32.totalorder %s28, 1
      %p229 = scmp.ne.s32.totalorder %s224, %s226
      %p230 = scmp.eq.s32.totalorder %s28, 0
      %p231 = por %p229, %p230
      %p232 = scmp.ne.s32.totalorder %s224, %s226
      %p233 = scmp.eq.s32.totalorder %s33, 1
      %p234 = por %p232, %p233
      %p235 = scmp.ne.s32.totalorder %s226, %s227
      %p236 = scmp.eq.s32.totalorder %s33, 0
      %p237 = por %p235, %p236
      %p238 = scmp.ne.s32.totalorder %s226, %s227
      %p239 = scmp.eq.s32.totalorder %s34, 1
      %p240 = por %p238, %p239
      %p242 = scmp.ne.s32.totalorder %s227, %s241
      %p243 = scmp.eq.s32.totalorder %s34, 0
      %p244 = por %p242, %p243
      %s246 = sadd.s32 %s245, 1
      %p249 = scmp.eq.s32.totalorder %s28, 1
      %p250 = scmp.ne.s32.totalorder %s245, %s247
      %p251 = scmp.eq.s32.totalorder %s28, 0
      %p252 = por %p250, %p251
      %p253 = scmp.ne.s32.totalorder %s245, %s247
      %p254 = scmp.eq.s32.totalorder %s33, 1
      %p255 = por %p253, %p254
      %p256 = scmp.ne.s32.totalorder %s247, %s248
      %p257 = scmp.eq.s32.totalorder %s33, 0
      %p258 = por %p256, %p257
      %p259 = scmp.ne.s32.totalorder %s247, %s248
      %p260 = scmp.eq.s32.totalorder %s34, 1
      %p261 = por %p259, %p260
      %p263 = scmp.ne.s32.totalorder %s248, %s262
      %p264 = scmp.eq.s32.totalorder %s34, 0
      %p265 = por %p263, %p264
      %s267 = sadd.s32 %s266, 1
      %p270 = scmp.eq.s32.totalorder %s28, 1
      %p271 = scmp.ne.s32.totalorder %s266, %s268
      %p272 = scmp.eq.s32.totalorder %s28, 0
      %p273 = por %p271, %p272
      %p274 = scmp.ne.s32.totalorder %s266, %s268
      %p275 = scmp.eq.s32.totalorder %s33, 1
      %p276 = por %p274, %p275
      %p277 = scmp.ne.s32.totalorder %s268, %s269
      %p278 = scmp.eq.s32.totalorder %s33, 0
      %p279 = por %p277, %p278
      %p280 = scmp.ne.s32.totalorder %s268, %s269
      %p281 = scmp.eq.s32.totalorder %s34, 1
      %p282 = por %p280, %p281
      %p284 = scmp.ne.s32.totalorder %s269, %s283
      %p285 = scmp.eq.s32.totalorder %s34, 0
      %p286 = por %p284, %p285
      %s288 = sadd.s32 %s287, 1
      %p291 = scmp.eq.s32.totalorder %s28, 1
      %p292 = scmp.ne.s32.totalorder %s287, %s289
      %p293 = scmp.eq.s32.totalorder %s28, 0
      %p294 = por %p292, %p293
      %p295 = scmp.ne.s32.totalorder %s287, %s289
      %p296 = scmp.eq.s32.totalorder %s33, 1
      %p297 = por %p295, %p296
      %p298 = scmp.ne.s32.totalorder %s289, %s290
      %p299 = scmp.eq.s32.totalorder %s33, 0
      %p300 = por %p298, %p299
      %p301 = scmp.ne.s32.totalorder %s289, %s290
      %p302 = scmp.eq.s32.totalorder %s34, 1
      %p303 = por %p301, %p302
      %p305 = scmp.ne.s32.totalorder %s290, %s304
      %p306 = scmp.eq.s32.totalorder %s34, 0
      %p307 = por %p305, %p306
      %s309 = sadd.s32 %s308, 1
      %p312 = scmp.eq.s32.totalorder %s28, 1
      %p313 = scmp.ne.s32.totalorder %s308, %s310
      %p314 = scmp.eq.s32.totalorder %s28, 0
      %p315 = por %p313, %p314
      %p316 = scmp.ne.s32.totalorder %s308, %s310
      %p317 = scmp.eq.s32.totalorder %s33, 1
      %p318 = por %p316, %p317
      %p319 = scmp.ne.s32.totalorder %s310, %s311
      %p320 = scmp.eq.s32.totalorder %s33, 0
      %p321 = por %p319, %p320
      %p322 = scmp.ne.s32.totalorder %s310, %s311
      %p323 = scmp.eq.s32.totalorder %s34, 1
      %p324 = por %p322, %p323
      %p326 = scmp.ne.s32.totalorder %s311, %s325
      %p327 = scmp.eq.s32.totalorder %s34, 0
      %p328 = por %p326, %p327
      %s330 = sadd.s32 %s329, 1
      %p333 = scmp.eq.s32.totalorder %s28, 1
      %p334 = scmp.ne.s32.totalorder %s329, %s331
      %p335 = scmp.eq.s32.totalorder %s28, 0
      %p336 = por %p334, %p335
      %p337 = scmp.ne.s32.totalorder %s329, %s331
      %p338 = scmp.eq.s32.totalorder %s33, 1
      %p339 = por %p337, %p338
      %p340 = scmp.ne.s32.totalorder %s331, %s332
      %p341 = scmp.eq.s32.totalorder %s33, 0
      %p342 = por %p340, %p341
      %p343 = scmp.ne.s32.totalorder %s331, %s332
      %p344 = scmp.eq.s32.totalorder %s34, 1
      %p345 = por %p343, %p344
      %p347 = scmp.ne.s32.totalorder %s332, %s346
      %p348 = scmp.eq.s32.totalorder %s34, 0
      %p349 = por %p347, %p348
      %s351 = sadd.s32 %s350, 1
      %p354 = scmp.eq.s32.totalorder %s28, 1
      %p355 = scmp.ne.s32.totalorder %s350, %s352
      %p356 = scmp.eq.s32.totalorder %s28, 0
      %p357 = por %p355, %p356
      %p358 = scmp.ne.s32.totalorder %s350, %s352
      %p359 = scmp.eq.s32.totalorder %s33, 1
      %p360 = por %p358, %p359
      %p361 = scmp.ne.s32.totalorder %s352, %s353
      %p362 = scmp.eq.s32.totalorder %s33, 0
      %p363 = por %p361, %p362
      %p364 = scmp.ne.s32.totalorder %s352, %s353
      %p365 = scmp.eq.s32.totalorder %s34, 1
      %p366 = por %p364, %p365
      %p368 = scmp.ne.s32.totalorder %s353, %s367
      %p369 = scmp.eq.s32.totalorder %s34, 0
      %p370 = por %p368, %p369
      %s371 = ssub.s32 %s28, %s35
      %p372 = scmp.eq.s32.totalorder %s371, 0
      %s374 = sadd.s32 %s373, 1
      %s375 = scalar_select %p372, %s373, %s374
      %p378 = pneg %p372
      %p379 = scmp.eq.s32.totalorder %s28, 1
      %p380 = por %p378, %p379
      %p381 = scmp.ne.s32.totalorder %s373, %s376
      %p382 = scmp.eq.s32.totalorder %s28, 0
      %p383 = por %p381, %p382
      %p384 = scmp.ne.s32.totalorder %s373, %s376
      %p385 = scmp.eq.s32.totalorder %s33, 1
      %p386 = por %p384, %p385
      %p387 = scmp.ne.s32.totalorder %s376, %s377
      %p388 = scmp.eq.s32.totalorder %s33, 0
      %p389 = por %p387, %p388
      %p390 = scmp.ne.s32.totalorder %s376, %s377
      %p391 = scmp.eq.s32.totalorder %s34, 1
      %p392 = por %p390, %p391
      %p394 = scmp.ne.s32.totalorder %s377, %s393
      %p395 = scmp.eq.s32.totalorder %s34, 0
      %p396 = por %p394, %p395
      %p397 = scmp.le.s32.totalorder 1, %s28
      %p398 = scmp.lt.s32.totalorder %s28, 3
      %p399 = pnand %p397, %p398
      %p400 = pneg %p399
      // Predicated region
      $region9: #{decoder_layer_forward.1} parent=5 // pred_check
        _
      $region10: #{decoder_layer_forward.1} parent=5 // pred_check_branch
        %402 = sbr.rel (%p399) target = $region12
      $region11: #{decoder_layer_forward.1} parent=5 // pred_region
        %s403 = ssub.s32 %s28, 1
        // Predicated region
        $region13: #{decoder_layer_forward.1} parent=11 // pred_check
          %p404 = pneg %p153
        $region14: #{decoder_layer_forward.1} parent=11 // pred_check_branch
          %406 = sbr.rel (%p404) target = $region16
        $region15: #{decoder_layer_forward.1} parent=11 // pred_region
          _
        $region16: #{decoder_layer_forward.1} parent=11 // pred_fallthru
          _
        // Predicated region
        $region17: #{decoder_layer_forward.1} parent=11 // pred_check
          %p407 = pneg %p174
        $region18: #{decoder_layer_forward.1} parent=11 // pred_check_branch
          %409 = sbr.rel (%p407) target = $region20
        $region19: #{decoder_layer_forward.1} parent=11 // pred_region
          _
        $region20: #{decoder_layer_forward.1} parent=11 // pred_fallthru
          _
        // Predicated region
        $region21: #{decoder_layer_forward.1} parent=11 // pred_check
          %p410 = pneg %p195
        $region22: #{decoder_layer_forward.1} parent=11 // pred_check_branch
          %412 = sbr.rel (%p410) target = $region24
        $region23: #{decoder_layer_forward.1} parent=11 // pred_region
          _
        $region24: #{decoder_layer_forward.1} parent=11 // pred_fallthru
          _
        // Predicated region
        $region25: #{decoder_layer_forward.1} parent=11 // pred_check
          %p413 = pneg %p216
        $region26: #{decoder_layer_forward.1} parent=11 // pred_check_branch
          %415 = sbr.rel (%p413) target = $region28
        $region27: #{decoder_layer_forward.1} parent=11 // pred_region
          %s417 = ssub.s32 256, 256
          %418 = vsyncadd [#allocation3], %s417
          %s419 = sshll.u32 [#allocation2], 4
          %s420 = int_to_ptr.vmem [resolvable:$true] %s419
          %425 = dma.hbm_to_vmem [thread:$0]  %s7, 256, %s420, [#allocation3], 64, 64, 4
        $region28: #{decoder_layer_forward.1} parent=11 // pred_fallthru
          _
        // Predicated region
        $region29: #{decoder_layer_forward.1} parent=11 // pred_check
          %p426 = pneg %p237
        $region30: #{decoder_layer_forward.1} parent=11 // pred_check_branch
          %428 = sbr.rel (%p426) target = $region32
        $region31: #{decoder_layer_forward.1} parent=11 // pred_region
          %s430 = ssub.s32 256, 256
          %431 = vsyncadd [#allocation6], %s430
          %s432 = sshll.u32 [#allocation5], 4
          %s433 = int_to_ptr.vmem [resolvable:$true] %s432
          %438 = dma.hbm_to_vmem [thread:$0]  %s8, 256, %s433, [#allocation6], 64, 64, 4
        $region32: #{decoder_layer_forward.1} parent=11 // pred_fallthru
          _
        // Predicated region
        $region33: #{decoder_layer_forward.1} parent=11 // pred_check
          %p439 = pneg %p258
        $region34: #{decoder_layer_forward.1} parent=11 // pred_check_branch
          %441 = sbr.rel (%p439) target = $region36
        $region35: #{decoder_layer_forward.1} parent=11 // pred_region
          %s443 = ssub.s32 16, 16
          %444 = vsyncadd [#allocation6], %s443
          %s446 = sshll.u32 [#allocation7], 4
          %s447 = int_to_ptr.vmem [resolvable:$true] %s446
          %449 = dma.hbm_to_vmem [thread:$0]  %s9, 16, %s447, [#allocation6]
        $region36: #{decoder_layer_forward.1} parent=11 // pred_fallthru
          _
        // Predicated region
        $region37: #{decoder_layer_forward.1} parent=11 // pred_check
          %p450 = pneg %p279
        $region38: #{decoder_layer_forward.1} parent=11 // pred_check_branch
          %452 = sbr.rel (%p450) target = $region40
        $region39: #{decoder_layer_forward.1} parent=11 // pred_region
          %s454 = ssub.s32 256, 256
          %455 = vsyncadd [#allocation9], %s454
          %s456 = sshll.u32 [#allocation8], 4
          %s457 = int_to_ptr.vmem [resolvable:$true] %s456
          %462 = dma.hbm_to_vmem [thread:$0]  %s10, 256, %s457, [#allocation9], 64, 64, 4
        $region40: #{decoder_layer_forward.1} parent=11 // pred_fallthru
          _
        // Predicated region
        $region41: #{decoder_layer_forward.1} parent=11 // pred_check
          %p463 = pneg %p300
        $region42: #{decoder_layer_forward.1} parent=11 // pred_check_branch
          %465 = sbr.rel (%p463) target = $region44
        $region43: #{decoder_layer_forward.1} parent=11 // pred_region
          %s467 = ssub.s32 256, 256
          %468 = vsyncadd [#allocation9], %s467
          %s469 = sshll.u32 [#allocation10], 4
          %s470 = int_to_ptr.vmem [resolvable:$true] %s469
          %475 = dma.hbm_to_vmem [thread:$0]  %s11, 256, %s470, [#allocation9], 64, 64, 4
        $region44: #{decoder_layer_forward.1} parent=11 // pred_fallthru
          _
        // Predicated region
        $region45: #{decoder_layer_forward.1} parent=11 // pred_check
          %p476 = pneg %p321
        $region46: #{decoder_layer_forward.1} parent=11 // pred_check_branch
          %478 = sbr.rel (%p476) target = $region48
        $region47: #{decoder_layer_forward.1} parent=11 // pred_region
          %s480 = ssub.s32 16, 16
          %481 = vsyncadd [#allocation12], %s480
          %s483 = sshll.u32 [#allocation11], 4
          %s484 = int_to_ptr.vmem [resolvable:$true] %s483
          %486 = dma.hbm_to_vmem [thread:$0]  %s12, 16, %s484, [#allocation12]
        $region48: #{decoder_layer_forward.1} parent=11 // pred_fallthru
          _
        // Predicated region
        $region49: #{decoder_layer_forward.1} parent=11 // pred_check
          %p487 = pneg %p342
        $region50: #{decoder_layer_forward.1} parent=11 // pred_check_branch
          %489 = sbr.rel (%p487) target = $region52
        $region51: #{decoder_layer_forward.1} parent=11 // pred_region
          _
        $region52: #{decoder_layer_forward.1} parent=11 // pred_fallthru
          _
        // Predicated region
        $region53: #{decoder_layer_forward.1} parent=11 // pred_check
          %p490 = pneg %p363
        $region54: #{decoder_layer_forward.1} parent=11 // pred_check_branch
          %492 = sbr.rel (%p490) target = $region56
        $region55: #{decoder_layer_forward.1} parent=11 // pred_region
          _
        $region56: #{decoder_layer_forward.1} parent=11 // pred_fallthru
          _
      $region12: #{decoder_layer_forward.1} parent=5 // pred_fallthru
        _
      %p493 = scmp.lt.s32.totalorder %s28, 2
      // Predicated region
      $region57: #{decoder_layer_forward.1} parent=5 // pred_check
        %p494 = pneg %p493
      $region58: #{decoder_layer_forward.1} parent=5 // pred_check_branch
        %496 = sbr.rel (%p494) target = $region60
      $region59: #{decoder_layer_forward.1} parent=5 // pred_region
        // Predicated region
        $region61: #{decoder_layer_forward.1} parent=59 // pred_check
          %p497 = pneg %p48
        $region62: #{decoder_layer_forward.1} parent=59 // pred_check_branch
          %499 = sbr.rel (%p497) target = $region64
        $region63: #{decoder_layer_forward.1} parent=59 // pred_region
          %p500 = scmp.lt.s32.totalorder %s28, 1
          %s501 = scalar_select %p500, %s28, 1
          %s502 = smul.addr %s501, 8
          %s503 = scalar_lea.vmem %s0, %s502
        $region64: #{decoder_layer_forward.1} parent=59 // pred_fallthru
          _
        // Predicated region
        $region65: #{decoder_layer_forward.1} parent=59 // pred_check
          %p504 = pneg %p74
        $region66: #{decoder_layer_forward.1} parent=59 // pred_check_branch
          %506 = sbr.rel (%p504) target = $region68
        $region67: #{decoder_layer_forward.1} parent=59 // pred_region
          %p507 = scmp.lt.s32.totalorder %s28, 1
          %s508 = scalar_select %p507, %s28, 1
          %s509 = smul.addr %s508, 8
          %s510 = scalar_lea.vmem %s1, %s509
        $region68: #{decoder_layer_forward.1} parent=59 // pred_fallthru
          _
        // Predicated region
        $region69: #{decoder_layer_forward.1} parent=59 // pred_check
          %p511 = pneg %p100
        $region70: #{decoder_layer_forward.1} parent=59 // pred_check_branch
          %513 = sbr.rel (%p511) target = $region72
        $region71: #{decoder_layer_forward.1} parent=59 // pred_region
          %p514 = scmp.lt.s32.totalorder %s28, 1
          %s515 = scalar_select %p514, %s28, 1
          %s516 = smul.addr %s515, 8
          %s517 = scalar_lea.vmem %s2, %s516
        $region72: #{decoder_layer_forward.1} parent=59 // pred_fallthru
          _
        // Predicated region
        $region73: #{decoder_layer_forward.1} parent=59 // pred_check
          %p518 = pneg %p126
        $region74: #{decoder_layer_forward.1} parent=59 // pred_check_branch
          %520 = sbr.rel (%p518) target = $region76
        $region75: #{decoder_layer_forward.1} parent=59 // pred_region
          %p521 = scmp.lt.s32.totalorder %s28, 1
          %s522 = scalar_select %p521, %s28, 1
          %s523 = smul.addr %s522, 8
          %s524 = scalar_lea.vmem %s3, %s523
        $region76: #{decoder_layer_forward.1} parent=59 // pred_fallthru
          _
      $region60: #{decoder_layer_forward.1} parent=5 // pred_fallthru
        _
      %p525 = scmp.le.s32.totalorder 1, %s28
      %p526 = scmp.lt.s32.totalorder %s28, 3
      %p527 = pnand %p525, %p526
      %p528 = pneg %p527
      // Predicated region
      $region77: #{decoder_layer_forward.1} parent=5 // pred_check
        _
      $region78: #{decoder_layer_forward.1} parent=5 // pred_check_branch
        %530 = sbr.rel (%p527) target = $region80
      $region79: #{decoder_layer_forward.1} parent=5 // pred_region
        %s531 = ssub.s32 %s28, 1
        // Predicated region
        $region81: #{decoder_layer_forward.1} parent=79 // pred_check
          %p532 = pneg %p216
        $region82: #{decoder_layer_forward.1} parent=79 // pred_check_branch
          %534 = sbr.rel (%p532) target = $region84
        $region83: #{decoder_layer_forward.1} parent=79 // pred_region
          %535 = dma.done [#allocation3], 256
        $region84: #{decoder_layer_forward.1} parent=79 // pred_fallthru
          _
        // Predicated region
        $region85: #{decoder_layer_forward.1} parent=79 // pred_check
          %p536 = pneg %p237
        $region86: #{decoder_layer_forward.1} parent=79 // pred_check_branch
          %538 = sbr.rel (%p536) target = $region88
        $region87: #{decoder_layer_forward.1} parent=79 // pred_region
          %539 = dma.done [#allocation6], 256
        $region88: #{decoder_layer_forward.1} parent=79 // pred_fallthru
          _
        // Predicated region
        $region89: #{decoder_layer_forward.1} parent=79 // pred_check
          %p540 = pneg %p258
        $region90: #{decoder_layer_forward.1} parent=79 // pred_check_branch
          %542 = sbr.rel (%p540) target = $region92
        $region91: #{decoder_layer_forward.1} parent=79 // pred_region
          %543 = dma.done [#allocation6], 16
        $region92: #{decoder_layer_forward.1} parent=79 // pred_fallthru
          _
        // Predicated region
        $region93: #{decoder_layer_forward.1} parent=79 // pred_check
          %p544 = pneg %p279
        $region94: #{decoder_layer_forward.1} parent=79 // pred_check_branch
          %546 = sbr.rel (%p544) target = $region96
        $region95: #{decoder_layer_forward.1} parent=79 // pred_region
          %547 = dma.done [#allocation9], 256
        $region96: #{decoder_layer_forward.1} parent=79 // pred_fallthru
          _
        // Predicated region
        $region97: #{decoder_layer_forward.1} parent=79 // pred_check
          %p548 = pneg %p300
        $region98: #{decoder_layer_forward.1} parent=79 // pred_check_branch
          %550 = sbr.rel (%p548) target = $region100
        $region99: #{decoder_layer_forward.1} parent=79 // pred_region
          %551 = dma.done [#allocation9], 256
        $region100: #{decoder_layer_forward.1} parent=79 // pred_fallthru
          _
        // Predicated region
        $region101: #{decoder_layer_forward.1} parent=79 // pred_check
          %p552 = pneg %p321
        $region102: #{decoder_layer_forward.1} parent=79 // pred_check_branch
          %554 = sbr.rel (%p552) target = $region104
        $region103: #{decoder_layer_forward.1} parent=79 // pred_region
          %555 = dma.done [#allocation12], 16
        $region104: #{decoder_layer_forward.1} parent=79 // pred_fallthru
          _
        %p556 = scmp.lt.s32.totalorder %s33, 1
        %s557 = scalar_select %p556, %s33, 1
        %s558 = smul.addr %s557, 8
        %s559 = scalar_lea.vmem %s0, %s558
        %p560 = pneg %p54
        %p561 = pneg %p51
        %p562 = scmp.lt.s32.totalorder %s33, 1
        %s563 = scalar_select %p562, %s33, 1
        %s564 = smul.addr %s563, 8
        %s565 = scalar_lea.vmem %s1, %s564
        %p566 = pneg %p80
        %p567 = pneg %p77
        %p568 = scmp.lt.s32.totalorder %s33, 1
        %s569 = scalar_select %p568, %s33, 1
        %s570 = smul.addr %s569, 8
        %s571 = scalar_lea.vmem %s2, %s570
        %p572 = pneg %p106
        %p573 = pneg %p103
        %p574 = scmp.lt.s32.totalorder %s33, 1
        %s575 = scalar_select %p574, %s33, 1
        %s576 = smul.addr %s575, 8
        %s577 = scalar_lea.vmem %s3, %s576
        %p578 = pneg %p132
        %p579 = pneg %p129
        %p580 = pneg %p153
        %p581 = pneg %p150
        %p582 = pneg %p174
        %p583 = pneg %p171
        %p584 = pneg %p195
        %p585 = pneg %p192
        %p586 = pneg %p216
        %p587 = pneg %p213
        %p588 = pneg %p237
        %p589 = pneg %p234
        %p590 = pneg %p258
        %p591 = pneg %p255
        %p592 = pneg %p279
        %p593 = pneg %p276
        %p594 = pneg %p300
        %p595 = pneg %p297
        %p596 = pneg %p321
        %p597 = pneg %p318
        %p598 = pneg %p342
        %p599 = pneg %p339
        %p600 = pneg %p363
        %p601 = pneg %p360
        %p602 = pneg %p389
        %p603 = pneg %p386
        %s604 = sand.u32 %s376, 1
        %s605 = scalar_lea.sflag [#allocation4], %s604
        %s606 = sand.u32 %s376, 1
        %s607 = smul.addr %s606, 8
        %s608 = scalar_lea.vmem [#allocation13], %s607
        %p609 = scmp.lt.s32.totalorder %s33, 1
        %s610 = scalar_select %p609, %s33, 1
        %s611 = smul.addr %s610, 8
        %s612 = scalar_lea.vmem %s0, %s611
        %p613 = scmp.lt.s32.totalorder %s33, 1
        %s614 = scalar_select %p613, %s33, 1
        %s615 = smul.addr %s614, 8
        %s616 = scalar_lea.vmem %s1, %s615
        %p617 = scmp.lt.s32.totalorder %s33, 1
        %s618 = scalar_select %p617, %s33, 1
        %s619 = smul.addr %s618, 8
        %s620 = scalar_lea.vmem %s2, %s619
        %p621 = scmp.lt.s32.totalorder %s33, 1
        %s622 = scalar_select %p621, %s33, 1
        %s623 = smul.addr %s622, 8
        %s624 = scalar_lea.vmem %s3, %s623
        %v626 = vld [vmem:[%s612] sm:$0xff]
        %v627 = vld [vmem:[%s616] sm:$0xff]
        %v628 = vld [vmem:[%s14] sm:$0xff]
        %v629 = vld [vmem:[%s14 + $0x8] sm:$0x3]
        %v630 = vld [vmem:[%s620] sm:$0xff]
        %vm631 = vcmp.eq.f32.partialorder %v630, 0.0
        %v632 = vsel %vm631, -1e+09, 0.0
        %v633 = vld [vmem:[%s624] sm:$0xff]
        %vm634 = vcmp.eq.f32.partialorder %v633, 0.0
        %v635 = vsel %vm634, -1e+09, 0.0
        %v636 = vpack.c.bf16 %v626, %v626
        %v637 = vld [vmem:[%s4] sm:$0xf]
        %v638 = vld [vmem:[%s4 + $0x4] sm:$0xf]
        %v639 = vld [vmem:[%s4 + $0x8] sm:$0xf]
        %v640 = vld [vmem:[%s4 + $0xc] sm:$0xf]
        %v641 = vld [vmem:[%s5] sm:$0x1]
        %v643 = vlaneseq
        %v644 = vshrl.u32 %v643, 7
        %v645 = vsub.s32 0, %v644
        %v646 = vrot.slane %v641, %v645
        %v652 = vunpack.c.l.b16 %v637
        %v653 = vunpack.c.l.b16 %v638
        %v654 = vunpack.c.l.b16 %v639
        %v655 = vunpack.c.l.b16 %v640
        %v656 = vpack.c.b16 %v653, %v652
        %v657 = vpack.c.b16 %v655, %v654
        %vm660 = vcmask 261120
        %v662 = vsel %vm660, %v636, 0
        %664 = vmatprep.subr.bf16.mxu0 0
        %665 = vmatpush1.bf16.msra.mxu0 %v656
        %666 = vmatprep.subr.bf16.mxu0 0
        %667 = vmatpush1.bf16.msra.mxu0 %v657
        %668 = vmatprep.subr.bf16.mxu0 0
        %669 = vmatpush1.bf16.msra.mxu0 0
        %670 = vmatprep.subr.bf16.mxu0 0
        %671 = vmatpush1.bf16.msra.mxu0 0
        %672 = vmatprep.subr.bf16.mxu0 0
        %673 = vmatpush1.bf16.msra.mxu0 0
        %674 = vmatprep.subr.bf16.mxu0 0
        %675 = vmatpush1.bf16.msra.mxu0 0
        %676 = vmatprep.subr.bf16.mxu0 0
        %677 = vmatpush1.bf16.msra.mxu0 0
        %678 = vmatprep.subr.bf16.mxu0 0
        %679 = vmatpush1.bf16.msra.mxu0 0
        %680 = vmatprep.subr.bf16.mxu0 0
        %681 = vmatpush1.bf16.msra.mxu0 0
        %682 = vmatprep.subr.bf16.mxu0 0
        %683 = vmatpush1.bf16.msra.mxu0 0
        %684 = vmatprep.subr.bf16.mxu0 0
        %685 = vmatpush1.bf16.msra.mxu0 0
        %686 = vmatprep.subr.bf16.mxu0 0
        %687 = vmatpush1.bf16.msra.mxu0 0
        %688 = vmatprep.subr.bf16.mxu0 0
        %689 = vmatpush1.bf16.msra.mxu0 0
        %690 = vmatprep.subr.bf16.mxu0 0
        %691 = vmatpush1.bf16.msra.mxu0 0
        %692 = vmatprep.subr.bf16.mxu0 0
        %693 = vmatpush1.bf16.msra.mxu0 0
        %694 = vmatprep.subr.bf16.mxu0 0
        %695 = vmatpush1.bf16.msra.mxu0 0
        %696 = vmatprep.mubr.bf16.mxu0 0
        %697 = vmatmul.mubr.bf16.gmra.mrb[0].mxu0 %v662
        %v698 = vpop.f32.mrb[0].mxu0
        %v699 = vadd.f32 %v646, %v698
        %v700 = vpop.f32.mrb[0].mxu0
        %v701 = vpop.f32.mrb[0].mxu0
        %v702 = vpop.f32.mrb[0].mxu0
        %703 = vdwg.mxu0
        %v704 = vld [vmem:[%s6] sm:$0xf]
        %v705 = vld [vmem:[%s6 + $0x4] sm:$0xf]
        %v706 = vld [vmem:[%s6 + $0x8] sm:$0xf]
        %v707 = vld [vmem:[%s6 + $0xc] sm:$0xf]
        %v708 = vmul.f32 %v699, 0.35355338
        %710 = vrot.lane.b32.xlu0 %v708, 120
        %v711 = vpop.permute.xlu0 %710
        %713 = vrot.lane.b32.xlu0 %v708, 112
        %v714 = vpop.permute.xlu0 %713
        %716 = vrot.lane.b32.xlu0 %v708, 104
        %v717 = vpop.permute.xlu0 %716
        %v719 = vcombine.low %v708, %v714
        %v720 = vcombine.high %v708, %v714
        %v722 = vunpack.c.l.s4 1983009808
        %v723 = vunpack.c.0.s8 %v722
        %v724 = vlaneseq
        %v725 = vshrl.u32 %v724, 7
        %v726 = vsub.s32 %v723, %v725
        %v727 = vrot.slane %v719, %v726
        %v729 = vunpack.c.l.s4 1983009808
        %v730 = vunpack.c.0.s8 %v729
        %v731 = vlaneseq
        %v732 = vshrl.u32 %v731, 7
        %v733 = vsub.s32 %v730, %v732
        %v734 = vrot.slane %v720, %v733
        %v735 = vcombine.low %v711, %v717
        %v736 = vcombine.high %v711, %v717
        %v738 = vunpack.c.l.s4 1983009808
        %v739 = vunpack.c.0.s8 %v738
        %v740 = vlaneseq
        %v741 = vshrl.u32 %v740, 7
        %v742 = vsub.s32 %v739, %v741
        %v743 = vrot.slane %v735, %v742
        %v745 = vunpack.c.l.s4 1983009808
        %v746 = vunpack.c.0.s8 %v745
        %v747 = vlaneseq
        %v748 = vshrl.u32 %v747, 7
        %v749 = vsub.s32 %v746, %v748
        %v750 = vrot.slane %v736, %v749
        %v751 = vcombine.low %v727, %v743
        %v752 = vcombine.high %v727, %v743
        %v754 = vunpack.c.l.s4 1934713408
        %v755 = vunpack.c.0.s8 %v754
        %v756 = vlaneseq
        %v757 = vshrl.u32 %v756, 7
        %v758 = vsub.s32 %v755, %v757
        %v759 = vrot.slane %v751, %v758
        %v761 = vunpack.c.l.s4 1934713408
        %v762 = vunpack.c.0.s8 %v761
        %v763 = vlaneseq
        %v764 = vshrl.u32 %v763, 7
        %v765 = vsub.s32 %v762, %v764
        %v766 = vrot.slane %v752, %v765
        %v767 = vcombine.low %v734, %v750
        %v768 = vcombine.high %v734, %v750
        %v770 = vunpack.c.l.s4 1934713408
        %v771 = vunpack.c.0.s8 %v770
        %v772 = vlaneseq
        %v773 = vshrl.u32 %v772, 7
        %v774 = vsub.s32 %v771, %v773
        %v775 = vrot.slane %v767, %v774
        %v777 = vunpack.c.l.s4 1934713408
        %v778 = vunpack.c.0.s8 %v777
        %v779 = vlaneseq
        %v780 = vshrl.u32 %v779, 7
        %v781 = vsub.s32 %v778, %v780
        %v782 = vrot.slane %v768, %v781
        %v783 = vcombine.high %v759, 0.0
        %v784 = vcombine.high %v766, 0.0
        %v785 = vcombine.high %v775, 0.0
        %v786 = vcombine.high %v782, 0.0
        %v787 = vcombine.low %v759, %v766
        %v789 = vunpack.c.l.s4 1983009808
        %v790 = vunpack.c.0.s8 %v789
        %v791 = vlaneseq
        %v792 = vshrl.u32 %v791, 7
        %v793 = vsub.s32 %v790, %v792
        %v794 = vrot.slane %v787, %v793
        %v795 = vcombine.low %v783, %v784
        %v797 = vunpack.c.l.s4 1983009808
        %v798 = vunpack.c.0.s8 %v797
        %v799 = vlaneseq
        %v800 = vshrl.u32 %v799, 7
        %v801 = vsub.s32 %v798, %v800
        %v802 = vrot.slane %v795, %v801
        %v803 = vcombine.low %v775, %v782
        %v805 = vunpack.c.l.s4 1983009808
        %v806 = vunpack.c.0.s8 %v805
        %v807 = vlaneseq
        %v808 = vshrl.u32 %v807, 7
        %v809 = vsub.s32 %v806, %v808
        %v810 = vrot.slane %v803, %v809
        %v811 = vcombine.low %v785, %v786
        %v813 = vunpack.c.l.s4 1983009808
        %v814 = vunpack.c.0.s8 %v813
        %v815 = vlaneseq
        %v816 = vshrl.u32 %v815, 7
        %v817 = vsub.s32 %v814, %v816
        %v818 = vrot.slane %v811, %v817
        %v819 = vcombine.low %v794, %v802
        %v820 = vcombine.high %v794, %v802
        %v822 = vunpack.c.l.s4 1934713408
        %v823 = vunpack.c.0.s8 %v822
        %v824 = vlaneseq
        %v825 = vshrl.u32 %v824, 7
        %v826 = vsub.s32 %v823, %v825
        %v827 = vrot.slane %v819, %v826
        %v829 = vunpack.c.l.s4 1934713408
        %v830 = vunpack.c.0.s8 %v829
        %v831 = vlaneseq
        %v832 = vshrl.u32 %v831, 7
        %v833 = vsub.s32 %v830, %v832
        %v834 = vrot.slane %v820, %v833
        %v835 = vcombine.low %v810, %v818
        %v836 = vcombine.high %v810, %v818
        %v838 = vunpack.c.l.s4 1934713408
        %v839 = vunpack.c.0.s8 %v838
        %v840 = vlaneseq
        %v841 = vshrl.u32 %v840, 7
        %v842 = vsub.s32 %v839, %v841
        %v843 = vrot.slane %v835, %v842
        %v845 = vunpack.c.l.s4 1934713408
        %v846 = vunpack.c.0.s8 %v845
        %v847 = vlaneseq
        %v848 = vshrl.u32 %v847, 7
        %v849 = vsub.s32 %v846, %v848
        %v850 = vrot.slane %v836, %v849
        %v851 = vcombine.low %v827, %v843
        %v852 = vcombine.high %v827, %v843
        %v853 = vcombine.low %v834, %v850
        %v854 = vcombine.high %v834, %v850
        %v855 = vpack.c.bf16 %v851, %v851
        %v856 = vpack.c.bf16 %v852, %v852
        %v857 = vpack.c.bf16 %v853, %v853
        %v858 = vpack.c.bf16 %v854, %v854
        %860 = vrot.lane.b32.xlu0 %v699, 120
        %v861 = vpop.permute.xlu0 %860
        %862 = vrot.lane.b32.xlu0 %v699, 112
        %v863 = vpop.permute.xlu0 %862
        %864 = vrot.lane.b32.xlu0 %v699, 104
        %v865 = vpop.permute.xlu0 %864
        %866 = vrot.lane.b32.xlu0 %v699, 96
        %v867 = vpop.permute.xlu0 %866
        %868 = vrot.lane.b32.xlu0 %v861, 96
        %v869 = vpop.permute.xlu0 %868
        %870 = vrot.lane.b32.xlu0 %v863, 96
        %v871 = vpop.permute.xlu0 %870
        %872 = vrot.lane.b32.xlu0 %v865, 96
        %v873 = vpop.permute.xlu0 %872
        %v878 = vcombine.low %v867, %v871
        %v879 = vcombine.high %v867, %v871
        %v881 = vunpack.c.l.s4 1983009808
        %v882 = vunpack.c.0.s8 %v881
        %v883 = vlaneseq
        %v884 = vshrl.u32 %v883, 7
        %v885 = vsub.s32 %v882, %v884
        %v886 = vrot.slane %v878, %v885
        %v888 = vunpack.c.l.s4 1983009808
        %v889 = vunpack.c.0.s8 %v888
        %v890 = vlaneseq
        %v891 = vshrl.u32 %v890, 7
        %v892 = vsub.s32 %v889, %v891
        %v893 = vrot.slane %v879, %v892
        %v894 = vcombine.low %v869, %v873
        %v895 = vcombine.high %v869, %v873
        %v897 = vunpack.c.l.s4 1983009808
        %v898 = vunpack.c.0.s8 %v897
        %v899 = vlaneseq
        %v900 = vshrl.u32 %v899, 7
        %v901 = vsub.s32 %v898, %v900
        %v902 = vrot.slane %v894, %v901
        %v904 = vunpack.c.l.s4 1983009808
        %v905 = vunpack.c.0.s8 %v904
        %v906 = vlaneseq
        %v907 = vshrl.u32 %v906, 7
        %v908 = vsub.s32 %v905, %v907
        %v909 = vrot.slane %v895, %v908
        %v910 = vcombine.low %v886, %v902
        %v911 = vcombine.high %v886, %v902
        %v913 = vunpack.c.l.s4 1934713408
        %v914 = vunpack.c.0.s8 %v913
        %v915 = vlaneseq
        %v916 = vshrl.u32 %v915, 7
        %v917 = vsub.s32 %v914, %v916
        %v918 = vrot.slane %v910, %v917
        %v920 = vunpack.c.l.s4 1934713408
        %v921 = vunpack.c.0.s8 %v920
        %v922 = vlaneseq
        %v923 = vshrl.u32 %v922, 7
        %v924 = vsub.s32 %v921, %v923
        %v925 = vrot.slane %v911, %v924
        %v926 = vcombine.low %v893, %v909
        %v927 = vcombine.high %v893, %v909
        %v929 = vunpack.c.l.s4 1934713408
        %v930 = vunpack.c.0.s8 %v929
        %v931 = vlaneseq
        %v932 = vshrl.u32 %v931, 7
        %v933 = vsub.s32 %v930, %v932
        %v934 = vrot.slane %v926, %v933
        %v936 = vunpack.c.l.s4 1934713408
        %v937 = vunpack.c.0.s8 %v936
        %v938 = vlaneseq
        %v939 = vshrl.u32 %v938, 7
        %v940 = vsub.s32 %v937, %v939
        %v941 = vrot.slane %v927, %v940
        %v942 = vcombine.high %v918, 0.0
        %v943 = vcombine.high %v925, 0.0
        %v944 = vcombine.high %v934, 0.0
        %v945 = vcombine.high %v941, 0.0
        %v946 = vcombine.low %v918, %v925
        %v948 = vunpack.c.l.s4 1983009808
        %v949 = vunpack.c.0.s8 %v948
        %v950 = vlaneseq
        %v951 = vshrl.u32 %v950, 7
        %v952 = vsub.s32 %v949, %v951
        %v953 = vrot.slane %v946, %v952
        %v954 = vcombine.low %v942, %v943
        %v956 = vunpack.c.l.s4 1983009808
        %v957 = vunpack.c.0.s8 %v956
        %v958 = vlaneseq
        %v959 = vshrl.u32 %v958, 7
        %v960 = vsub.s32 %v957, %v959
        %v961 = vrot.slane %v954, %v960
        %v962 = vcombine.low %v934, %v941
        %v964 = vunpack.c.l.s4 1983009808
        %v965 = vunpack.c.0.s8 %v964
        %v966 = vlaneseq
        %v967 = vshrl.u32 %v966, 7
        %v968 = vsub.s32 %v965, %v967
        %v969 = vrot.slane %v962, %v968
        %v970 = vcombine.low %v944, %v945
        %v972 = vunpack.c.l.s4 1983009808
        %v973 = vunpack.c.0.s8 %v972
        %v974 = vlaneseq
        %v975 = vshrl.u32 %v974, 7
        %v976 = vsub.s32 %v973, %v975
        %v977 = vrot.slane %v970, %v976
        %v978 = vcombine.low %v953, %v961
        %v979 = vcombine.high %v953, %v961
        %v981 = vunpack.c.l.s4 1934713408
        %v982 = vunpack.c.0.s8 %v981
        %v983 = vlaneseq
        %v984 = vshrl.u32 %v983, 7
        %v985 = vsub.s32 %v982, %v984
        %v986 = vrot.slane %v978, %v985
        %v988 = vunpack.c.l.s4 1934713408
        %v989 = vunpack.c.0.s8 %v988
        %v990 = vlaneseq
        %v991 = vshrl.u32 %v990, 7
        %v992 = vsub.s32 %v989, %v991
        %v993 = vrot.slane %v979, %v992
        %v994 = vcombine.low %v969, %v977
        %v995 = vcombine.high %v969, %v977
        %v997 = vunpack.c.l.s4 1934713408
        %v998 = vunpack.c.0.s8 %v997
        %v999 = vlaneseq
        %v1000 = vshrl.u32 %v999, 7
        %v1001 = vsub.s32 %v998, %v1000
        %v1002 = vrot.slane %v994, %v1001
        %v1004 = vunpack.c.l.s4 1934713408
        %v1005 = vunpack.c.0.s8 %v1004
        %v1006 = vlaneseq
        %v1007 = vshrl.u32 %v1006, 7
        %v1008 = vsub.s32 %v1005, %v1007
        %v1009 = vrot.slane %v995, %v1008
        %v1010 = vcombine.low %v986, %v1002
        %v1011 = vcombine.high %v986, %v1002
        %v1012 = vcombine.low %v993, %v1009
        %v1013 = vcombine.high %v993, %v1009
        %v1014 = vpack.c.bf16 %v1010, %v1010
        %v1015 = vpack.c.bf16 %v1011, %v1011
        %v1016 = vpack.c.bf16 %v1012, %v1012
        %v1017 = vpack.c.bf16 %v1013, %v1013
        %1018 = vrot.lane.b32.xlu0 %v699, 64
        %v1019 = vpop.permute.xlu0 %1018
        %1020 = vrot.lane.b32.xlu0 %v861, 64
        %v1021 = vpop.permute.xlu0 %1020
        %1022 = vrot.lane.b32.xlu0 %v863, 64
        %v1023 = vpop.permute.xlu0 %1022
        %1024 = vrot.lane.b32.xlu0 %v865, 64
        %v1025 = vpop.permute.xlu0 %1024
        %v1030 = vcombine.low %v1019, %v1023
        %v1031 = vcombine.high %v1019, %v1023
        %v1033 = vunpack.c.l.s4 1983009808
        %v1034 = vunpack.c.0.s8 %v1033
        %v1035 = vlaneseq
        %v1036 = vshrl.u32 %v1035, 7
        %v1037 = vsub.s32 %v1034, %v1036
        %v1038 = vrot.slane %v1030, %v1037
        %v1040 = vunpack.c.l.s4 1983009808
        %v1041 = vunpack.c.0.s8 %v1040
        %v1042 = vlaneseq
        %v1043 = vshrl.u32 %v1042, 7
        %v1044 = vsub.s32 %v1041, %v1043
        %v1045 = vrot.slane %v1031, %v1044
        %v1046 = vcombine.low %v1021, %v1025
        %v1047 = vcombine.high %v1021, %v1025
        %v1049 = vunpack.c.l.s4 1983009808
        %v1050 = vunpack.c.0.s8 %v1049
        %v1051 = vlaneseq
        %v1052 = vshrl.u32 %v1051, 7
        %v1053 = vsub.s32 %v1050, %v1052
        %v1054 = vrot.slane %v1046, %v1053
        %v1056 = vunpack.c.l.s4 1983009808
        %v1057 = vunpack.c.0.s8 %v1056
        %v1058 = vlaneseq
        %v1059 = vshrl.u32 %v1058, 7
        %v1060 = vsub.s32 %v1057, %v1059
        %v1061 = vrot.slane %v1047, %v1060
        %v1062 = vcombine.low %v1038, %v1054
        %v1063 = vcombine.high %v1038, %v1054
        %v1065 = vunpack.c.l.s4 1934713408
        %v1066 = vunpack.c.0.s8 %v1065
        %v1067 = vlaneseq
        %v1068 = vshrl.u32 %v1067, 7
        %v1069 = vsub.s32 %v1066, %v1068
        %v1070 = vrot.slane %v1062, %v1069
        %v1072 = vunpack.c.l.s4 1934713408
        %v1073 = vunpack.c.0.s8 %v1072
        %v1074 = vlaneseq
        %v1075 = vshrl.u32 %v1074, 7
        %v1076 = vsub.s32 %v1073, %v1075
        %v1077 = vrot.slane %v1063, %v1076
        %v1078 = vcombine.low %v1045, %v1061
        %v1079 = vcombine.high %v1045, %v1061
        %v1081 = vunpack.c.l.s4 1934713408
        %v1082 = vunpack.c.0.s8 %v1081
        %v1083 = vlaneseq
        %v1084 = vshrl.u32 %v1083, 7
        %v1085 = vsub.s32 %v1082, %v1084
        %v1086 = vrot.slane %v1078, %v1085
        %v1088 = vunpack.c.l.s4 1934713408
        %v1089 = vunpack.c.0.s8 %v1088
        %v1090 = vlaneseq
        %v1091 = vshrl.u32 %v1090, 7
        %v1092 = vsub.s32 %v1089, %v1091
        %v1093 = vrot.slane %v1079, %v1092
        %v1094 = vcombine.high %v1070, 0.0
        %v1095 = vcombine.high %v1077, 0.0
        %v1096 = vcombine.high %v1086, 0.0
        %v1097 = vcombine.high %v1093, 0.0
        %v1098 = vcombine.low %v1070, %v1077
        %v1100 = vunpack.c.l.s4 1983009808
        %v1101 = vunpack.c.0.s8 %v1100
        %v1102 = vlaneseq
        %v1103 = vshrl.u32 %v1102, 7
        %v1104 = vsub.s32 %v1101, %v1103
        %v1105 = vrot.slane %v1098, %v1104
        %v1106 = vcombine.low %v1094, %v1095
        %v1108 = vunpack.c.l.s4 1983009808
        %v1109 = vunpack.c.0.s8 %v1108
        %v1110 = vlaneseq
        %v1111 = vshrl.u32 %v1110, 7
        %v1112 = vsub.s32 %v1109, %v1111
        %v1113 = vrot.slane %v1106, %v1112
        %v1114 = vcombine.low %v1086, %v1093
        %v1116 = vunpack.c.l.s4 1983009808
        %v1117 = vunpack.c.0.s8 %v1116
        %v1118 = vlaneseq
        %v1119 = vshrl.u32 %v1118, 7
        %v1120 = vsub.s32 %v1117, %v1119
        %v1121 = vrot.slane %v1114, %v1120
        %v1122 = vcombine.low %v1096, %v1097
        %v1124 = vunpack.c.l.s4 1983009808
        %v1125 = vunpack.c.0.s8 %v1124
        %v1126 = vlaneseq
        %v1127 = vshrl.u32 %v1126, 7
        %v1128 = vsub.s32 %v1125, %v1127
        %v1129 = vrot.slane %v1122, %v1128
        %v1130 = vcombine.low %v1105, %v1113
        %v1131 = vcombine.high %v1105, %v1113
        %v1133 = vunpack.c.l.s4 1934713408
        %v1134 = vunpack.c.0.s8 %v1133
        %v1135 = vlaneseq
        %v1136 = vshrl.u32 %v1135, 7
        %v1137 = vsub.s32 %v1134, %v1136
        %v1138 = vrot.slane %v1130, %v1137
        %v1140 = vunpack.c.l.s4 1934713408
        %v1141 = vunpack.c.0.s8 %v1140
        %v1142 = vlaneseq
        %v1143 = vshrl.u32 %v1142, 7
        %v1144 = vsub.s32 %v1141, %v1143
        %v1145 = vrot.slane %v1131, %v1144
        %v1146 = vcombine.low %v1121, %v1129
        %v1147 = vcombine.high %v1121, %v1129
        %v1149 = vunpack.c.l.s4 1934713408
        %v1150 = vunpack.c.0.s8 %v1149
        %v1151 = vlaneseq
        %v1152 = vshrl.u32 %v1151, 7
        %v1153 = vsub.s32 %v1150, %v1152
        %v1154 = vrot.slane %v1146, %v1153
        %v1156 = vunpack.c.l.s4 1934713408
        %v1157 = vunpack.c.0.s8 %v1156
        %v1158 = vlaneseq
        %v1159 = vshrl.u32 %v1158, 7
        %v1160 = vsub.s32 %v1157, %v1159
        %v1161 = vrot.slane %v1147, %v1160
        %v1162 = vcombine.low %v1138, %v1154
        %v1163 = vcombine.high %v1138, %v1154
        %v1164 = vcombine.low %v1145, %v1161
        %v1165 = vcombine.high %v1145, %v1161
        %v1166 = vpack.c.bf16 %v1162, %v1162
        %v1167 = vpack.c.bf16 %v1163, %v1163
        %v1168 = vpack.c.bf16 %v1164, %v1164
        %v1169 = vpack.c.bf16 %v1165, %v1165
        %vm1170 = vcmask 64512
        %v1172 = vsel %vm1170, %v855, 0
        %v1175 = vsel %vm1170, %v1014, 0
        %1177 = vmatprep.subr.bf16.mxu0 0
        %1178 = vmatpush1.bf16.xpose.msra.mxu0 %v1175
        %1179 = vmatprep.subr.bf16.mxu0 0
        %1180 = vmatpush1.bf16.xpose.msra.mxu0 0
        %1181 = vmatprep.subr.bf16.mxu0 0
        %1182 = vmatpush1.bf16.xpose.msra.mxu0 0
        %1183 = vmatprep.subr.bf16.mxu0 0
        %1184 = vmatpush1.bf16.xpose.msra.mxu0 0
        %1185 = vmatprep.subr.bf16.mxu0 0
        %1186 = vmatpush1.bf16.xpose.msra.mxu0 0
        %1187 = vmatprep.subr.bf16.mxu0 0
        %1188 = vmatpush1.bf16.xpose.msra.mxu0 0
        %1189 = vmatprep.subr.bf16.mxu0 0
        %1190 = vmatpush1.bf16.xpose.msra.mxu0 0
        %1191 = vmatprep.subr.bf16.mxu0 0
        %1192 = vmatpush1.bf16.xpose.msra.mxu0 0
        %1193 = vmatprep.subr.bf16.mxu0 0
        %1194 = vmatpush1.bf16.xpose.msra.mxu0 0
        %1195 = vmatprep.subr.bf16.mxu0 0
        %1196 = vmatpush1.bf16.xpose.msra.mxu0 0
        %1197 = vmatprep.subr.bf16.mxu0 0
        %1198 = vmatpush1.bf16.xpose.msra.mxu0 0
        %1199 = vmatprep.subr.bf16.mxu0 0
        %1200 = vmatpush1.bf16.xpose.msra.mxu0 0
        %1201 = vmatprep.subr.bf16.mxu0 0
        %1202 = vmatpush1.bf16.xpose.msra.mxu0 0
        %1203 = vmatprep.subr.bf16.mxu0 0
        %1204 = vmatpush1.bf16.xpose.msra.mxu0 0
        %1205 = vmatprep.subr.bf16.mxu0 0
        %1206 = vmatpush1.bf16.xpose.msra.mxu0 0
        %1207 = vmatprep.subr.bf16.mxu0 0
        %1208 = vmatpush1.bf16.xpose.msra.mxu0 0
        %1209 = vmatprep.mubr.bf16.mxu0 0
        %1210 = vmatmul.mubr.bf16.gmra.mrb[0].mxu0 %v1172
        %v1211 = vpop.f32.mrb[0].mxu0
        %v1212 = vadd.f32 %v632, %v1211
        %v1213 = vpop.f32.mrb[0].mxu0
        %v1214 = vpop.f32.mrb[0].mxu0
        %v1215 = vpop.f32.mrb[0].mxu0
        %1216 = vdwg.mxu0
        %v1218 = vsel %vm1170, %v856, 0
        %v1221 = vsel %vm1170, %v1015, 0
        %1223 = vmatprep.subr.bf16.mxu0 0
        %1224 = vmatpush1.bf16.xpose.msra.mxu0 %v1221
        %1225 = vmatprep.subr.bf16.mxu0 0
        %1226 = vmatpush1.bf16.xpose.msra.mxu0 0
        %1227 = vmatprep.subr.bf16.mxu0 0
        %1228 = vmatpush1.bf16.xpose.msra.mxu0 0
        %1229 = vmatprep.subr.bf16.mxu0 0
        %1230 = vmatpush1.bf16.xpose.msra.mxu0 0
        %1231 = vmatprep.subr.bf16.mxu0 0
        %1232 = vmatpush1.bf16.xpose.msra.mxu0 0
        %1233 = vmatprep.subr.bf16.mxu0 0
        %1234 = vmatpush1.bf16.xpose.msra.mxu0 0
        %1235 = vmatprep.subr.bf16.mxu0 0
        %1236 = vmatpush1.bf16.xpose.msra.mxu0 0
        %1237 = vmatprep.subr.bf16.mxu0 0
        %1238 = vmatpush1.bf16.xpose.msra.mxu0 0
        %1239 = vmatprep.subr.bf16.mxu0 0
        %1240 = vmatpush1.bf16.xpose.msra.mxu0 0
        %1241 = vmatprep.subr.bf16.mxu0 0
        %1242 = vmatpush1.bf16.xpose.msra.mxu0 0
        %1243 = vmatprep.subr.bf16.mxu0 0
        %1244 = vmatpush1.bf16.xpose.msra.mxu0 0
        %1245 = vmatprep.subr.bf16.mxu0 0
        %1246 = vmatpush1.bf16.xpose.msra.mxu0 0
        %1247 = vmatprep.subr.bf16.mxu0 0
        %1248 = vmatpush1.bf16.xpose.msra.mxu0 0
        %1249 = vmatprep.subr.bf16.mxu0 0
        %1250 = vmatpush1.bf16.xpose.msra.mxu0 0
        %1251 = vmatprep.subr.bf16.mxu0 0
        %1252 = vmatpush1.bf16.xpose.msra.mxu0 0
        %1253 = vmatprep.subr.bf16.mxu0 0
        %1254 = vmatpush1.bf16.xpose.msra.mxu0 0
        %1255 = vmatprep.mubr.bf16.mxu0 0
        %1256 = vmatmul.mubr.bf16.gmra.mrb[0].mxu0 %v1218
        %v1257 = vpop.f32.mrb[0].mxu0
        %v1258 = vadd.f32 %v632, %v1257
        %v1259 = vpop.f32.mrb[0].mxu0
        %v1260 = vpop.f32.mrb[0].mxu0
        %v1261 = vpop.f32.mrb[0].mxu0
        %1262 = vdwg.mxu0
        %v1264 = vsel %vm1170, %v857, 0
        %v1267 = vsel %vm1170, %v1016, 0
        %1269 = vmatprep.subr.bf16.mxu0 0
        %1270 = vmatpush1.bf16.xpose.msra.mxu0 %v1267
        %1271 = vmatprep.subr.bf16.mxu0 0
        %1272 = vmatpush1.bf16.xpose.msra.mxu0 0
        %1273 = vmatprep.subr.bf16.mxu0 0
        %1274 = vmatpush1.bf16.xpose.msra.mxu0 0
        %1275 = vmatprep.subr.bf16.mxu0 0
        %1276 = vmatpush1.bf16.xpose.msra.mxu0 0
        %1277 = vmatprep.subr.bf16.mxu0 0
        %1278 = vmatpush1.bf16.xpose.msra.mxu0 0
        %1279 = vmatprep.subr.bf16.mxu0 0
        %1280 = vmatpush1.bf16.xpose.msra.mxu0 0
        %1281 = vmatprep.subr.bf16.mxu0 0
        %1282 = vmatpush1.bf16.xpose.msra.mxu0 0
        %1283 = vmatprep.subr.bf16.mxu0 0
        %1284 = vmatpush1.bf16.xpose.msra.mxu0 0
        %1285 = vmatprep.subr.bf16.mxu0 0
        %1286 = vmatpush1.bf16.xpose.msra.mxu0 0
        %1287 = vmatprep.subr.bf16.mxu0 0
        %1288 = vmatpush1.bf16.xpose.msra.mxu0 0
        %1289 = vmatprep.subr.bf16.mxu0 0
        %1290 = vmatpush1.bf16.xpose.msra.mxu0 0
        %1291 = vmatprep.subr.bf16.mxu0 0
        %1292 = vmatpush1.bf16.xpose.msra.mxu0 0
        %1293 = vmatprep.subr.bf16.mxu0 0
        %1294 = vmatpush1.bf16.xpose.msra.mxu0 0
        %1295 = vmatprep.subr.bf16.mxu0 0
        %1296 = vmatpush1.bf16.xpose.msra.mxu0 0
        %1297 = vmatprep.subr.bf16.mxu0 0
        %1298 = vmatpush1.bf16.xpose.msra.mxu0 0
        %1299 = vmatprep.subr.bf16.mxu0 0
        %1300 = vmatpush1.bf16.xpose.msra.mxu0 0
        %1301 = vmatprep.mubr.bf16.mxu0 0
        %1302 = vmatmul.mubr.bf16.gmra.mrb[0].mxu0 %v1264
        %v1303 = vpop.f32.mrb[0].mxu0
        %v1304 = vadd.f32 %v632, %v1303
        %v1305 = vpop.f32.mrb[0].mxu0
        %v1306 = vpop.f32.mrb[0].mxu0
        %v1307 = vpop.f32.mrb[0].mxu0
        %1308 = vdwg.mxu0
        %v1310 = vsel %vm1170, %v858, 0
        %v1313 = vsel %vm1170, %v1017, 0
        %1315 = vmatprep.subr.bf16.mxu0 0
        %1316 = vmatpush1.bf16.xpose.msra.mxu0 %v1313
        %1317 = vmatprep.subr.bf16.mxu0 0
        %1318 = vmatpush1.bf16.xpose.msra.mxu0 0
        %1319 = vmatprep.subr.bf16.mxu0 0
        %1320 = vmatpush1.bf16.xpose.msra.mxu0 0
        %1321 = vmatprep.subr.bf16.mxu0 0
        %1322 = vmatpush1.bf16.xpose.msra.mxu0 0
        %1323 = vmatprep.subr.bf16.mxu0 0
        %1324 = vmatpush1.bf16.xpose.msra.mxu0 0
        %1325 = vmatprep.subr.bf16.mxu0 0
        %1326 = vmatpush1.bf16.xpose.msra.mxu0 0
        %1327 = vmatprep.subr.bf16.mxu0 0
        %1328 = vmatpush1.bf16.xpose.msra.mxu0 0
        %1329 = vmatprep.subr.bf16.mxu0 0
        %1330 = vmatpush1.bf16.xpose.msra.mxu0 0
        %1331 = vmatprep.subr.bf16.mxu0 0
        %1332 = vmatpush1.bf16.xpose.msra.mxu0 0
        %1333 = vmatprep.subr.bf16.mxu0 0
        %1334 = vmatpush1.bf16.xpose.msra.mxu0 0
        %1335 = vmatprep.subr.bf16.mxu0 0
        %1336 = vmatpush1.bf16.xpose.msra.mxu0 0
        %1337 = vmatprep.subr.bf16.mxu0 0
        %1338 = vmatpush1.bf16.xpose.msra.mxu0 0
        %1339 = vmatprep.subr.bf16.mxu0 0
        %1340 = vmatpush1.bf16.xpose.msra.mxu0 0
        %1341 = vmatprep.subr.bf16.mxu0 0
        %1342 = vmatpush1.bf16.xpose.msra.mxu0 0
        %1343 = vmatprep.subr.bf16.mxu0 0
        %1344 = vmatpush1.bf16.xpose.msra.mxu0 0
        %1345 = vmatprep.subr.bf16.mxu0 0
        %1346 = vmatpush1.bf16.xpose.msra.mxu0 0
        %1347 = vmatprep.mubr.bf16.mxu0 0
        %1348 = vmatmul.mubr.bf16.gmra.mrb[0].mxu0 %v1310
        %v1349 = vpop.f32.mrb[0].mxu0
        %v1350 = vadd.f32 %v632, %v1349
        %v1351 = vpop.f32.mrb[0].mxu0
        %v1352 = vpop.f32.mrb[0].mxu0
        %v1353 = vpop.f32.mrb[0].mxu0
        %1354 = vdwg.mxu0
        %v1355 = vsel %vm1170, %v1212, -inf
        %1356 = vmax.xlane.f32.xlu0 %v1355
        %v1357 = vpop.xlane.xlu0 %1356
        %v1358 = vsel %vm1170, %v1258, -inf
        %1359 = vmax.xlane.f32.xlu0 %v1358
        %v1360 = vpop.xlane.xlu0 %1359
        %v1361 = vsel %vm1170, %v1304, -inf
        %1362 = vmax.xlane.f32.xlu0 %v1361
        %v1363 = vpop.xlane.xlu0 %1362
        %v1364 = vsel %vm1170, %v1350, -inf
        %1365 = vmax.xlane.f32.xlu0 %v1364
        %v1366 = vpop.xlane.xlu0 %1365
        %v1367 = vsub.f32 %v1212, %v1357
        %v1368 = vsub.f32 %v1258, %v1360
        %v1369 = vsub.f32 %v1304, %v1363
        %v1370 = vsub.f32 %v1350, %v1366
        %v1371 = vmul.f32 %v1367, 1.442695
        %v1372 = vpow.pop %v1371
        %v1373 = vmul.f32 %v1368, 1.442695
        %v1374 = vpow.pop %v1373
        %v1375 = vmul.f32 %v1369, 1.442695
        %v1376 = vpow.pop %v1375
        %v1377 = vmul.f32 %v1370, 1.442695
        %v1378 = vpow.pop %v1377
        %v1379 = vsel %vm1170, %v1372, 0.0
        %1380 = vadd.xlane.f32.xlu0 %v1379
        %v1381 = vpop.xlane.xlu0 %1380
        %v1382 = vsel %vm1170, %v1374, 0.0
        %1383 = vadd.xlane.f32.xlu0 %v1382
        %v1384 = vpop.xlane.xlu0 %1383
        %v1385 = vsel %vm1170, %v1376, 0.0
        %1386 = vadd.xlane.f32.xlu0 %v1385
        %v1387 = vpop.xlane.xlu0 %1386
        %v1388 = vsel %vm1170, %v1378, 0.0
        %1389 = vadd.xlane.f32.xlu0 %v1388
        %v1390 = vpop.xlane.xlu0 %1389
        %v1391 = vrcp.pop %v1381
        %v1392 = vrcp.pop %v1384
        %v1393 = vrcp.pop %v1387
        %v1394 = vrcp.pop %v1390
        %v1395 = vmul.f32 %v1372, %v1391
        %v1396 = vmul.f32 %v1374, %v1392
        %v1397 = vmul.f32 %v1376, %v1393
        %v1398 = vmul.f32 %v1378, %v1394
        %v1399 = vpack.c.bf16 %v1395, %v1395
        %v1400 = vpack.c.bf16 %v1396, %v1396
        %v1401 = vpack.c.bf16 %v1397, %v1397
        %v1402 = vpack.c.bf16 %v1398, %v1398
        %v1404 = vsel %vm1170, %v1399, 0
        %vm1406 = vcmask 1043456
        %v1408 = vsel %vm1406, %v1166, 0
        %1410 = vmatprep.subr.bf16.mxu0 0
        %1411 = vmatpush1.bf16.msra.mxu0 %v1408
        %1412 = vmatprep.subr.bf16.mxu0 0
        %1413 = vmatpush1.bf16.msra.mxu0 0
        %1414 = vmatprep.subr.bf16.mxu0 0
        %1415 = vmatpush1.bf16.msra.mxu0 0
        %1416 = vmatprep.subr.bf16.mxu0 0
        %1417 = vmatpush1.bf16.msra.mxu0 0
        %1418 = vmatprep.subr.bf16.mxu0 0
        %1419 = vmatpush1.bf16.msra.mxu0 0
        %1420 = vmatprep.subr.bf16.mxu0 0
        %1421 = vmatpush1.bf16.msra.mxu0 0
        %1422 = vmatprep.subr.bf16.mxu0 0
        %1423 = vmatpush1.bf16.msra.mxu0 0
        %1424 = vmatprep.subr.bf16.mxu0 0
        %1425 = vmatpush1.bf16.msra.mxu0 0
        %1426 = vmatprep.subr.bf16.mxu0 0
        %1427 = vmatpush1.bf16.msra.mxu0 0
        %1428 = vmatprep.subr.bf16.mxu0 0
        %1429 = vmatpush1.bf16.msra.mxu0 0
        %1430 = vmatprep.subr.bf16.mxu0 0
        %1431 = vmatpush1.bf16.msra.mxu0 0
        %1432 = vmatprep.subr.bf16.mxu0 0
        %1433 = vmatpush1.bf16.msra.mxu0 0
        %1434 = vmatprep.subr.bf16.mxu0 0
        %1435 = vmatpush1.bf16.msra.mxu0 0
        %1436 = vmatprep.subr.bf16.mxu0 0
        %1437 = vmatpush1.bf16.msra.mxu0 0
        %1438 = vmatprep.subr.bf16.mxu0 0
        %1439 = vmatpush1.bf16.msra.mxu0 0
        %1440 = vmatprep.subr.bf16.mxu0 0
        %1441 = vmatpush1.bf16.msra.mxu0 0
        %1442 = vmatprep.mubr.bf16.mxu0 0
        %1443 = vmatmul.mubr.bf16.gmra.mrb[0].mxu0 %v1404
        %v1444 = vpop.f32.mrb[0].mxu0
        %v1445 = vadd.f32 0.0, %v1444
        %v1446 = vpop.f32.mrb[0].mxu0
        %v1447 = vpop.f32.mrb[0].mxu0
        %v1448 = vpop.f32.mrb[0].mxu0
        %1449 = vdwg.mxu0
        %v1451 = vsel %vm1170, %v1400, 0
        %v1454 = vsel %vm1406, %v1167, 0
        %1456 = vmatprep.subr.bf16.mxu0 0
        %1457 = vmatpush1.bf16.msra.mxu0 %v1454
        %1458 = vmatprep.subr.bf16.mxu0 0
        %1459 = vmatpush1.bf16.msra.mxu0 0
        %1460 = vmatprep.subr.bf16.mxu0 0
        %1461 = vmatpush1.bf16.msra.mxu0 0
        %1462 = vmatprep.subr.bf16.mxu0 0
        %1463 = vmatpush1.bf16.msra.mxu0 0
        %1464 = vmatprep.subr.bf16.mxu0 0
        %1465 = vmatpush1.bf16.msra.mxu0 0
        %1466 = vmatprep.subr.bf16.mxu0 0
        %1467 = vmatpush1.bf16.msra.mxu0 0
        %1468 = vmatprep.subr.bf16.mxu0 0
        %1469 = vmatpush1.bf16.msra.mxu0 0
        %1470 = vmatprep.subr.bf16.mxu0 0
        %1471 = vmatpush1.bf16.msra.mxu0 0
        %1472 = vmatprep.subr.bf16.mxu0 0
        %1473 = vmatpush1.bf16.msra.mxu0 0
        %1474 = vmatprep.subr.bf16.mxu0 0
        %1475 = vmatpush1.bf16.msra.mxu0 0
        %1476 = vmatprep.subr.bf16.mxu0 0
        %1477 = vmatpush1.bf16.msra.mxu0 0
        %1478 = vmatprep.subr.bf16.mxu0 0
        %1479 = vmatpush1.bf16.msra.mxu0 0
        %1480 = vmatprep.subr.bf16.mxu0 0
        %1481 = vmatpush1.bf16.msra.mxu0 0
        %1482 = vmatprep.subr.bf16.mxu0 0
        %1483 = vmatpush1.bf16.msra.mxu0 0
        %1484 = vmatprep.subr.bf16.mxu0 0
        %1485 = vmatpush1.bf16.msra.mxu0 0
        %1486 = vmatprep.subr.bf16.mxu0 0
        %1487 = vmatpush1.bf16.msra.mxu0 0
        %1488 = vmatprep.mubr.bf16.mxu0 0
        %1489 = vmatmul.mubr.bf16.gmra.mrb[0].mxu0 %v1451
        %v1490 = vpop.f32.mrb[0].mxu0
        %v1491 = vadd.f32 0.0, %v1490
        %v1492 = vpop.f32.mrb[0].mxu0
        %v1493 = vpop.f32.mrb[0].mxu0
        %v1494 = vpop.f32.mrb[0].mxu0
        %1495 = vdwg.mxu0
        %v1497 = vsel %vm1170, %v1401, 0
        %v1500 = vsel %vm1406, %v1168, 0
        %1502 = vmatprep.subr.bf16.mxu0 0
        %1503 = vmatpush1.bf16.msra.mxu0 %v1500
        %1504 = vmatprep.subr.bf16.mxu0 0
        %1505 = vmatpush1.bf16.msra.mxu0 0
        %1506 = vmatprep.subr.bf16.mxu0 0
        %1507 = vmatpush1.bf16.msra.mxu0 0
        %1508 = vmatprep.subr.bf16.mxu0 0
        %1509 = vmatpush1.bf16.msra.mxu0 0
        %1510 = vmatprep.subr.bf16.mxu0 0
        %1511 = vmatpush1.bf16.msra.mxu0 0
        %1512 = vmatprep.subr.bf16.mxu0 0
        %1513 = vmatpush1.bf16.msra.mxu0 0
        %1514 = vmatprep.subr.bf16.mxu0 0
        %1515 = vmatpush1.bf16.msra.mxu0 0
        %1516 = vmatprep.subr.bf16.mxu0 0
        %1517 = vmatpush1.bf16.msra.mxu0 0
        %1518 = vmatprep.subr.bf16.mxu0 0
        %1519 = vmatpush1.bf16.msra.mxu0 0
        %1520 = vmatprep.subr.bf16.mxu0 0
        %1521 = vmatpush1.bf16.msra.mxu0 0
        %1522 = vmatprep.subr.bf16.mxu0 0
        %1523 = vmatpush1.bf16.msra.mxu0 0
        %1524 = vmatprep.subr.bf16.mxu0 0
        %1525 = vmatpush1.bf16.msra.mxu0 0
        %1526 = vmatprep.subr.bf16.mxu0 0
        %1527 = vmatpush1.bf16.msra.mxu0 0
        %1528 = vmatprep.subr.bf16.mxu0 0
        %1529 = vmatpush1.bf16.msra.mxu0 0
        %1530 = vmatprep.subr.bf16.mxu0 0
        %1531 = vmatpush1.bf16.msra.mxu0 0
        %1532 = vmatprep.subr.bf16.mxu0 0
        %1533 = vmatpush1.bf16.msra.mxu0 0
        %1534 = vmatprep.mubr.bf16.mxu0 0
        %1535 = vmatmul.mubr.bf16.gmra.mrb[0].mxu0 %v1497
        %v1536 = vpop.f32.mrb[0].mxu0
        %v1537 = vadd.f32 0.0, %v1536
        %v1538 = vpop.f32.mrb[0].mxu0
        %v1539 = vpop.f32.mrb[0].mxu0
        %v1540 = vpop.f32.mrb[0].mxu0
        %1541 = vdwg.mxu0
        %v1543 = vsel %vm1170, %v1402, 0
        %v1546 = vsel %vm1406, %v1169, 0
        %1548 = vmatprep.subr.bf16.mxu0 0
        %1549 = vmatpush1.bf16.msra.mxu0 %v1546
        %1550 = vmatprep.subr.bf16.mxu0 0
        %1551 = vmatpush1.bf16.msra.mxu0 0
        %1552 = vmatprep.subr.bf16.mxu0 0
        %1553 = vmatpush1.bf16.msra.mxu0 0
        %1554 = vmatprep.subr.bf16.mxu0 0
        %1555 = vmatpush1.bf16.msra.mxu0 0
        %1556 = vmatprep.subr.bf16.mxu0 0
        %1557 = vmatpush1.bf16.msra.mxu0 0
        %1558 = vmatprep.subr.bf16.mxu0 0
        %1559 = vmatpush1.bf16.msra.mxu0 0
        %1560 = vmatprep.subr.bf16.mxu0 0
        %1561 = vmatpush1.bf16.msra.mxu0 0
        %1562 = vmatprep.subr.bf16.mxu0 0
        %1563 = vmatpush1.bf16.msra.mxu0 0
        %1564 = vmatprep.subr.bf16.mxu0 0
        %1565 = vmatpush1.bf16.msra.mxu0 0
        %1566 = vmatprep.subr.bf16.mxu0 0
        %1567 = vmatpush1.bf16.msra.mxu0 0
        %1568 = vmatprep.subr.bf16.mxu0 0
        %1569 = vmatpush1.bf16.msra.mxu0 0
        %1570 = vmatprep.subr.bf16.mxu0 0
        %1571 = vmatpush1.bf16.msra.mxu0 0
        %1572 = vmatprep.subr.bf16.mxu0 0
        %1573 = vmatpush1.bf16.msra.mxu0 0
        %1574 = vmatprep.subr.bf16.mxu0 0
        %1575 = vmatpush1.bf16.msra.mxu0 0
        %1576 = vmatprep.subr.bf16.mxu0 0
        %1577 = vmatpush1.bf16.msra.mxu0 0
        %1578 = vmatprep.subr.bf16.mxu0 0
        %1579 = vmatpush1.bf16.msra.mxu0 0
        %1580 = vmatprep.mubr.bf16.mxu0 0
        %1581 = vmatmul.mubr.bf16.gmra.mrb[0].mxu0 %v1543
        %v1582 = vpop.f32.mrb[0].mxu0
        %v1583 = vadd.f32 0.0, %v1582
        %v1584 = vpop.f32.mrb[0].mxu0
        %v1585 = vpop.f32.mrb[0].mxu0
        %v1586 = vpop.f32.mrb[0].mxu0
        %1587 = vdwg.mxu0
        %v1588 = vpack.c.bf16 %v1445, %v1445
        %v1589 = vpack.c.bf16 %v1491, %v1491
        %v1590 = vpack.c.bf16 %v1537, %v1537
        %v1591 = vpack.c.bf16 %v1583, %v1583
        %v1593 = vsel %vm1170, %v1588, 0
        %v1596 = vsel %vm1406, %v704, 0
        %1598 = vmatprep.subr.bf16.mxu0 0
        %1599 = vmatpush1.bf16.msra.mxu0 %v1596
        %1600 = vmatprep.subr.bf16.mxu0 0
        %1601 = vmatpush1.bf16.msra.mxu0 0
        %1602 = vmatprep.subr.bf16.mxu0 0
        %1603 = vmatpush1.bf16.msra.mxu0 0
        %1604 = vmatprep.subr.bf16.mxu0 0
        %1605 = vmatpush1.bf16.msra.mxu0 0
        %1606 = vmatprep.subr.bf16.mxu0 0
        %1607 = vmatpush1.bf16.msra.mxu0 0
        %1608 = vmatprep.subr.bf16.mxu0 0
        %1609 = vmatpush1.bf16.msra.mxu0 0
        %1610 = vmatprep.subr.bf16.mxu0 0
        %1611 = vmatpush1.bf16.msra.mxu0 0
        %1612 = vmatprep.subr.bf16.mxu0 0
        %1613 = vmatpush1.bf16.msra.mxu0 0
        %1614 = vmatprep.subr.bf16.mxu0 0
        %1615 = vmatpush1.bf16.msra.mxu0 0
        %1616 = vmatprep.subr.bf16.mxu0 0
        %1617 = vmatpush1.bf16.msra.mxu0 0
        %1618 = vmatprep.subr.bf16.mxu0 0
        %1619 = vmatpush1.bf16.msra.mxu0 0
        %1620 = vmatprep.subr.bf16.mxu0 0
        %1621 = vmatpush1.bf16.msra.mxu0 0
        %1622 = vmatprep.subr.bf16.mxu0 0
        %1623 = vmatpush1.bf16.msra.mxu0 0
        %1624 = vmatprep.subr.bf16.mxu0 0
        %1625 = vmatpush1.bf16.msra.mxu0 0
        %1626 = vmatprep.subr.bf16.mxu0 0
        %1627 = vmatpush1.bf16.msra.mxu0 0
        %1628 = vmatprep.subr.bf16.mxu0 0
        %1629 = vmatpush1.bf16.msra.mxu0 0
        %1630 = vmatprep.mubr.bf16.mxu0 0
        %1631 = vmatmul.mubr.bf16.gmra.mrb[0].mxu0 %v1593
        %v1632 = vpop.f32.mrb[0].mxu0
        %v1633 = vadd.f32 0.0, %v1632
        %v1634 = vpop.f32.mrb[0].mxu0
        %v1635 = vpop.f32.mrb[0].mxu0
        %v1636 = vpop.f32.mrb[0].mxu0
        %1637 = vdwg.mxu0
        %v1639 = vsel %vm1170, %v1589, 0
        %v1642 = vsel %vm1406, %v705, 0
        %1644 = vmatprep.subr.bf16.mxu0 0
        %1645 = vmatpush1.bf16.msra.mxu0 %v1642
        %1646 = vmatprep.subr.bf16.mxu0 0
        %1647 = vmatpush1.bf16.msra.mxu0 0
        %1648 = vmatprep.subr.bf16.mxu0 0
        %1649 = vmatpush1.bf16.msra.mxu0 0
        %1650 = vmatprep.subr.bf16.mxu0 0
        %1651 = vmatpush1.bf16.msra.mxu0 0
        %1652 = vmatprep.subr.bf16.mxu0 0
        %1653 = vmatpush1.bf16.msra.mxu0 0
        %1654 = vmatprep.subr.bf16.mxu0 0
        %1655 = vmatpush1.bf16.msra.mxu0 0
        %1656 = vmatprep.subr.bf16.mxu0 0
        %1657 = vmatpush1.bf16.msra.mxu0 0
        %1658 = vmatprep.subr.bf16.mxu0 0
        %1659 = vmatpush1.bf16.msra.mxu0 0
        %1660 = vmatprep.subr.bf16.mxu0 0
        %1661 = vmatpush1.bf16.msra.mxu0 0
        %1662 = vmatprep.subr.bf16.mxu0 0
        %1663 = vmatpush1.bf16.msra.mxu0 0
        %1664 = vmatprep.subr.bf16.mxu0 0
        %1665 = vmatpush1.bf16.msra.mxu0 0
        %1666 = vmatprep.subr.bf16.mxu0 0
        %1667 = vmatpush1.bf16.msra.mxu0 0
        %1668 = vmatprep.subr.bf16.mxu0 0
        %1669 = vmatpush1.bf16.msra.mxu0 0
        %1670 = vmatprep.subr.bf16.mxu0 0
        %1671 = vmatpush1.bf16.msra.mxu0 0
        %1672 = vmatprep.subr.bf16.mxu0 0
        %1673 = vmatpush1.bf16.msra.mxu0 0
        %1674 = vmatprep.subr.bf16.mxu0 0
        %1675 = vmatpush1.bf16.msra.mxu0 0
        %1676 = vmatprep.mubr.bf16.mxu0 0
        %1677 = vmatmul.mubr.bf16.gmra.mrb[0].mxu0 %v1639
        %v1678 = vpop.f32.mrb[0].mxu0
        %v1679 = vadd.f32 0.0, %v1678
        %v1680 = vpop.f32.mrb[0].mxu0
        %v1681 = vpop.f32.mrb[0].mxu0
        %v1682 = vpop.f32.mrb[0].mxu0
        %1683 = vdwg.mxu0
        %v1685 = vsel %vm1170, %v1590, 0
        %v1688 = vsel %vm1406, %v706, 0
        %1690 = vmatprep.subr.bf16.mxu0 0
        %1691 = vmatpush1.bf16.msra.mxu0 %v1688
        %1692 = vmatprep.subr.bf16.mxu0 0
        %1693 = vmatpush1.bf16.msra.mxu0 0
        %1694 = vmatprep.subr.bf16.mxu0 0
        %1695 = vmatpush1.bf16.msra.mxu0 0
        %1696 = vmatprep.subr.bf16.mxu0 0
        %1697 = vmatpush1.bf16.msra.mxu0 0
        %1698 = vmatprep.subr.bf16.mxu0 0
        %1699 = vmatpush1.bf16.msra.mxu0 0
        %1700 = vmatprep.subr.bf16.mxu0 0
        %1701 = vmatpush1.bf16.msra.mxu0 0
        %1702 = vmatprep.subr.bf16.mxu0 0
        %1703 = vmatpush1.bf16.msra.mxu0 0
        %1704 = vmatprep.subr.bf16.mxu0 0
        %1705 = vmatpush1.bf16.msra.mxu0 0
        %1706 = vmatprep.subr.bf16.mxu0 0
        %1707 = vmatpush1.bf16.msra.mxu0 0
        %1708 = vmatprep.subr.bf16.mxu0 0
        %1709 = vmatpush1.bf16.msra.mxu0 0
        %1710 = vmatprep.subr.bf16.mxu0 0
        %1711 = vmatpush1.bf16.msra.mxu0 0
        %1712 = vmatprep.subr.bf16.mxu0 0
        %1713 = vmatpush1.bf16.msra.mxu0 0
        %1714 = vmatprep.subr.bf16.mxu0 0
        %1715 = vmatpush1.bf16.msra.mxu0 0
        %1716 = vmatprep.subr.bf16.mxu0 0
        %1717 = vmatpush1.bf16.msra.mxu0 0
        %1718 = vmatprep.subr.bf16.mxu0 0
        %1719 = vmatpush1.bf16.msra.mxu0 0
        %1720 = vmatprep.subr.bf16.mxu0 0
        %1721 = vmatpush1.bf16.msra.mxu0 0
        %1722 = vmatprep.mubr.bf16.mxu0 0
        %1723 = vmatmul.mubr.bf16.gmra.mrb[0].mxu0 %v1685
        %v1724 = vpop.f32.mrb[0].mxu0
        %v1725 = vadd.f32 0.0, %v1724
        %v1726 = vpop.f32.mrb[0].mxu0
        %v1727 = vpop.f32.mrb[0].mxu0
        %v1728 = vpop.f32.mrb[0].mxu0
        %1729 = vdwg.mxu0
        %v1731 = vsel %vm1170, %v1591, 0
        %v1734 = vsel %vm1406, %v707, 0
        %1736 = vmatprep.subr.bf16.mxu0 0
        %1737 = vmatpush1.bf16.msra.mxu0 %v1734
        %1738 = vmatprep.subr.bf16.mxu0 0
        %1739 = vmatpush1.bf16.msra.mxu0 0
        %1740 = vmatprep.subr.bf16.mxu0 0
        %1741 = vmatpush1.bf16.msra.mxu0 0
        %1742 = vmatprep.subr.bf16.mxu0 0
        %1743 = vmatpush1.bf16.msra.mxu0 0
        %1744 = vmatprep.subr.bf16.mxu0 0
        %1745 = vmatpush1.bf16.msra.mxu0 0
        %1746 = vmatprep.subr.bf16.mxu0 0
        %1747 = vmatpush1.bf16.msra.mxu0 0
        %1748 = vmatprep.subr.bf16.mxu0 0
        %1749 = vmatpush1.bf16.msra.mxu0 0
        %1750 = vmatprep.subr.bf16.mxu0 0
        %1751 = vmatpush1.bf16.msra.mxu0 0
        %1752 = vmatprep.subr.bf16.mxu0 0
        %1753 = vmatpush1.bf16.msra.mxu0 0
        %1754 = vmatprep.subr.bf16.mxu0 0
        %1755 = vmatpush1.bf16.msra.mxu0 0
        %1756 = vmatprep.subr.bf16.mxu0 0
        %1757 = vmatpush1.bf16.msra.mxu0 0
        %1758 = vmatprep.subr.bf16.mxu0 0
        %1759 = vmatpush1.bf16.msra.mxu0 0
        %1760 = vmatprep.subr.bf16.mxu0 0
        %1761 = vmatpush1.bf16.msra.mxu0 0
        %1762 = vmatprep.subr.bf16.mxu0 0
        %1763 = vmatpush1.bf16.msra.mxu0 0
        %1764 = vmatprep.subr.bf16.mxu0 0
        %1765 = vmatpush1.bf16.msra.mxu0 0
        %1766 = vmatprep.subr.bf16.mxu0 0
        %1767 = vmatpush1.bf16.msra.mxu0 0
        %1768 = vmatprep.mubr.bf16.mxu0 0
        %1769 = vmatmul.mubr.bf16.gmra.mrb[0].mxu0 %v1731
        %v1770 = vpop.f32.mrb[0].mxu0
        %v1771 = vadd.f32 0.0, %v1770
        %v1772 = vpop.f32.mrb[0].mxu0
        %v1773 = vpop.f32.mrb[0].mxu0
        %v1774 = vpop.f32.mrb[0].mxu0
        %1775 = vdwg.mxu0
        %v1776 = vsel %vm660, %v1633, 0.0
        %v1777 = vsel %vm660, %v1679, 0.0
        %v1778 = vadd.f32 %v1776, %v1777
        %v1779 = vsel %vm660, %v1725, 0.0
        %v1780 = vadd.f32 %v1778, %v1779
        %v1781 = vsel %vm660, %v1771, 0.0
        %v1782 = vadd.f32 %v1780, %v1781
        %v1783 = vlaneseq
        %v1784 = vshrl.u32 %v1783, 7
        %v1785 = vsub.s32 0, %v1784
        %v1786 = vrot.slane %v628, %v1785
        %v1787 = vadd.f32 %v1782, %v1786
        %v1788 = vadd.f32 %v626, %v1787
        %v1789 = vsel %vm660, %v1788, 0.0
        %1790 = vadd.xlane.f32.xlu0 %v1789
        %v1791 = vpop.xlane.xlu0 %1790
        %v1792 = vrcp.pop 32.0
        %v1793 = vmul.f32 %v1791, %v1792
        %v1794 = vsub.f32 %v1788, %v1793
        %v1795 = vmul.f32 %v1794, %v1794
        %v1796 = vsel %vm660, %v1795, 0.0
        %1797 = vadd.xlane.f32.xlu0 %v1796
        %v1798 = vpop.xlane.xlu0 %1797
        %v1799 = vmul.f32 %v1798, %v1792
        %v1800 = vadd.f32 %v1799, 1e-05
        %v1801 = vrsqrt.pop %v1800
        %v1802 = vmul.f32 %v1794, %v1801
        %v1803 = vlaneseq
        %v1804 = vshrl.u32 %v1803, 7
        %v1805 = vsub.s32 4, %v1804
        %v1806 = vrot.slane %v628, %v1805
        %v1807 = vmul.f32 %v1802, %v1806
        %v1808 = vlaneseq
        %v1809 = vshrl.u32 %v1808, 7
        %v1810 = vsub.s32 5, %v1809
        %v1811 = vrot.slane %v628, %v1810
        %v1812 = vadd.f32 %v1807, %v1811
        %v1813 = vpack.c.bf16 %v1812, %v1812
        %v1814 = vld [vmem:[#allocation2] sm:$0xf]
        %v1815 = vld [vmem:[#allocation2 + $0x4] sm:$0xf]
        %v1816 = vld [vmem:[#allocation2 + $0x8] sm:$0xf]
        %v1817 = vld [vmem:[#allocation2 + $0xc] sm:$0xf]
        %v1818 = vlaneseq
        %v1819 = vshrl.u32 %v1818, 7
        %v1820 = vsub.s32 1, %v1819
        %v1821 = vrot.slane %v628, %v1820
        %v1826 = vunpack.c.l.b16 %v1814
        %v1827 = vunpack.c.l.b16 %v1815
        %v1828 = vunpack.c.l.b16 %v1816
        %v1829 = vunpack.c.l.b16 %v1817
        %v1830 = vpack.c.b16 %v1827, %v1826
        %v1831 = vpack.c.b16 %v1829, %v1828
        %v1835 = vsel %vm660, %v1813, 0
        %1837 = vmatprep.subr.bf16.mxu0 0
        %1838 = vmatpush1.bf16.msra.mxu0 %v1830
        %1839 = vmatprep.subr.bf16.mxu0 0
        %1840 = vmatpush1.bf16.msra.mxu0 %v1831
        %1841 = vmatprep.subr.bf16.mxu0 0
        %1842 = vmatpush1.bf16.msra.mxu0 0
        %1843 = vmatprep.subr.bf16.mxu0 0
        %1844 = vmatpush1.bf16.msra.mxu0 0
        %1845 = vmatprep.subr.bf16.mxu0 0
        %1846 = vmatpush1.bf16.msra.mxu0 0
        %1847 = vmatprep.subr.bf16.mxu0 0
        %1848 = vmatpush1.bf16.msra.mxu0 0
        %1849 = vmatprep.subr.bf16.mxu0 0
        %1850 = vmatpush1.bf16.msra.mxu0 0
        %1851 = vmatprep.subr.bf16.mxu0 0
        %1852 = vmatpush1.bf16.msra.mxu0 0
        %1853 = vmatprep.subr.bf16.mxu0 0
        %1854 = vmatpush1.bf16.msra.mxu0 0
        %1855 = vmatprep.subr.bf16.mxu0 0
        %1856 = vmatpush1.bf16.msra.mxu0 0
        %1857 = vmatprep.subr.bf16.mxu0 0
        %1858 = vmatpush1.bf16.msra.mxu0 0
        %1859 = vmatprep.subr.bf16.mxu0 0
        %1860 = vmatpush1.bf16.msra.mxu0 0
        %1861 = vmatprep.subr.bf16.mxu0 0
        %1862 = vmatpush1.bf16.msra.mxu0 0
        %1863 = vmatprep.subr.bf16.mxu0 0
        %1864 = vmatpush1.bf16.msra.mxu0 0
        %1865 = vmatprep.subr.bf16.mxu0 0
        %1866 = vmatpush1.bf16.msra.mxu0 0
        %1867 = vmatprep.subr.bf16.mxu0 0
        %1868 = vmatpush1.bf16.msra.mxu0 0
        %1869 = vmatprep.mubr.bf16.mxu0 0
        %1870 = vmatmul.mubr.bf16.gmra.mrb[0].mxu0 %v1835
        %v1871 = vpop.f32.mrb[0].mxu0
        %v1872 = vadd.f32 %v1821, %v1871
        %v1873 = vpop.f32.mrb[0].mxu0
        %v1874 = vpop.f32.mrb[0].mxu0
        %v1875 = vpop.f32.mrb[0].mxu0
        %1876 = vdwg.mxu0
        %v1877 = vpack.c.bf16 %v627, %v627
        %v1878 = vld [vmem:[#allocation5] sm:$0xf]
        %v1879 = vld [vmem:[#allocation5 + $0x4] sm:$0xf]
        %v1880 = vld [vmem:[#allocation5 + $0x8] sm:$0xf]
        %v1881 = vld [vmem:[#allocation5 + $0xc] sm:$0xf]
        %v1882 = vld [vmem:[#allocation7] sm:$0x1]
        %v1884 = vlaneseq
        %v1885 = vshrl.u32 %v1884, 7
        %v1886 = vsub.s32 0, %v1885
        %v1887 = vrot.slane %v1882, %v1886
        %v1893 = vunpack.c.l.b16 %v1878
        %v1894 = vunpack.c.l.b16 %v1879
        %v1895 = vunpack.c.l.b16 %v1880
        %v1896 = vunpack.c.l.b16 %v1881
        %v1897 = vpack.c.b16 %v1894, %v1893
        %v1898 = vpack.c.b16 %v1896, %v1895
        %v1902 = vsel %vm660, %v1877, 0
        %1904 = vmatprep.subr.bf16.mxu0 0
        %1905 = vmatpush1.bf16.msra.mxu0 %v1897
        %1906 = vmatprep.subr.bf16.mxu0 0
        %1907 = vmatpush1.bf16.msra.mxu0 %v1898
        %1908 = vmatprep.subr.bf16.mxu0 0
        %1909 = vmatpush1.bf16.msra.mxu0 0
        %1910 = vmatprep.subr.bf16.mxu0 0
        %1911 = vmatpush1.bf16.msra.mxu0 0
        %1912 = vmatprep.subr.bf16.mxu0 0
        %1913 = vmatpush1.bf16.msra.mxu0 0
        %1914 = vmatprep.subr.bf16.mxu0 0
        %1915 = vmatpush1.bf16.msra.mxu0 0
        %1916 = vmatprep.subr.bf16.mxu0 0
        %1917 = vmatpush1.bf16.msra.mxu0 0
        %1918 = vmatprep.subr.bf16.mxu0 0
        %1919 = vmatpush1.bf16.msra.mxu0 0
        %1920 = vmatprep.subr.bf16.mxu0 0
        %1921 = vmatpush1.bf16.msra.mxu0 0
        %1922 = vmatprep.subr.bf16.mxu0 0
        %1923 = vmatpush1.bf16.msra.mxu0 0
        %1924 = vmatprep.subr.bf16.mxu0 0
        %1925 = vmatpush1.bf16.msra.mxu0 0
        %1926 = vmatprep.subr.bf16.mxu0 0
        %1927 = vmatpush1.bf16.msra.mxu0 0
        %1928 = vmatprep.subr.bf16.mxu0 0
        %1929 = vmatpush1.bf16.msra.mxu0 0
        %1930 = vmatprep.subr.bf16.mxu0 0
        %1931 = vmatpush1.bf16.msra.mxu0 0
        %1932 = vmatprep.subr.bf16.mxu0 0
        %1933 = vmatpush1.bf16.msra.mxu0 0
        %1934 = vmatprep.subr.bf16.mxu0 0
        %1935 = vmatpush1.bf16.msra.mxu0 0
        %1936 = vmatprep.mubr.bf16.mxu0 0
        %1937 = vmatmul.mubr.bf16.gmra.mrb[0].mxu0 %v1902
        %v1938 = vpop.f32.mrb[0].mxu0
        %v1939 = vadd.f32 %v1887, %v1938
        %v1940 = vpop.f32.mrb[0].mxu0
        %v1941 = vpop.f32.mrb[0].mxu0
        %v1942 = vpop.f32.mrb[0].mxu0
        %1943 = vdwg.mxu0
        %v1944 = vld [vmem:[#allocation8] sm:$0xf]
        %v1945 = vld [vmem:[#allocation8 + $0x4] sm:$0xf]
        %v1946 = vld [vmem:[#allocation8 + $0x8] sm:$0xf]
        %v1947 = vld [vmem:[#allocation8 + $0xc] sm:$0xf]
        %v1948 = vmul.f32 %v1872, 0.35355338
        %1950 = vrot.lane.b32.xlu0 %v1948, 120
        %v1951 = vpop.permute.xlu0 %1950
        %1953 = vrot.lane.b32.xlu0 %v1948, 112
        %v1954 = vpop.permute.xlu0 %1953
        %1956 = vrot.lane.b32.xlu0 %v1948, 104
        %v1957 = vpop.permute.xlu0 %1956
        %v1959 = vcombine.low %v1948, %v1954
        %v1960 = vcombine.high %v1948, %v1954
        %v1962 = vunpack.c.l.s4 1983009808
        %v1963 = vunpack.c.0.s8 %v1962
        %v1964 = vlaneseq
        %v1965 = vshrl.u32 %v1964, 7
        %v1966 = vsub.s32 %v1963, %v1965
        %v1967 = vrot.slane %v1959, %v1966
        %v1969 = vunpack.c.l.s4 1983009808
        %v1970 = vunpack.c.0.s8 %v1969
        %v1971 = vlaneseq
        %v1972 = vshrl.u32 %v1971, 7
        %v1973 = vsub.s32 %v1970, %v1972
        %v1974 = vrot.slane %v1960, %v1973
        %v1975 = vcombine.low %v1951, %v1957
        %v1976 = vcombine.high %v1951, %v1957
        %v1978 = vunpack.c.l.s4 1983009808
        %v1979 = vunpack.c.0.s8 %v1978
        %v1980 = vlaneseq
        %v1981 = vshrl.u32 %v1980, 7
        %v1982 = vsub.s32 %v1979, %v1981
        %v1983 = vrot.slane %v1975, %v1982
        %v1985 = vunpack.c.l.s4 1983009808
        %v1986 = vunpack.c.0.s8 %v1985
        %v1987 = vlaneseq
        %v1988 = vshrl.u32 %v1987, 7
        %v1989 = vsub.s32 %v1986, %v1988
        %v1990 = vrot.slane %v1976, %v1989
        %v1991 = vcombine.low %v1967, %v1983
        %v1992 = vcombine.high %v1967, %v1983
        %v1994 = vunpack.c.l.s4 1934713408
        %v1995 = vunpack.c.0.s8 %v1994
        %v1996 = vlaneseq
        %v1997 = vshrl.u32 %v1996, 7
        %v1998 = vsub.s32 %v1995, %v1997
        %v1999 = vrot.slane %v1991, %v1998
        %v2001 = vunpack.c.l.s4 1934713408
        %v2002 = vunpack.c.0.s8 %v2001
        %v2003 = vlaneseq
        %v2004 = vshrl.u32 %v2003, 7
        %v2005 = vsub.s32 %v2002, %v2004
        %v2006 = vrot.slane %v1992, %v2005
        %v2007 = vcombine.low %v1974, %v1990
        %v2008 = vcombine.high %v1974, %v1990
        %v2010 = vunpack.c.l.s4 1934713408
        %v2011 = vunpack.c.0.s8 %v2010
        %v2012 = vlaneseq
        %v2013 = vshrl.u32 %v2012, 7
        %v2014 = vsub.s32 %v2011, %v2013
        %v2015 = vrot.slane %v2007, %v2014
        %v2017 = vunpack.c.l.s4 1934713408
        %v2018 = vunpack.c.0.s8 %v2017
        %v2019 = vlaneseq
        %v2020 = vshrl.u32 %v2019, 7
        %v2021 = vsub.s32 %v2018, %v2020
        %v2022 = vrot.slane %v2008, %v2021
        %v2023 = vcombine.high %v1999, 0.0
        %v2024 = vcombine.high %v2006, 0.0
        %v2025 = vcombine.high %v2015, 0.0
        %v2026 = vcombine.high %v2022, 0.0
        %v2027 = vcombine.low %v1999, %v2006
        %v2029 = vunpack.c.l.s4 1983009808
        %v2030 = vunpack.c.0.s8 %v2029
        %v2031 = vlaneseq
        %v2032 = vshrl.u32 %v2031, 7
        %v2033 = vsub.s32 %v2030, %v2032
        %v2034 = vrot.slane %v2027, %v2033
        %v2035 = vcombine.low %v2023, %v2024
        %v2037 = vunpack.c.l.s4 1983009808
        %v2038 = vunpack.c.0.s8 %v2037
        %v2039 = vlaneseq
        %v2040 = vshrl.u32 %v2039, 7
        %v2041 = vsub.s32 %v2038, %v2040
        %v2042 = vrot.slane %v2035, %v2041
        %v2043 = vcombine.low %v2015, %v2022
        %v2045 = vunpack.c.l.s4 1983009808
        %v2046 = vunpack.c.0.s8 %v2045
        %v2047 = vlaneseq
        %v2048 = vshrl.u32 %v2047, 7
        %v2049 = vsub.s32 %v2046, %v2048
        %v2050 = vrot.slane %v2043, %v2049
        %v2051 = vcombine.low %v2025, %v2026
        %v2053 = vunpack.c.l.s4 1983009808
        %v2054 = vunpack.c.0.s8 %v2053
        %v2055 = vlaneseq
        %v2056 = vshrl.u32 %v2055, 7
        %v2057 = vsub.s32 %v2054, %v2056
        %v2058 = vrot.slane %v2051, %v2057
        %v2059 = vcombine.low %v2034, %v2042
        %v2060 = vcombine.high %v2034, %v2042
        %v2062 = vunpack.c.l.s4 1934713408
        %v2063 = vunpack.c.0.s8 %v2062
        %v2064 = vlaneseq
        %v2065 = vshrl.u32 %v2064, 7
        %v2066 = vsub.s32 %v2063, %v2065
        %v2067 = vrot.slane %v2059, %v2066
        %v2069 = vunpack.c.l.s4 1934713408
        %v2070 = vunpack.c.0.s8 %v2069
        %v2071 = vlaneseq
        %v2072 = vshrl.u32 %v2071, 7
        %v2073 = vsub.s32 %v2070, %v2072
        %v2074 = vrot.slane %v2060, %v2073
        %v2075 = vcombine.low %v2050, %v2058
        %v2076 = vcombine.high %v2050, %v2058
        %v2078 = vunpack.c.l.s4 1934713408
        %v2079 = vunpack.c.0.s8 %v2078
        %v2080 = vlaneseq
        %v2081 = vshrl.u32 %v2080, 7
        %v2082 = vsub.s32 %v2079, %v2081
        %v2083 = vrot.slane %v2075, %v2082
        %v2085 = vunpack.c.l.s4 1934713408
        %v2086 = vunpack.c.0.s8 %v2085
        %v2087 = vlaneseq
        %v2088 = vshrl.u32 %v2087, 7
        %v2089 = vsub.s32 %v2086, %v2088
        %v2090 = vrot.slane %v2076, %v2089
        %v2091 = vcombine.low %v2067, %v2083
        %v2092 = vcombine.high %v2067, %v2083
        %v2093 = vcombine.low %v2074, %v2090
        %v2094 = vcombine.high %v2074, %v2090
        %v2095 = vpack.c.bf16 %v2091, %v2091
        %v2096 = vpack.c.bf16 %v2092, %v2092
        %v2097 = vpack.c.bf16 %v2093, %v2093
        %v2098 = vpack.c.bf16 %v2094, %v2094
        %2100 = vrot.lane.b32.xlu0 %v1939, 120
        %v2101 = vpop.permute.xlu0 %2100
        %2103 = vrot.lane.b32.xlu0 %v1939, 112
        %v2104 = vpop.permute.xlu0 %2103
        %2106 = vrot.lane.b32.xlu0 %v1939, 104
        %v2107 = vpop.permute.xlu0 %2106
        %v2109 = vcombine.low %v1939, %v2104
        %v2110 = vcombine.high %v1939, %v2104
        %v2112 = vunpack.c.l.s4 1983009808
        %v2113 = vunpack.c.0.s8 %v2112
        %v2114 = vlaneseq
        %v2115 = vshrl.u32 %v2114, 7
        %v2116 = vsub.s32 %v2113, %v2115
        %v2117 = vrot.slane %v2109, %v2116
        %v2119 = vunpack.c.l.s4 1983009808
        %v2120 = vunpack.c.0.s8 %v2119
        %v2121 = vlaneseq
        %v2122 = vshrl.u32 %v2121, 7
        %v2123 = vsub.s32 %v2120, %v2122
        %v2124 = vrot.slane %v2110, %v2123
        %v2125 = vcombine.low %v2101, %v2107
        %v2126 = vcombine.high %v2101, %v2107
        %v2128 = vunpack.c.l.s4 1983009808
        %v2129 = vunpack.c.0.s8 %v2128
        %v2130 = vlaneseq
        %v2131 = vshrl.u32 %v2130, 7
        %v2132 = vsub.s32 %v2129, %v2131
        %v2133 = vrot.slane %v2125, %v2132
        %v2135 = vunpack.c.l.s4 1983009808
        %v2136 = vunpack.c.0.s8 %v2135
        %v2137 = vlaneseq
        %v2138 = vshrl.u32 %v2137, 7
        %v2139 = vsub.s32 %v2136, %v2138
        %v2140 = vrot.slane %v2126, %v2139
        %v2141 = vcombine.low %v2117, %v2133
        %v2142 = vcombine.high %v2117, %v2133
        %v2144 = vunpack.c.l.s4 1934713408
        %v2145 = vunpack.c.0.s8 %v2144
        %v2146 = vlaneseq
        %v2147 = vshrl.u32 %v2146, 7
        %v2148 = vsub.s32 %v2145, %v2147
        %v2149 = vrot.slane %v2141, %v2148
        %v2151 = vunpack.c.l.s4 1934713408
        %v2152 = vunpack.c.0.s8 %v2151
        %v2153 = vlaneseq
        %v2154 = vshrl.u32 %v2153, 7
        %v2155 = vsub.s32 %v2152, %v2154
        %v2156 = vrot.slane %v2142, %v2155
        %v2157 = vcombine.low %v2124, %v2140
        %v2158 = vcombine.high %v2124, %v2140
        %v2160 = vunpack.c.l.s4 1934713408
        %v2161 = vunpack.c.0.s8 %v2160
        %v2162 = vlaneseq
        %v2163 = vshrl.u32 %v2162, 7
        %v2164 = vsub.s32 %v2161, %v2163
        %v2165 = vrot.slane %v2157, %v2164
        %v2167 = vunpack.c.l.s4 1934713408
        %v2168 = vunpack.c.0.s8 %v2167
        %v2169 = vlaneseq
        %v2170 = vshrl.u32 %v2169, 7
        %v2171 = vsub.s32 %v2168, %v2170
        %v2172 = vrot.slane %v2158, %v2171
        %v2173 = vcombine.high %v2149, 0.0
        %v2174 = vcombine.high %v2156, 0.0
        %v2175 = vcombine.high %v2165, 0.0
        %v2176 = vcombine.high %v2172, 0.0
        %v2177 = vcombine.low %v2149, %v2156
        %v2179 = vunpack.c.l.s4 1983009808
        %v2180 = vunpack.c.0.s8 %v2179
        %v2181 = vlaneseq
        %v2182 = vshrl.u32 %v2181, 7
        %v2183 = vsub.s32 %v2180, %v2182
        %v2184 = vrot.slane %v2177, %v2183
        %v2185 = vcombine.low %v2173, %v2174
        %v2187 = vunpack.c.l.s4 1983009808
        %v2188 = vunpack.c.0.s8 %v2187
        %v2189 = vlaneseq
        %v2190 = vshrl.u32 %v2189, 7
        %v2191 = vsub.s32 %v2188, %v2190
        %v2192 = vrot.slane %v2185, %v2191
        %v2193 = vcombine.low %v2165, %v2172
        %v2195 = vunpack.c.l.s4 1983009808
        %v2196 = vunpack.c.0.s8 %v2195
        %v2197 = vlaneseq
        %v2198 = vshrl.u32 %v2197, 7
        %v2199 = vsub.s32 %v2196, %v2198
        %v2200 = vrot.slane %v2193, %v2199
        %v2201 = vcombine.low %v2175, %v2176
        %v2203 = vunpack.c.l.s4 1983009808
        %v2204 = vunpack.c.0.s8 %v2203
        %v2205 = vlaneseq
        %v2206 = vshrl.u32 %v2205, 7
        %v2207 = vsub.s32 %v2204, %v2206
        %v2208 = vrot.slane %v2201, %v2207
        %v2209 = vcombine.low %v2184, %v2192
        %v2210 = vcombine.high %v2184, %v2192
        %v2212 = vunpack.c.l.s4 1934713408
        %v2213 = vunpack.c.0.s8 %v2212
        %v2214 = vlaneseq
        %v2215 = vshrl.u32 %v2214, 7
        %v2216 = vsub.s32 %v2213, %v2215
        %v2217 = vrot.slane %v2209, %v2216
        %v2219 = vunpack.c.l.s4 1934713408
        %v2220 = vunpack.c.0.s8 %v2219
        %v2221 = vlaneseq
        %v2222 = vshrl.u32 %v2221, 7
        %v2223 = vsub.s32 %v2220, %v2222
        %v2224 = vrot.slane %v2210, %v2223
        %v2225 = vcombine.low %v2200, %v2208
        %v2226 = vcombine.high %v2200, %v2208
        %v2228 = vunpack.c.l.s4 1934713408
        %v2229 = vunpack.c.0.s8 %v2228
        %v2230 = vlaneseq
        %v2231 = vshrl.u32 %v2230, 7
        %v2232 = vsub.s32 %v2229, %v2231
        %v2233 = vrot.slane %v2225, %v2232
        %v2235 = vunpack.c.l.s4 1934713408
        %v2236 = vunpack.c.0.s8 %v2235
        %v2237 = vlaneseq
        %v2238 = vshrl.u32 %v2237, 7
        %v2239 = vsub.s32 %v2236, %v2238
        %v2240 = vrot.slane %v2226, %v2239
        %v2241 = vcombine.low %v2217, %v2233
        %v2242 = vcombine.high %v2217, %v2233
        %v2243 = vcombine.low %v2224, %v2240
        %v2244 = vcombine.high %v2224, %v2240
        %v2245 = vpack.c.bf16 %v2241, %v2241
        %v2246 = vpack.c.bf16 %v2242, %v2242
        %v2247 = vpack.c.bf16 %v2243, %v2243
        %v2248 = vpack.c.bf16 %v2244, %v2244
        %2249 = vrot.lane.b32.xlu0 %v1939, 96
        %v2250 = vpop.permute.xlu0 %2249
        %2251 = vrot.lane.b32.xlu0 %v2101, 96
        %v2252 = vpop.permute.xlu0 %2251
        %2253 = vrot.lane.b32.xlu0 %v2104, 96
        %v2254 = vpop.permute.xlu0 %2253
        %2255 = vrot.lane.b32.xlu0 %v2107, 96
        %v2256 = vpop.permute.xlu0 %2255
        %v2261 = vcombine.low %v2250, %v2254
        %v2262 = vcombine.high %v2250, %v2254
        %v2264 = vunpack.c.l.s4 1983009808
        %v2265 = vunpack.c.0.s8 %v2264
        %v2266 = vlaneseq
        %v2267 = vshrl.u32 %v2266, 7
        %v2268 = vsub.s32 %v2265, %v2267
        %v2269 = vrot.slane %v2261, %v2268
        %v2271 = vunpack.c.l.s4 1983009808
        %v2272 = vunpack.c.0.s8 %v2271
        %v2273 = vlaneseq
        %v2274 = vshrl.u32 %v2273, 7
        %v2275 = vsub.s32 %v2272, %v2274
        %v2276 = vrot.slane %v2262, %v2275
        %v2277 = vcombine.low %v2252, %v2256
        %v2278 = vcombine.high %v2252, %v2256
        %v2280 = vunpack.c.l.s4 1983009808
        %v2281 = vunpack.c.0.s8 %v2280
        %v2282 = vlaneseq
        %v2283 = vshrl.u32 %v2282, 7
        %v2284 = vsub.s32 %v2281, %v2283
        %v2285 = vrot.slane %v2277, %v2284
        %v2287 = vunpack.c.l.s4 1983009808
        %v2288 = vunpack.c.0.s8 %v2287
        %v2289 = vlaneseq
        %v2290 = vshrl.u32 %v2289, 7
        %v2291 = vsub.s32 %v2288, %v2290
        %v2292 = vrot.slane %v2278, %v2291
        %v2293 = vcombine.low %v2269, %v2285
        %v2294 = vcombine.high %v2269, %v2285
        %v2296 = vunpack.c.l.s4 1934713408
        %v2297 = vunpack.c.0.s8 %v2296
        %v2298 = vlaneseq
        %v2299 = vshrl.u32 %v2298, 7
        %v2300 = vsub.s32 %v2297, %v2299
        %v2301 = vrot.slane %v2293, %v2300
        %v2303 = vunpack.c.l.s4 1934713408
        %v2304 = vunpack.c.0.s8 %v2303
        %v2305 = vlaneseq
        %v2306 = vshrl.u32 %v2305, 7
        %v2307 = vsub.s32 %v2304, %v2306
        %v2308 = vrot.slane %v2294, %v2307
        %v2309 = vcombine.low %v2276, %v2292
        %v2310 = vcombine.high %v2276, %v2292
        %v2312 = vunpack.c.l.s4 1934713408
        %v2313 = vunpack.c.0.s8 %v2312
        %v2314 = vlaneseq
        %v2315 = vshrl.u32 %v2314, 7
        %v2316 = vsub.s32 %v2313, %v2315
        %v2317 = vrot.slane %v2309, %v2316
        %v2319 = vunpack.c.l.s4 1934713408
        %v2320 = vunpack.c.0.s8 %v2319
        %v2321 = vlaneseq
        %v2322 = vshrl.u32 %v2321, 7
        %v2323 = vsub.s32 %v2320, %v2322
        %v2324 = vrot.slane %v2310, %v2323
        %v2325 = vcombine.high %v2301, 0.0
        %v2326 = vcombine.high %v2308, 0.0
        %v2327 = vcombine.high %v2317, 0.0
        %v2328 = vcombine.high %v2324, 0.0
        %v2329 = vcombine.low %v2301, %v2308
        %v2331 = vunpack.c.l.s4 1983009808
        %v2332 = vunpack.c.0.s8 %v2331
        %v2333 = vlaneseq
        %v2334 = vshrl.u32 %v2333, 7
        %v2335 = vsub.s32 %v2332, %v2334
        %v2336 = vrot.slane %v2329, %v2335
        %v2337 = vcombine.low %v2325, %v2326
        %v2339 = vunpack.c.l.s4 1983009808
        %v2340 = vunpack.c.0.s8 %v2339
        %v2341 = vlaneseq
        %v2342 = vshrl.u32 %v2341, 7
        %v2343 = vsub.s32 %v2340, %v2342
        %v2344 = vrot.slane %v2337, %v2343
        %v2345 = vcombine.low %v2317, %v2324
        %v2347 = vunpack.c.l.s4 1983009808
        %v2348 = vunpack.c.0.s8 %v2347
        %v2349 = vlaneseq
        %v2350 = vshrl.u32 %v2349, 7
        %v2351 = vsub.s32 %v2348, %v2350
        %v2352 = vrot.slane %v2345, %v2351
        %v2353 = vcombine.low %v2327, %v2328
        %v2355 = vunpack.c.l.s4 1983009808
        %v2356 = vunpack.c.0.s8 %v2355
        %v2357 = vlaneseq
        %v2358 = vshrl.u32 %v2357, 7
        %v2359 = vsub.s32 %v2356, %v2358
        %v2360 = vrot.slane %v2353, %v2359
        %v2361 = vcombine.low %v2336, %v2344
        %v2362 = vcombine.high %v2336, %v2344
        %v2364 = vunpack.c.l.s4 1934713408
        %v2365 = vunpack.c.0.s8 %v2364
        %v2366 = vlaneseq
        %v2367 = vshrl.u32 %v2366, 7
        %v2368 = vsub.s32 %v2365, %v2367
        %v2369 = vrot.slane %v2361, %v2368
        %v2371 = vunpack.c.l.s4 1934713408
        %v2372 = vunpack.c.0.s8 %v2371
        %v2373 = vlaneseq
        %v2374 = vshrl.u32 %v2373, 7
        %v2375 = vsub.s32 %v2372, %v2374
        %v2376 = vrot.slane %v2362, %v2375
        %v2377 = vcombine.low %v2352, %v2360
        %v2378 = vcombine.high %v2352, %v2360
        %v2380 = vunpack.c.l.s4 1934713408
        %v2381 = vunpack.c.0.s8 %v2380
        %v2382 = vlaneseq
        %v2383 = vshrl.u32 %v2382, 7
        %v2384 = vsub.s32 %v2381, %v2383
        %v2385 = vrot.slane %v2377, %v2384
        %v2387 = vunpack.c.l.s4 1934713408
        %v2388 = vunpack.c.0.s8 %v2387
        %v2389 = vlaneseq
        %v2390 = vshrl.u32 %v2389, 7
        %v2391 = vsub.s32 %v2388, %v2390
        %v2392 = vrot.slane %v2378, %v2391
        %v2393 = vcombine.low %v2369, %v2385
        %v2394 = vcombine.high %v2369, %v2385
        %v2395 = vcombine.low %v2376, %v2392
        %v2396 = vcombine.high %v2376, %v2392
        %v2397 = vpack.c.bf16 %v2393, %v2393
        %v2398 = vpack.c.bf16 %v2394, %v2394
        %v2399 = vpack.c.bf16 %v2395, %v2395
        %v2400 = vpack.c.bf16 %v2396, %v2396
        %v2402 = vsel %vm1170, %v2095, 0
        %v2405 = vsel %vm1170, %v2245, 0
        %2407 = vmatprep.subr.bf16.mxu0 0
        %2408 = vmatpush1.bf16.xpose.msra.mxu0 %v2405
        %2409 = vmatprep.subr.bf16.mxu0 0
        %2410 = vmatpush1.bf16.xpose.msra.mxu0 0
        %2411 = vmatprep.subr.bf16.mxu0 0
        %2412 = vmatpush1.bf16.xpose.msra.mxu0 0
        %2413 = vmatprep.subr.bf16.mxu0 0
        %2414 = vmatpush1.bf16.xpose.msra.mxu0 0
        %2415 = vmatprep.subr.bf16.mxu0 0
        %2416 = vmatpush1.bf16.xpose.msra.mxu0 0
        %2417 = vmatprep.subr.bf16.mxu0 0
        %2418 = vmatpush1.bf16.xpose.msra.mxu0 0
        %2419 = vmatprep.subr.bf16.mxu0 0
        %2420 = vmatpush1.bf16.xpose.msra.mxu0 0
        %2421 = vmatprep.subr.bf16.mxu0 0
        %2422 = vmatpush1.bf16.xpose.msra.mxu0 0
        %2423 = vmatprep.subr.bf16.mxu0 0
        %2424 = vmatpush1.bf16.xpose.msra.mxu0 0
        %2425 = vmatprep.subr.bf16.mxu0 0
        %2426 = vmatpush1.bf16.xpose.msra.mxu0 0
        %2427 = vmatprep.subr.bf16.mxu0 0
        %2428 = vmatpush1.bf16.xpose.msra.mxu0 0
        %2429 = vmatprep.subr.bf16.mxu0 0
        %2430 = vmatpush1.bf16.xpose.msra.mxu0 0
        %2431 = vmatprep.subr.bf16.mxu0 0
        %2432 = vmatpush1.bf16.xpose.msra.mxu0 0
        %2433 = vmatprep.subr.bf16.mxu0 0
        %2434 = vmatpush1.bf16.xpose.msra.mxu0 0
        %2435 = vmatprep.subr.bf16.mxu0 0
        %2436 = vmatpush1.bf16.xpose.msra.mxu0 0
        %2437 = vmatprep.subr.bf16.mxu0 0
        %2438 = vmatpush1.bf16.xpose.msra.mxu0 0
        %2439 = vmatprep.mubr.bf16.mxu0 0
        %2440 = vmatmul.mubr.bf16.gmra.mrb[0].mxu0 %v2402
        %v2441 = vpop.f32.mrb[0].mxu0
        %v2442 = vadd.f32 %v635, %v2441
        %v2443 = vpop.f32.mrb[0].mxu0
        %v2444 = vpop.f32.mrb[0].mxu0
        %v2445 = vpop.f32.mrb[0].mxu0
        %2446 = vdwg.mxu0
        %v2448 = vsel %vm1170, %v2096, 0
        %v2451 = vsel %vm1170, %v2246, 0
        %2453 = vmatprep.subr.bf16.mxu0 0
        %2454 = vmatpush1.bf16.xpose.msra.mxu0 %v2451
        %2455 = vmatprep.subr.bf16.mxu0 0
        %2456 = vmatpush1.bf16.xpose.msra.mxu0 0
        %2457 = vmatprep.subr.bf16.mxu0 0
        %2458 = vmatpush1.bf16.xpose.msra.mxu0 0
        %2459 = vmatprep.subr.bf16.mxu0 0
        %2460 = vmatpush1.bf16.xpose.msra.mxu0 0
        %2461 = vmatprep.subr.bf16.mxu0 0
        %2462 = vmatpush1.bf16.xpose.msra.mxu0 0
        %2463 = vmatprep.subr.bf16.mxu0 0
        %2464 = vmatpush1.bf16.xpose.msra.mxu0 0
        %2465 = vmatprep.subr.bf16.mxu0 0
        %2466 = vmatpush1.bf16.xpose.msra.mxu0 0
        %2467 = vmatprep.subr.bf16.mxu0 0
        %2468 = vmatpush1.bf16.xpose.msra.mxu0 0
        %2469 = vmatprep.subr.bf16.mxu0 0
        %2470 = vmatpush1.bf16.xpose.msra.mxu0 0
        %2471 = vmatprep.subr.bf16.mxu0 0
        %2472 = vmatpush1.bf16.xpose.msra.mxu0 0
        %2473 = vmatprep.subr.bf16.mxu0 0
        %2474 = vmatpush1.bf16.xpose.msra.mxu0 0
        %2475 = vmatprep.subr.bf16.mxu0 0
        %2476 = vmatpush1.bf16.xpose.msra.mxu0 0
        %2477 = vmatprep.subr.bf16.mxu0 0
        %2478 = vmatpush1.bf16.xpose.msra.mxu0 0
        %2479 = vmatprep.subr.bf16.mxu0 0
        %2480 = vmatpush1.bf16.xpose.msra.mxu0 0
        %2481 = vmatprep.subr.bf16.mxu0 0
        %2482 = vmatpush1.bf16.xpose.msra.mxu0 0
        %2483 = vmatprep.subr.bf16.mxu0 0
        %2484 = vmatpush1.bf16.xpose.msra.mxu0 0
        %2485 = vmatprep.mubr.bf16.mxu0 0
        %2486 = vmatmul.mubr.bf16.gmra.mrb[0].mxu0 %v2448
        %v2487 = vpop.f32.mrb[0].mxu0
        %v2488 = vadd.f32 %v635, %v2487
        %v2489 = vpop.f32.mrb[0].mxu0
        %v2490 = vpop.f32.mrb[0].mxu0
        %v2491 = vpop.f32.mrb[0].mxu0
        %2492 = vdwg.mxu0
        %v2494 = vsel %vm1170, %v2097, 0
        %v2497 = vsel %vm1170, %v2247, 0
        %2499 = vmatprep.subr.bf16.mxu0 0
        %2500 = vmatpush1.bf16.xpose.msra.mxu0 %v2497
        %2501 = vmatprep.subr.bf16.mxu0 0
        %2502 = vmatpush1.bf16.xpose.msra.mxu0 0
        %2503 = vmatprep.subr.bf16.mxu0 0
        %2504 = vmatpush1.bf16.xpose.msra.mxu0 0
        %2505 = vmatprep.subr.bf16.mxu0 0
        %2506 = vmatpush1.bf16.xpose.msra.mxu0 0
        %2507 = vmatprep.subr.bf16.mxu0 0
        %2508 = vmatpush1.bf16.xpose.msra.mxu0 0
        %2509 = vmatprep.subr.bf16.mxu0 0
        %2510 = vmatpush1.bf16.xpose.msra.mxu0 0
        %2511 = vmatprep.subr.bf16.mxu0 0
        %2512 = vmatpush1.bf16.xpose.msra.mxu0 0
        %2513 = vmatprep.subr.bf16.mxu0 0
        %2514 = vmatpush1.bf16.xpose.msra.mxu0 0
        %2515 = vmatprep.subr.bf16.mxu0 0
        %2516 = vmatpush1.bf16.xpose.msra.mxu0 0
        %2517 = vmatprep.subr.bf16.mxu0 0
        %2518 = vmatpush1.bf16.xpose.msra.mxu0 0
        %2519 = vmatprep.subr.bf16.mxu0 0
        %2520 = vmatpush1.bf16.xpose.msra.mxu0 0
        %2521 = vmatprep.subr.bf16.mxu0 0
        %2522 = vmatpush1.bf16.xpose.msra.mxu0 0
        %2523 = vmatprep.subr.bf16.mxu0 0
        %2524 = vmatpush1.bf16.xpose.msra.mxu0 0
        %2525 = vmatprep.subr.bf16.mxu0 0
        %2526 = vmatpush1.bf16.xpose.msra.mxu0 0
        %2527 = vmatprep.subr.bf16.mxu0 0
        %2528 = vmatpush1.bf16.xpose.msra.mxu0 0
        %2529 = vmatprep.subr.bf16.mxu0 0
        %2530 = vmatpush1.bf16.xpose.msra.mxu0 0
        %2531 = vmatprep.mubr.bf16.mxu0 0
        %2532 = vmatmul.mubr.bf16.gmra.mrb[0].mxu0 %v2494
        %v2533 = vpop.f32.mrb[0].mxu0
        %v2534 = vadd.f32 %v635, %v2533
        %v2535 = vpop.f32.mrb[0].mxu0
        %v2536 = vpop.f32.mrb[0].mxu0
        %v2537 = vpop.f32.mrb[0].mxu0
        %2538 = vdwg.mxu0
        %v2540 = vsel %vm1170, %v2098, 0
        %v2543 = vsel %vm1170, %v2248, 0
        %2545 = vmatprep.subr.bf16.mxu0 0
        %2546 = vmatpush1.bf16.xpose.msra.mxu0 %v2543
        %2547 = vmatprep.subr.bf16.mxu0 0
        %2548 = vmatpush1.bf16.xpose.msra.mxu0 0
        %2549 = vmatprep.subr.bf16.mxu0 0
        %2550 = vmatpush1.bf16.xpose.msra.mxu0 0
        %2551 = vmatprep.subr.bf16.mxu0 0
        %2552 = vmatpush1.bf16.xpose.msra.mxu0 0
        %2553 = vmatprep.subr.bf16.mxu0 0
        %2554 = vmatpush1.bf16.xpose.msra.mxu0 0
        %2555 = vmatprep.subr.bf16.mxu0 0
        %2556 = vmatpush1.bf16.xpose.msra.mxu0 0
        %2557 = vmatprep.subr.bf16.mxu0 0
        %2558 = vmatpush1.bf16.xpose.msra.mxu0 0
        %2559 = vmatprep.subr.bf16.mxu0 0
        %2560 = vmatpush1.bf16.xpose.msra.mxu0 0
        %2561 = vmatprep.subr.bf16.mxu0 0
        %2562 = vmatpush1.bf16.xpose.msra.mxu0 0
        %2563 = vmatprep.subr.bf16.mxu0 0
        %2564 = vmatpush1.bf16.xpose.msra.mxu0 0
        %2565 = vmatprep.subr.bf16.mxu0 0
        %2566 = vmatpush1.bf16.xpose.msra.mxu0 0
        %2567 = vmatprep.subr.bf16.mxu0 0
        %2568 = vmatpush1.bf16.xpose.msra.mxu0 0
        %2569 = vmatprep.subr.bf16.mxu0 0
        %2570 = vmatpush1.bf16.xpose.msra.mxu0 0
        %2571 = vmatprep.subr.bf16.mxu0 0
        %2572 = vmatpush1.bf16.xpose.msra.mxu0 0
        %2573 = vmatprep.subr.bf16.mxu0 0
        %2574 = vmatpush1.bf16.xpose.msra.mxu0 0
        %2575 = vmatprep.subr.bf16.mxu0 0
        %2576 = vmatpush1.bf16.xpose.msra.mxu0 0
        %2577 = vmatprep.mubr.bf16.mxu0 0
        %2578 = vmatmul.mubr.bf16.gmra.mrb[0].mxu0 %v2540
        %v2579 = vpop.f32.mrb[0].mxu0
        %v2580 = vadd.f32 %v635, %v2579
        %v2581 = vpop.f32.mrb[0].mxu0
        %v2582 = vpop.f32.mrb[0].mxu0
        %v2583 = vpop.f32.mrb[0].mxu0
        %2584 = vdwg.mxu0
        %v2585 = vsel %vm1170, %v2442, -inf
        %2586 = vmax.xlane.f32.xlu0 %v2585
        %v2587 = vpop.xlane.xlu0 %2586
        %v2588 = vsel %vm1170, %v2488, -inf
        %2589 = vmax.xlane.f32.xlu0 %v2588
        %v2590 = vpop.xlane.xlu0 %2589
        %v2591 = vsel %vm1170, %v2534, -inf
        %2592 = vmax.xlane.f32.xlu0 %v2591
        %v2593 = vpop.xlane.xlu0 %2592
        %v2594 = vsel %vm1170, %v2580, -inf
        %2595 = vmax.xlane.f32.xlu0 %v2594
        %v2596 = vpop.xlane.xlu0 %2595
        %v2597 = vsub.f32 %v2442, %v2587
        %v2598 = vsub.f32 %v2488, %v2590
        %v2599 = vsub.f32 %v2534, %v2593
        %v2600 = vsub.f32 %v2580, %v2596
        %v2601 = vmul.f32 %v2597, 1.442695
        %v2602 = vpow.pop %v2601
        %v2603 = vmul.f32 %v2598, 1.442695
        %v2604 = vpow.pop %v2603
        %v2605 = vmul.f32 %v2599, 1.442695
        %v2606 = vpow.pop %v2605
        %v2607 = vmul.f32 %v2600, 1.442695
        %v2608 = vpow.pop %v2607
        %v2609 = vsel %vm1170, %v2602, 0.0
        %2610 = vadd.xlane.f32.xlu0 %v2609
        %v2611 = vpop.xlane.xlu0 %2610
        %v2612 = vsel %vm1170, %v2604, 0.0
        %2613 = vadd.xlane.f32.xlu0 %v2612
        %v2614 = vpop.xlane.xlu0 %2613
        %v2615 = vsel %vm1170, %v2606, 0.0
        %2616 = vadd.xlane.f32.xlu0 %v2615
        %v2617 = vpop.xlane.xlu0 %2616
        %v2618 = vsel %vm1170, %v2608, 0.0
        %2619 = vadd.xlane.f32.xlu0 %v2618
        %v2620 = vpop.xlane.xlu0 %2619
        %v2621 = vrcp.pop %v2611
        %v2622 = vrcp.pop %v2614
        %v2623 = vrcp.pop %v2617
        %v2624 = vrcp.pop %v2620
        %v2625 = vmul.f32 %v2602, %v2621
        %v2626 = vmul.f32 %v2604, %v2622
        %v2627 = vmul.f32 %v2606, %v2623
        %v2628 = vmul.f32 %v2608, %v2624
        %v2629 = vpack.c.bf16 %v2625, %v2625
        %v2630 = vpack.c.bf16 %v2626, %v2626
        %v2631 = vpack.c.bf16 %v2627, %v2627
        %v2632 = vpack.c.bf16 %v2628, %v2628
        %v2634 = vsel %vm1170, %v2629, 0
        %v2637 = vsel %vm1406, %v2397, 0
        %2639 = vmatprep.subr.bf16.mxu0 0
        %2640 = vmatpush1.bf16.msra.mxu0 %v2637
        %2641 = vmatprep.subr.bf16.mxu0 0
        %2642 = vmatpush1.bf16.msra.mxu0 0
        %2643 = vmatprep.subr.bf16.mxu0 0
        %2644 = vmatpush1.bf16.msra.mxu0 0
        %2645 = vmatprep.subr.bf16.mxu0 0
        %2646 = vmatpush1.bf16.msra.mxu0 0
        %2647 = vmatprep.subr.bf16.mxu0 0
        %2648 = vmatpush1.bf16.msra.mxu0 0
        %2649 = vmatprep.subr.bf16.mxu0 0
        %2650 = vmatpush1.bf16.msra.mxu0 0
        %2651 = vmatprep.subr.bf16.mxu0 0
        %2652 = vmatpush1.bf16.msra.mxu0 0
        %2653 = vmatprep.subr.bf16.mxu0 0
        %2654 = vmatpush1.bf16.msra.mxu0 0
        %2655 = vmatprep.subr.bf16.mxu0 0
        %2656 = vmatpush1.bf16.msra.mxu0 0
        %2657 = vmatprep.subr.bf16.mxu0 0
        %2658 = vmatpush1.bf16.msra.mxu0 0
        %2659 = vmatprep.subr.bf16.mxu0 0
        %2660 = vmatpush1.bf16.msra.mxu0 0
        %2661 = vmatprep.subr.bf16.mxu0 0
        %2662 = vmatpush1.bf16.msra.mxu0 0
        %2663 = vmatprep.subr.bf16.mxu0 0
        %2664 = vmatpush1.bf16.msra.mxu0 0
        %2665 = vmatprep.subr.bf16.mxu0 0
        %2666 = vmatpush1.bf16.msra.mxu0 0
        %2667 = vmatprep.subr.bf16.mxu0 0
        %2668 = vmatpush1.bf16.msra.mxu0 0
        %2669 = vmatprep.subr.bf16.mxu0 0
        %2670 = vmatpush1.bf16.msra.mxu0 0
        %2671 = vmatprep.mubr.bf16.mxu0 0
        %2672 = vmatmul.mubr.bf16.gmra.mrb[0].mxu0 %v2634
        %v2673 = vpop.f32.mrb[0].mxu0
        %v2674 = vadd.f32 0.0, %v2673
        %v2675 = vpop.f32.mrb[0].mxu0
        %v2676 = vpop.f32.mrb[0].mxu0
        %v2677 = vpop.f32.mrb[0].mxu0
        %2678 = vdwg.mxu0
        %v2680 = vsel %vm1170, %v2630, 0
        %v2683 = vsel %vm1406, %v2398, 0
        %2685 = vmatprep.subr.bf16.mxu0 0
        %2686 = vmatpush1.bf16.msra.mxu0 %v2683
        %2687 = vmatprep.subr.bf16.mxu0 0
        %2688 = vmatpush1.bf16.msra.mxu0 0
        %2689 = vmatprep.subr.bf16.mxu0 0
        %2690 = vmatpush1.bf16.msra.mxu0 0
        %2691 = vmatprep.subr.bf16.mxu0 0
        %2692 = vmatpush1.bf16.msra.mxu0 0
        %2693 = vmatprep.subr.bf16.mxu0 0
        %2694 = vmatpush1.bf16.msra.mxu0 0
        %2695 = vmatprep.subr.bf16.mxu0 0
        %2696 = vmatpush1.bf16.msra.mxu0 0
        %2697 = vmatprep.subr.bf16.mxu0 0
        %2698 = vmatpush1.bf16.msra.mxu0 0
        %2699 = vmatprep.subr.bf16.mxu0 0
        %2700 = vmatpush1.bf16.msra.mxu0 0
        %2701 = vmatprep.subr.bf16.mxu0 0
        %2702 = vmatpush1.bf16.msra.mxu0 0
        %2703 = vmatprep.subr.bf16.mxu0 0
        %2704 = vmatpush1.bf16.msra.mxu0 0
        %2705 = vmatprep.subr.bf16.mxu0 0
        %2706 = vmatpush1.bf16.msra.mxu0 0
        %2707 = vmatprep.subr.bf16.mxu0 0
        %2708 = vmatpush1.bf16.msra.mxu0 0
        %2709 = vmatprep.subr.bf16.mxu0 0
        %2710 = vmatpush1.bf16.msra.mxu0 0
        %2711 = vmatprep.subr.bf16.mxu0 0
        %2712 = vmatpush1.bf16.msra.mxu0 0
        %2713 = vmatprep.subr.bf16.mxu0 0
        %2714 = vmatpush1.bf16.msra.mxu0 0
        %2715 = vmatprep.subr.bf16.mxu0 0
        %2716 = vmatpush1.bf16.msra.mxu0 0
        %2717 = vmatprep.mubr.bf16.mxu0 0
        %2718 = vmatmul.mubr.bf16.gmra.mrb[0].mxu0 %v2680
        %v2719 = vpop.f32.mrb[0].mxu0
        %v2720 = vadd.f32 0.0, %v2719
        %v2721 = vpop.f32.mrb[0].mxu0
        %v2722 = vpop.f32.mrb[0].mxu0
        %v2723 = vpop.f32.mrb[0].mxu0
        %2724 = vdwg.mxu0
        %v2726 = vsel %vm1170, %v2631, 0
        %v2729 = vsel %vm1406, %v2399, 0
        %2731 = vmatprep.subr.bf16.mxu0 0
        %2732 = vmatpush1.bf16.msra.mxu0 %v2729
        %2733 = vmatprep.subr.bf16.mxu0 0
        %2734 = vmatpush1.bf16.msra.mxu0 0
        %2735 = vmatprep.subr.bf16.mxu0 0
        %2736 = vmatpush1.bf16.msra.mxu0 0
        %2737 = vmatprep.subr.bf16.mxu0 0
        %2738 = vmatpush1.bf16.msra.mxu0 0
        %2739 = vmatprep.subr.bf16.mxu0 0
        %2740 = vmatpush1.bf16.msra.mxu0 0
        %2741 = vmatprep.subr.bf16.mxu0 0
        %2742 = vmatpush1.bf16.msra.mxu0 0
        %2743 = vmatprep.subr.bf16.mxu0 0
        %2744 = vmatpush1.bf16.msra.mxu0 0
        %2745 = vmatprep.subr.bf16.mxu0 0
        %2746 = vmatpush1.bf16.msra.mxu0 0
        %2747 = vmatprep.subr.bf16.mxu0 0
        %2748 = vmatpush1.bf16.msra.mxu0 0
        %2749 = vmatprep.subr.bf16.mxu0 0
        %2750 = vmatpush1.bf16.msra.mxu0 0
        %2751 = vmatprep.subr.bf16.mxu0 0
        %2752 = vmatpush1.bf16.msra.mxu0 0
        %2753 = vmatprep.subr.bf16.mxu0 0
        %2754 = vmatpush1.bf16.msra.mxu0 0
        %2755 = vmatprep.subr.bf16.mxu0 0
        %2756 = vmatpush1.bf16.msra.mxu0 0
        %2757 = vmatprep.subr.bf16.mxu0 0
        %2758 = vmatpush1.bf16.msra.mxu0 0
        %2759 = vmatprep.subr.bf16.mxu0 0
        %2760 = vmatpush1.bf16.msra.mxu0 0
        %2761 = vmatprep.subr.bf16.mxu0 0
        %2762 = vmatpush1.bf16.msra.mxu0 0
        %2763 = vmatprep.mubr.bf16.mxu0 0
        %2764 = vmatmul.mubr.bf16.gmra.mrb[0].mxu0 %v2726
        %v2765 = vpop.f32.mrb[0].mxu0
        %v2766 = vadd.f32 0.0, %v2765
        %v2767 = vpop.f32.mrb[0].mxu0
        %v2768 = vpop.f32.mrb[0].mxu0
        %v2769 = vpop.f32.mrb[0].mxu0
        %2770 = vdwg.mxu0
        %v2772 = vsel %vm1170, %v2632, 0
        %v2775 = vsel %vm1406, %v2400, 0
        %2777 = vmatprep.subr.bf16.mxu0 0
        %2778 = vmatpush1.bf16.msra.mxu0 %v2775
        %2779 = vmatprep.subr.bf16.mxu0 0
        %2780 = vmatpush1.bf16.msra.mxu0 0
        %2781 = vmatprep.subr.bf16.mxu0 0
        %2782 = vmatpush1.bf16.msra.mxu0 0
        %2783 = vmatprep.subr.bf16.mxu0 0
        %2784 = vmatpush1.bf16.msra.mxu0 0
        %2785 = vmatprep.subr.bf16.mxu0 0
        %2786 = vmatpush1.bf16.msra.mxu0 0
        %2787 = vmatprep.subr.bf16.mxu0 0
        %2788 = vmatpush1.bf16.msra.mxu0 0
        %2789 = vmatprep.subr.bf16.mxu0 0
        %2790 = vmatpush1.bf16.msra.mxu0 0
        %2791 = vmatprep.subr.bf16.mxu0 0
        %2792 = vmatpush1.bf16.msra.mxu0 0
        %2793 = vmatprep.subr.bf16.mxu0 0
        %2794 = vmatpush1.bf16.msra.mxu0 0
        %2795 = vmatprep.subr.bf16.mxu0 0
        %2796 = vmatpush1.bf16.msra.mxu0 0
        %2797 = vmatprep.subr.bf16.mxu0 0
        %2798 = vmatpush1.bf16.msra.mxu0 0
        %2799 = vmatprep.subr.bf16.mxu0 0
        %2800 = vmatpush1.bf16.msra.mxu0 0
        %2801 = vmatprep.subr.bf16.mxu0 0
        %2802 = vmatpush1.bf16.msra.mxu0 0
        %2803 = vmatprep.subr.bf16.mxu0 0
        %2804 = vmatpush1.bf16.msra.mxu0 0
        %2805 = vmatprep.subr.bf16.mxu0 0
        %2806 = vmatpush1.bf16.msra.mxu0 0
        %2807 = vmatprep.subr.bf16.mxu0 0
        %2808 = vmatpush1.bf16.msra.mxu0 0
        %2809 = vmatprep.mubr.bf16.mxu0 0
        %2810 = vmatmul.mubr.bf16.gmra.mrb[0].mxu0 %v2772
        %v2811 = vpop.f32.mrb[0].mxu0
        %v2812 = vadd.f32 0.0, %v2811
        %v2813 = vpop.f32.mrb[0].mxu0
        %v2814 = vpop.f32.mrb[0].mxu0
        %v2815 = vpop.f32.mrb[0].mxu0
        %2816 = vdwg.mxu0
        %v2817 = vpack.c.bf16 %v2674, %v2674
        %v2818 = vpack.c.bf16 %v2720, %v2720
        %v2819 = vpack.c.bf16 %v2766, %v2766
        %v2820 = vpack.c.bf16 %v2812, %v2812
        %v2822 = vsel %vm1170, %v2817, 0
        %v2825 = vsel %vm1406, %v1944, 0
        %2827 = vmatprep.subr.bf16.mxu0 0
        %2828 = vmatpush1.bf16.msra.mxu0 %v2825
        %2829 = vmatprep.subr.bf16.mxu0 0
        %2830 = vmatpush1.bf16.msra.mxu0 0
        %2831 = vmatprep.subr.bf16.mxu0 0
        %2832 = vmatpush1.bf16.msra.mxu0 0
        %2833 = vmatprep.subr.bf16.mxu0 0
        %2834 = vmatpush1.bf16.msra.mxu0 0
        %2835 = vmatprep.subr.bf16.mxu0 0
        %2836 = vmatpush1.bf16.msra.mxu0 0
        %2837 = vmatprep.subr.bf16.mxu0 0
        %2838 = vmatpush1.bf16.msra.mxu0 0
        %2839 = vmatprep.subr.bf16.mxu0 0
        %2840 = vmatpush1.bf16.msra.mxu0 0
        %2841 = vmatprep.subr.bf16.mxu0 0
        %2842 = vmatpush1.bf16.msra.mxu0 0
        %2843 = vmatprep.subr.bf16.mxu0 0
        %2844 = vmatpush1.bf16.msra.mxu0 0
        %2845 = vmatprep.subr.bf16.mxu0 0
        %2846 = vmatpush1.bf16.msra.mxu0 0
        %2847 = vmatprep.subr.bf16.mxu0 0
        %2848 = vmatpush1.bf16.msra.mxu0 0
        %2849 = vmatprep.subr.bf16.mxu0 0
        %2850 = vmatpush1.bf16.msra.mxu0 0
        %2851 = vmatprep.subr.bf16.mxu0 0
        %2852 = vmatpush1.bf16.msra.mxu0 0
        %2853 = vmatprep.subr.bf16.mxu0 0
        %2854 = vmatpush1.bf16.msra.mxu0 0
        %2855 = vmatprep.subr.bf16.mxu0 0
        %2856 = vmatpush1.bf16.msra.mxu0 0
        %2857 = vmatprep.subr.bf16.mxu0 0
        %2858 = vmatpush1.bf16.msra.mxu0 0
        %2859 = vmatprep.mubr.bf16.mxu0 0
        %2860 = vmatmul.mubr.bf16.gmra.mrb[0].mxu0 %v2822
        %v2861 = vpop.f32.mrb[0].mxu0
        %v2862 = vadd.f32 0.0, %v2861
        %v2863 = vpop.f32.mrb[0].mxu0
        %v2864 = vpop.f32.mrb[0].mxu0
        %v2865 = vpop.f32.mrb[0].mxu0
        %2866 = vdwg.mxu0
        %v2868 = vsel %vm1170, %v2818, 0
        %v2871 = vsel %vm1406, %v1945, 0
        %2873 = vmatprep.subr.bf16.mxu0 0
        %2874 = vmatpush1.bf16.msra.mxu0 %v2871
        %2875 = vmatprep.subr.bf16.mxu0 0
        %2876 = vmatpush1.bf16.msra.mxu0 0
        %2877 = vmatprep.subr.bf16.mxu0 0
        %2878 = vmatpush1.bf16.msra.mxu0 0
        %2879 = vmatprep.subr.bf16.mxu0 0
        %2880 = vmatpush1.bf16.msra.mxu0 0
        %2881 = vmatprep.subr.bf16.mxu0 0
        %2882 = vmatpush1.bf16.msra.mxu0 0
        %2883 = vmatprep.subr.bf16.mxu0 0
        %2884 = vmatpush1.bf16.msra.mxu0 0
        %2885 = vmatprep.subr.bf16.mxu0 0
        %2886 = vmatpush1.bf16.msra.mxu0 0
        %2887 = vmatprep.subr.bf16.mxu0 0
        %2888 = vmatpush1.bf16.msra.mxu0 0
        %2889 = vmatprep.subr.bf16.mxu0 0
        %2890 = vmatpush1.bf16.msra.mxu0 0
        %2891 = vmatprep.subr.bf16.mxu0 0
        %2892 = vmatpush1.bf16.msra.mxu0 0
        %2893 = vmatprep.subr.bf16.mxu0 0
        %2894 = vmatpush1.bf16.msra.mxu0 0
        %2895 = vmatprep.subr.bf16.mxu0 0
        %2896 = vmatpush1.bf16.msra.mxu0 0
        %2897 = vmatprep.subr.bf16.mxu0 0
        %2898 = vmatpush1.bf16.msra.mxu0 0
        %2899 = vmatprep.subr.bf16.mxu0 0
        %2900 = vmatpush1.bf16.msra.mxu0 0
        %2901 = vmatprep.subr.bf16.mxu0 0
        %2902 = vmatpush1.bf16.msra.mxu0 0
        %2903 = vmatprep.subr.bf16.mxu0 0
        %2904 = vmatpush1.bf16.msra.mxu0 0
        %2905 = vmatprep.mubr.bf16.mxu0 0
        %2906 = vmatmul.mubr.bf16.gmra.mrb[0].mxu0 %v2868
        %v2907 = vpop.f32.mrb[0].mxu0
        %v2908 = vadd.f32 0.0, %v2907
        %v2909 = vpop.f32.mrb[0].mxu0
        %v2910 = vpop.f32.mrb[0].mxu0
        %v2911 = vpop.f32.mrb[0].mxu0
        %2912 = vdwg.mxu0
        %v2914 = vsel %vm1170, %v2819, 0
        %v2917 = vsel %vm1406, %v1946, 0
        %2919 = vmatprep.subr.bf16.mxu0 0
        %2920 = vmatpush1.bf16.msra.mxu0 %v2917
        %2921 = vmatprep.subr.bf16.mxu0 0
        %2922 = vmatpush1.bf16.msra.mxu0 0
        %2923 = vmatprep.subr.bf16.mxu0 0
        %2924 = vmatpush1.bf16.msra.mxu0 0
        %2925 = vmatprep.subr.bf16.mxu0 0
        %2926 = vmatpush1.bf16.msra.mxu0 0
        %2927 = vmatprep.subr.bf16.mxu0 0
        %2928 = vmatpush1.bf16.msra.mxu0 0
        %2929 = vmatprep.subr.bf16.mxu0 0
        %2930 = vmatpush1.bf16.msra.mxu0 0
        %2931 = vmatprep.subr.bf16.mxu0 0
        %2932 = vmatpush1.bf16.msra.mxu0 0
        %2933 = vmatprep.subr.bf16.mxu0 0
        %2934 = vmatpush1.bf16.msra.mxu0 0
        %2935 = vmatprep.subr.bf16.mxu0 0
        %2936 = vmatpush1.bf16.msra.mxu0 0
        %2937 = vmatprep.subr.bf16.mxu0 0
        %2938 = vmatpush1.bf16.msra.mxu0 0
        %2939 = vmatprep.subr.bf16.mxu0 0
        %2940 = vmatpush1.bf16.msra.mxu0 0
        %2941 = vmatprep.subr.bf16.mxu0 0
        %2942 = vmatpush1.bf16.msra.mxu0 0
        %2943 = vmatprep.subr.bf16.mxu0 0
        %2944 = vmatpush1.bf16.msra.mxu0 0
        %2945 = vmatprep.subr.bf16.mxu0 0
        %2946 = vmatpush1.bf16.msra.mxu0 0
        %2947 = vmatprep.subr.bf16.mxu0 0
        %2948 = vmatpush1.bf16.msra.mxu0 0
        %2949 = vmatprep.subr.bf16.mxu0 0
        %2950 = vmatpush1.bf16.msra.mxu0 0
        %2951 = vmatprep.mubr.bf16.mxu0 0
        %2952 = vmatmul.mubr.bf16.gmra.mrb[0].mxu0 %v2914
        %v2953 = vpop.f32.mrb[0].mxu0
        %v2954 = vadd.f32 0.0, %v2953
        %v2955 = vpop.f32.mrb[0].mxu0
        %v2956 = vpop.f32.mrb[0].mxu0
        %v2957 = vpop.f32.mrb[0].mxu0
        %2958 = vdwg.mxu0
        %v2960 = vsel %vm1170, %v2820, 0
        %v2963 = vsel %vm1406, %v1947, 0
        %2965 = vmatprep.subr.bf16.mxu0 0
        %2966 = vmatpush1.bf16.msra.mxu0 %v2963
        %2967 = vmatprep.subr.bf16.mxu0 0
        %2968 = vmatpush1.bf16.msra.mxu0 0
        %2969 = vmatprep.subr.bf16.mxu0 0
        %2970 = vmatpush1.bf16.msra.mxu0 0
        %2971 = vmatprep.subr.bf16.mxu0 0
        %2972 = vmatpush1.bf16.msra.mxu0 0
        %2973 = vmatprep.subr.bf16.mxu0 0
        %2974 = vmatpush1.bf16.msra.mxu0 0
        %2975 = vmatprep.subr.bf16.mxu0 0
        %2976 = vmatpush1.bf16.msra.mxu0 0
        %2977 = vmatprep.subr.bf16.mxu0 0
        %2978 = vmatpush1.bf16.msra.mxu0 0
        %2979 = vmatprep.subr.bf16.mxu0 0
        %2980 = vmatpush1.bf16.msra.mxu0 0
        %2981 = vmatprep.subr.bf16.mxu0 0
        %2982 = vmatpush1.bf16.msra.mxu0 0
        %2983 = vmatprep.subr.bf16.mxu0 0
        %2984 = vmatpush1.bf16.msra.mxu0 0
        %2985 = vmatprep.subr.bf16.mxu0 0
        %2986 = vmatpush1.bf16.msra.mxu0 0
        %2987 = vmatprep.subr.bf16.mxu0 0
        %2988 = vmatpush1.bf16.msra.mxu0 0
        %2989 = vmatprep.subr.bf16.mxu0 0
        %2990 = vmatpush1.bf16.msra.mxu0 0
        %2991 = vmatprep.subr.bf16.mxu0 0
        %2992 = vmatpush1.bf16.msra.mxu0 0
        %2993 = vmatprep.subr.bf16.mxu0 0
        %2994 = vmatpush1.bf16.msra.mxu0 0
        %2995 = vmatprep.subr.bf16.mxu0 0
        %2996 = vmatpush1.bf16.msra.mxu0 0
        %2997 = vmatprep.mubr.bf16.mxu0 0
        %2998 = vmatmul.mubr.bf16.gmra.mrb[0].mxu0 %v2960
        %v2999 = vpop.f32.mrb[0].mxu0
        %v3000 = vadd.f32 0.0, %v2999
        %v3001 = vpop.f32.mrb[0].mxu0
        %v3002 = vpop.f32.mrb[0].mxu0
        %v3003 = vpop.f32.mrb[0].mxu0
        %3004 = vdwg.mxu0
        %v3005 = vsel %vm660, %v2862, 0.0
        %v3006 = vsel %vm660, %v2908, 0.0
        %v3007 = vadd.f32 %v3005, %v3006
        %v3008 = vsel %vm660, %v2954, 0.0
        %v3009 = vadd.f32 %v3007, %v3008
        %v3010 = vsel %vm660, %v3000, 0.0
        %v3011 = vadd.f32 %v3009, %v3010
        %v3012 = vlaneseq
        %v3013 = vshrl.u32 %v3012, 7
        %v3014 = vsub.s32 2, %v3013
        %v3015 = vrot.slane %v628, %v3014
        %v3016 = vadd.f32 %v3011, %v3015
        %v3017 = vadd.f32 %v1812, %v3016
        %v3018 = vsel %vm660, %v3017, 0.0
        %3019 = vadd.xlane.f32.xlu0 %v3018
        %v3020 = vpop.xlane.xlu0 %3019
        %v3021 = vmul.f32 %v3020, %v1792
        %v3022 = vsub.f32 %v3017, %v3021
        %v3023 = vmul.f32 %v3022, %v3022
        %v3024 = vsel %vm660, %v3023, 0.0
        %3025 = vadd.xlane.f32.xlu0 %v3024
        %v3026 = vpop.xlane.xlu0 %3025
        %v3027 = vmul.f32 %v3026, %v1792
        %v3028 = vadd.f32 %v3027, 1e-05
        %v3029 = vrsqrt.pop %v3028
        %v3030 = vmul.f32 %v3022, %v3029
        %v3031 = vlaneseq
        %v3032 = vshrl.u32 %v3031, 7
        %v3033 = vsub.s32 6, %v3032
        %v3034 = vrot.slane %v628, %v3033
        %v3035 = vmul.f32 %v3030, %v3034
        %v3036 = vlaneseq
        %v3037 = vshrl.u32 %v3036, 7
        %v3038 = vsub.s32 7, %v3037
        %v3039 = vrot.slane %v628, %v3038
        %v3040 = vadd.f32 %v3035, %v3039
        %v3041 = vpack.c.bf16 %v3040, %v3040
        %v3042 = vld [vmem:[#allocation10] sm:$0xf]
        %v3043 = vld [vmem:[#allocation10 + $0x4] sm:$0xf]
        %v3044 = vld [vmem:[#allocation10 + $0x8] sm:$0xf]
        %v3045 = vld [vmem:[#allocation10 + $0xc] sm:$0xf]
        %v3046 = vld [vmem:[#allocation11] sm:$0x1]
        %v3048 = vlaneseq
        %v3049 = vshrl.u32 %v3048, 7
        %v3050 = vsub.s32 0, %v3049
        %v3051 = vrot.slane %v3046, %v3050
        %v3057 = vunpack.c.l.b16 %v3042
        %v3058 = vunpack.c.l.b16 %v3043
        %v3059 = vunpack.c.l.b16 %v3044
        %v3060 = vunpack.c.l.b16 %v3045
        %v3061 = vpack.c.b16 %v3058, %v3057
        %v3062 = vpack.c.b16 %v3060, %v3059
        %v3066 = vsel %vm660, %v3041, 0
        %3068 = vmatprep.subr.bf16.mxu0 0
        %3069 = vmatpush1.bf16.msra.mxu0 %v3061
        %3070 = vmatprep.subr.bf16.mxu0 0
        %3071 = vmatpush1.bf16.msra.mxu0 %v3062
        %3072 = vmatprep.subr.bf16.mxu0 0
        %3073 = vmatpush1.bf16.msra.mxu0 0
        %3074 = vmatprep.subr.bf16.mxu0 0
        %3075 = vmatpush1.bf16.msra.mxu0 0
        %3076 = vmatprep.subr.bf16.mxu0 0
        %3077 = vmatpush1.bf16.msra.mxu0 0
        %3078 = vmatprep.subr.bf16.mxu0 0
        %3079 = vmatpush1.bf16.msra.mxu0 0
        %3080 = vmatprep.subr.bf16.mxu0 0
        %3081 = vmatpush1.bf16.msra.mxu0 0
        %3082 = vmatprep.subr.bf16.mxu0 0
        %3083 = vmatpush1.bf16.msra.mxu0 0
        %3084 = vmatprep.subr.bf16.mxu0 0
        %3085 = vmatpush1.bf16.msra.mxu0 0
        %3086 = vmatprep.subr.bf16.mxu0 0
        %3087 = vmatpush1.bf16.msra.mxu0 0
        %3088 = vmatprep.subr.bf16.mxu0 0
        %3089 = vmatpush1.bf16.msra.mxu0 0
        %3090 = vmatprep.subr.bf16.mxu0 0
        %3091 = vmatpush1.bf16.msra.mxu0 0
        %3092 = vmatprep.subr.bf16.mxu0 0
        %3093 = vmatpush1.bf16.msra.mxu0 0
        %3094 = vmatprep.subr.bf16.mxu0 0
        %3095 = vmatpush1.bf16.msra.mxu0 0
        %3096 = vmatprep.subr.bf16.mxu0 0
        %3097 = vmatpush1.bf16.msra.mxu0 0
        %3098 = vmatprep.subr.bf16.mxu0 0
        %3099 = vmatpush1.bf16.msra.mxu0 0
        %3100 = vmatprep.mubr.bf16.mxu0 0
        %3101 = vmatmul.mubr.bf16.gmra.mrb[0].mxu0 %v3066
        %v3102 = vpop.f32.mrb[0].mxu0
        %v3103 = vadd.f32 %v3051, %v3102
        %v3104 = vpop.f32.mrb[0].mxu0
        %v3105 = vpop.f32.mrb[0].mxu0
        %v3106 = vpop.f32.mrb[0].mxu0
        %3107 = vdwg.mxu0
        %v3108 = vmax.f32 %v3103, 0.0
        %v3109 = vpack.c.bf16 %v3108, %v3108
        %v3110 = vld [vmem:[%s13] sm:$0xf]
        %v3111 = vld [vmem:[%s13 + $0x4] sm:$0xf]
        %v3112 = vld [vmem:[%s13 + $0x8] sm:$0xf]
        %v3113 = vld [vmem:[%s13 + $0xc] sm:$0xf]
        %v3114 = vld [vmem:[%s13 + $0x10] sm:$0xf]
        %v3115 = vld [vmem:[%s13 + $0x14] sm:$0xf]
        %v3116 = vld [vmem:[%s13 + $0x18] sm:$0xf]
        %v3117 = vld [vmem:[%s13 + $0x1c] sm:$0xf]
        %v3118 = vlaneseq
        %v3119 = vshrl.u32 %v3118, 7
        %v3120 = vsub.s32 3, %v3119
        %v3121 = vrot.slane %v628, %v3120
        %v3130 = vunpack.c.l.b16 %v3110
        %v3131 = vunpack.c.l.b16 %v3111
        %v3132 = vunpack.c.l.b16 %v3112
        %v3133 = vunpack.c.l.b16 %v3113
        %v3134 = vunpack.c.l.b16 %v3114
        %v3135 = vunpack.c.l.b16 %v3115
        %v3136 = vunpack.c.l.b16 %v3116
        %v3137 = vunpack.c.l.b16 %v3117
        %v3138 = vpack.c.b16 %v3131, %v3130
        %v3139 = vpack.c.b16 %v3133, %v3132
        %v3140 = vpack.c.b16 %v3135, %v3134
        %v3141 = vpack.c.b16 %v3137, %v3136
        %vm3146 = vcmask 523264
        %v3148 = vsel %vm3146, %v3109, 0
        %3150 = vmatprep.subr.bf16.mxu0 0
        %3151 = vmatpush1.bf16.msra.mxu0 %v3138
        %3152 = vmatprep.subr.bf16.mxu0 0
        %3153 = vmatpush1.bf16.msra.mxu0 %v3139
        %3154 = vmatprep.subr.bf16.mxu0 0
        %3155 = vmatpush1.bf16.msra.mxu0 %v3140
        %3156 = vmatprep.subr.bf16.mxu0 0
        %3157 = vmatpush1.bf16.msra.mxu0 %v3141
        %3158 = vmatprep.subr.bf16.mxu0 0
        %3159 = vmatpush1.bf16.msra.mxu0 0
        %3160 = vmatprep.subr.bf16.mxu0 0
        %3161 = vmatpush1.bf16.msra.mxu0 0
        %3162 = vmatprep.subr.bf16.mxu0 0
        %3163 = vmatpush1.bf16.msra.mxu0 0
        %3164 = vmatprep.subr.bf16.mxu0 0
        %3165 = vmatpush1.bf16.msra.mxu0 0
        %3166 = vmatprep.subr.bf16.mxu0 0
        %3167 = vmatpush1.bf16.msra.mxu0 0
        %3168 = vmatprep.subr.bf16.mxu0 0
        %3169 = vmatpush1.bf16.msra.mxu0 0
        %3170 = vmatprep.subr.bf16.mxu0 0
        %3171 = vmatpush1.bf16.msra.mxu0 0
        %3172 = vmatprep.subr.bf16.mxu0 0
        %3173 = vmatpush1.bf16.msra.mxu0 0
        %3174 = vmatprep.subr.bf16.mxu0 0
        %3175 = vmatpush1.bf16.msra.mxu0 0
        %3176 = vmatprep.subr.bf16.mxu0 0
        %3177 = vmatpush1.bf16.msra.mxu0 0
        %3178 = vmatprep.subr.bf16.mxu0 0
        %3179 = vmatpush1.bf16.msra.mxu0 0
        %3180 = vmatprep.subr.bf16.mxu0 0
        %3181 = vmatpush1.bf16.msra.mxu0 0
        %3182 = vmatprep.mubr.bf16.mxu0 0
        %3183 = vmatmul.mubr.bf16.gmra.mrb[0].mxu0 %v3148
        %v3184 = vpop.f32.mrb[0].mxu0
        %v3185 = vadd.f32 %v3121, %v3184
        %v3186 = vpop.f32.mrb[0].mxu0
        %v3187 = vpop.f32.mrb[0].mxu0
        %v3188 = vpop.f32.mrb[0].mxu0
        %3189 = vdwg.mxu0
        %v3190 = vadd.f32 %v3040, %v3185
        %v3191 = vsel %vm660, %v3190, 0.0
        %3192 = vadd.xlane.f32.xlu0 %v3191
        %v3193 = vpop.xlane.xlu0 %3192
        %v3194 = vmul.f32 %v3193, %v1792
        %v3195 = vsub.f32 %v3190, %v3194
        %v3196 = vmul.f32 %v3195, %v3195
        %v3197 = vsel %vm660, %v3196, 0.0
        %3198 = vadd.xlane.f32.xlu0 %v3197
        %v3199 = vpop.xlane.xlu0 %3198
        %v3200 = vmul.f32 %v3199, %v1792
        %v3201 = vadd.f32 %v3200, 1e-05
        %v3202 = vrsqrt.pop %v3201
        %v3203 = vmul.f32 %v3195, %v3202
        %v3204 = vlaneseq
        %v3205 = vshrl.u32 %v3204, 7
        %v3206 = vsub.s32 0, %v3205
        %v3207 = vrot.slane %v629, %v3206
        %v3208 = vmul.f32 %v3203, %v3207
        %v3209 = vlaneseq
        %v3210 = vshrl.u32 %v3209, 7
        %v3211 = vsub.s32 1, %v3210
        %v3212 = vrot.slane %v629, %v3211
        %v3213 = vadd.f32 %v3208, %v3212
        %3214 = vst.msk [vmem:[%s608] sm:$0xff] %vm660, %v3213
        %s3215 = sand.u32 %s376, 1
        %s3216 = scalar_lea.sflag [#allocation4], %s3215
        %s3217 = sand.u32 %s376, 1
        %s3218 = smul.addr %s3217, 8
        %s3219 = scalar_lea.vmem [#allocation13], %s3218
        // Predicated region
        $region105: #{decoder_layer_forward.1} parent=79 // pred_check
          %p3220 = pneg %p386
        $region106: #{decoder_layer_forward.1} parent=79 // pred_check_branch
          %3222 = sbr.rel (%p3220) target = $region108
        $region107: #{decoder_layer_forward.1} parent=79 // pred_region
          %s3224 = ssub.s32 128, 128
          %3225 = vsyncadd %s3216, %s3224
          %s3226 = smul.addr %s33, 128
          %s3227 = scalar_lea.hbm %s15, %s3226
          %s3229 = sshll.u32 %s3219, 4
          %s3230 = int_to_ptr.vmem [resolvable:$true] %s3229
          %3232 = dma.vmem_to_hbm [thread:$0]  %s3230, 128, %s3227, %s3216
        $region108: #{decoder_layer_forward.1} parent=79 // pred_fallthru
          _
      $region80: #{decoder_layer_forward.1} parent=5 // pred_fallthru
        _
      %p3233 = scmp.le.s32.totalorder 2, %s28
      // Predicated region
      $region109: #{decoder_layer_forward.1} parent=5 // pred_check
        %p3234 = pneg %p3233
      $region110: #{decoder_layer_forward.1} parent=5 // pred_check_branch
        %3236 = sbr.rel (%p3234) target = $region112
      $region111: #{decoder_layer_forward.1} parent=5 // pred_region
        %s3237 = ssub.s32 %s28, 2
        // Predicated region
        $region113: #{decoder_layer_forward.1} parent=111 // pred_check
          %p3238 = pneg %p392
        $region114: #{decoder_layer_forward.1} parent=111 // pred_check_branch
          %3240 = sbr.rel (%p3238) target = $region116
        $region115: #{decoder_layer_forward.1} parent=111 // pred_region
          %s3241 = sand.u32 %s377, 1
          %s3242 = scalar_lea.sflag [#allocation4], %s3241
          %s3243 = sand.u32 %s377, 1
          %s3244 = smul.addr %s3243, 8
          %s3245 = scalar_lea.vmem [#allocation13], %s3244
          %3246 = dma.done %s3242, 128
        $region116: #{decoder_layer_forward.1} parent=111 // pred_fallthru
          _
      $region112: #{decoder_layer_forward.1} parent=5 // pred_fallthru
        _
    $region6: #{decoder_layer_forward.1} parent=1 // loop_footer
      %s32 = sadd.s32 1, %s28
    $region7: #{decoder_layer_forward.1} parent=1 // loop_footer_branch
      %27 = sbr.rel target = $region3
    $region8: #{decoder_layer_forward.1} parent=1 // loop_exit
      _
    %3247 = vsyncpa [#allocation3], 1
    %s3248 = scalar_lea.sflag [#allocation3], 1
    %3249 = vsyncpa %s3248, 1
    %3250 = vsyncpa [#allocation6], 1
    %3251 = vsyncpa [#allocation9], 1
    %3252 = vsyncpa [#allocation12], 1
    %3253 = vsyncpa [#allocation4], 1
    %s3254 = scalar_lea.sflag [#allocation4], 1
    %3255 = vsyncpa %s3254, 1

</llo_original>
